<compile_context>
chip_gen: v7x
topology: tpu7x:2x2x1
jax: 0.10.0
libtpu: 0.0.40
codegen_flags: <defaults>
</compile_context>

<pallas_src>
import functools

import jax
import jax.numpy as jnp
from jax.experimental import pallas as pl
from jax.experimental.pallas import tpu as pltpu

INPUT_SIZE = 9
HIDDEN_SIZE = 18
OUTPUT_SIZE = 9
NUM_LAYERS = 2          # hard-wired: two stacked cells inside the kernel
LANE = 128              # TPU lane width; one gate per 128-lane block
GATES = 4 * LANE        # lane-aligned packed gate width (i, f, g, o)
SUB = 8                 # sublane tile height; batch padded to a multiple


def _round_up(n, m):
    return (n + m - 1) // m * m


def _lstm_fc_prelu_kernel(x_ref, wih1_ref, whh1_ref, b1_ref,
                          wih2_ref, whh2_ref, b2_ref,
                          wfc_ref, bfc_ref, prelu_ref,
                          out_ref, *, seq, bp):
    """Whole-sequence 2-layer LSTM + FC + PReLU (single grid point).

    x_ref   : (seq*bp, LANE)     f32   rows [t*bp, (t+1)*bp) = step t (padded)
    wih1    : (LANE, 4*LANE)     f32   gate g in lanes [g*LANE, g*LANE+H)
    whh1/wih2/whh2 : (LANE, 4*LANE) bf16, same gate packing, rows >= H are 0
    b1/b2   : (1, 4*LANE)        f32   b_ih + b_hh merged, gate-lane packed
    wfc     : (LANE, LANE)       f32   real block [0:H, 0:OUT]
    bfc     : (1, LANE)          f32
    prelu   : (1,)               f32   SMEM scalar
    out_ref : (seq*bp, LANE)     f32   real data in [:, :OUT]
    """
    H = HIDDEN_SIZE

    # Read each weight / bias exactly once; the compiler places any spills,
    # and weight loads are off the recurrence critical path.
    whh1 = whh1_ref[...]
    wih2 = wih2_ref[...]
    whh2 = whh2_ref[...]
    b2 = b2_ref[...]

    # Hoisted layer-1 input projection for the whole sequence (no recurrent
    # dependence -> entirely off the serial per-step chain).
    xp = (jnp.dot(x_ref[...], wih1_ref[...],
                  preferred_element_type=jnp.float32) + b1_ref[...])

    def gates_to_hc(gates, c_prev):
        # Gate order (i, f, g, o); each gate is a 128-lane-aligned block, so
        # every slice below is a whole-vreg select with zero cross-lane
        # movement.  Padded lanes: gates == 0 exactly -> g = tanh(0) = 0 and
        # c stays 0, so h's padded lanes stay exactly 0 forever and the
        # zero-padded weight rows keep them out of every matmul.
        i = jax.nn.sigmoid(gates[:, 0 * LANE:1 * LANE])
        f = jax.nn.sigmoid(gates[:, 1 * LANE:2 * LANE])
        g = jnp.tanh(gates[:, 2 * LANE:3 * LANE])
        o = jax.nn.sigmoid(gates[:, 3 * LANE:4 * LANE])
        c_new = f * c_prev + i * g
        h_new = o * jnp.tanh(c_new)
        return h_new, c_new

    zeros = jnp.zeros((bp, LANE), jnp.float32)
    h1, c1, h2, c2 = zeros, zeros, zeros, zeros
    h2_steps = []

    # Fully unrolled time loop (seq is static at trace time): recurrent state
    # stays in vregs, no per-step VMEM round-trips on the critical path.
    for t in range(seq):
        xp_t = xp[t * bp:(t + 1) * bp, :]          # aligned (bp, 4*LANE) tile

        # Layer 1: only the recurrent matmul is serial; bf16 operands cut its
        # MXU push->pop latency, accumulation stays f32.
        if t == 0:
            gates1 = xp_t                                    # h1_prev == 0
        else:
            gates1 = xp_t + jnp.dot(h1.astype(jnp.bfloat16), whh1,
                                    preferred_element_type=jnp.float32)
        h1, c1 = gates_to_hc(gates1, c1)

        # Layer 2: h2_prev @ whh2 only depends on the previous step, so its
        # push->pop latency overlaps the layer-1 work above; only h1 @ wih2
        # is serial.  => 2 serial matmuls per step total.
        h1b = h1.astype(jnp.bfloat16)
        if t == 0:
            gates2 = (jnp.dot(h1b, wih2, preferred_element_type=jnp.float32)
                      + b2)                                  # h2_prev == 0
        else:
            gates2 = (jnp.dot(h1b, wih2, preferred_element_type=jnp.float32)
                      + jnp.dot(h2.astype(jnp.bfloat16), whh2,
                                preferred_element_type=jnp.float32)
                      + b2)
        h2, c2 = gates_to_hc(gates2, c2)
        h2_steps.append(h2)        # stays in vregs; no per-step VMEM store

    # Hoisted FC + PReLU: one concat, one matmul, one scalar read, one select,
    # one lane-dense block store.
    h2_all = jnp.concatenate(h2_steps, axis=0)               # (seq*bp, LANE)
    y = (jnp.dot(h2_all, wfc_ref[...],
                 preferred_element_type=jnp.float32) + bfc_ref[...])
    a = prelu_ref[0]
    out_ref[...] = jnp.where(y >= 0, y, a * y)


def pack_params_from_torch_layout(tp):
    """Convert PyTorch-layout parameters into the kernel's padded,
    gate-lane-aligned layout.  This is the single, code-enforced place that
    handles the PyTorch conventions: weight_ih/weight_hh are (4H, in) and get
    transposed, b_ih + b_hh are summed, gate order is (i, f, g, o).

    Expected keys (arrays in PyTorch shapes):
      lstm.weight_ih_l{0,1} (4H, in)   lstm.weight_hh_l{0,1} (4H, H)
      lstm.bias_ih_l{0,1}   (4H,)      lstm.bias_hh_l{0,1}   (4H,)
      fc.weight (OUT, H)   fc.bias (OUT,)   prelu.weight (1,)
    """
    H = HIDDEN_SIZE

    def pack_gates(w_t, rows, dtype):
        # w_t: (in_dim, 4H) -> (rows, 4*LANE); gate g -> lanes [g*LANE, g*LANE+H)
        in_dim = w_t.shape[0]
        out = jnp.zeros((rows, GATES), jnp.float32)
        for g in range(4):
            out = out.at[:in_dim, g * LANE:g * LANE + H].set(
                w_t[:, g * H:(g + 1) * H])
        return out.astype(dtype)

    def pack_bias(b):
        return pack_gates(jnp.reshape(b, (1, 4 * H)), 1, jnp.float32)

    wfc = jnp.zeros((LANE, LANE), jnp.float32)
    wfc = wfc.at[:H, :OUTPUT_SIZE].set(jnp.transpose(tp["fc.weight"]))
    bfc = jnp.zeros((1, LANE), jnp.float32).at[0, :OUTPUT_SIZE].set(
        tp["fc.bias"])

    return {
        # layer-1 input projection stays f32 (hoisted, off the critical path)
        "wih1": pack_gates(jnp.transpose(tp["lstm.weight_ih_l0"]), LANE,
                           jnp.float32),
        # recurrent weights in bf16: cuts serial MXU latency, f32 accumulate
        "whh1": pack_gates(jnp.transpose(tp["lstm.weight_hh_l0"]), LANE,
                           jnp.bfloat16),
        "b1": pack_bias(tp["lstm.bias_ih_l0"] + tp["lstm.bias_hh_l0"]),
        "wih2": pack_gates(jnp.transpose(tp["lstm.weight_ih_l1"]), LANE,
                           jnp.bfloat16),
        "whh2": pack_gates(jnp.transpose(tp["lstm.weight_hh_l1"]), LANE,
                           jnp.bfloat16),
        "b2": pack_bias(tp["lstm.bias_ih_l1"] + tp["lstm.bias_hh_l1"]),
        "wfc": wfc,
        "bfc": bfc,
        "prelu": jnp.reshape(tp["prelu.weight"], (1,)).astype(jnp.float32),
    }


def model_forward(x, kp):
    """x: (batch, seq, INPUT_SIZE) f32 -> (batch, seq, OUTPUT_SIZE) f32."""
    batch, seq, _ = x.shape
    bp = _round_up(max(batch, 1), SUB)   # pad batch to a full sublane tile

    # Layout plumbing only: seq-major, batch padded to bp rows, input padded
    # to one full 128-lane block -> (seq*bp, LANE) slab where each time step
    # owns an aligned (bp, LANE) tile.
    x_sb = jnp.transpose(x.astype(jnp.float32), (1, 0, 2))   # (seq, batch, in)
    x_sb = jnp.pad(x_sb, ((0, 0), (0, bp - batch), (0, LANE - INPUT_SIZE)))
    x2d = x_sb.reshape(seq * bp, LANE)

    vmem = pl.BlockSpec(memory_space=pltpu.MemorySpace.VMEM)
    smem = pl.BlockSpec(memory_space=pltpu.MemorySpace.SMEM)

    # Advisory cost estimate so XLA schedules around the custom call sensibly.
    mm_flops = (2 * seq * bp * LANE * GATES          # hoisted input proj
                + 2 * seq * 3 * bp * LANE * GATES    # 3 recurrent matmuls/step
                + 2 * seq * bp * LANE * LANE)        # hoisted FC
    bytes_acc = (x2d.size * 4
                 + kp["wih1"].size * 4 + kp["b1"].size * 4
                 + kp["whh1"].size * 2 + kp["wih2"].size * 2
                 + kp["whh2"].size * 2 + kp["b2"].size * 4
                 + kp["wfc"].size * 4 + kp["bfc"].size * 4
                 + kp["prelu"].size * 4
                 + seq * bp * LANE * 4)
    cost = pl.CostEstimate(
        flops=int(mm_flops),
        transcendentals=int(seq * NUM_LAYERS * 5 * bp * LANE),
        bytes_accessed=int(bytes_acc),
    )

    # NOTE: single grid point — at this size (seq=8, batch=2) the recurrence
    # is strictly serial and the whole footprint is tens of KB of VMEM.  For
    # large batch, add a leading 'parallel' grid axis over batch (shards
    # across v7x's two TensorCores); for long sequences, tile seq with an
    # 'arbitrary' axis and carry h/c in VMEM scratch across grid steps.
    out2d = pl.pallas_call(
        functools.partial(_lstm_fc_prelu_kernel, seq=seq, bp=bp),
        out_shape=jax.ShapeDtypeStruct((seq * bp, LANE), jnp.float32),
        in_specs=[vmem] * 9 + [smem],
        out_specs=vmem,
        cost_estimate=cost,
    )(x2d,
      kp["wih1"], kp["whh1"], kp["b1"],
      kp["wih2"], kp["whh2"], kp["b2"],
      kp["wfc"], kp["bfc"], kp["prelu"])

    out = out2d.reshape(seq, bp, LANE)[:, :batch, :OUTPUT_SIZE]
    return jnp.transpose(out, (1, 0, 2))


def init_torch_params(key):
    """Deterministic synthetic parameters in PyTorch layout / default init."""
    H, I, O = HIDDEN_SIZE, INPUT_SIZE, OUTPUT_SIZE
    k_lstm = 1.0 / float(H) ** 0.5
    k_fc = 1.0 / float(H) ** 0.5
    keys = jax.random.split(key, 10)

    def u(kk, shape, lim):
        return jax.random.uniform(kk, shape, jnp.float32, -lim, lim)

    return {
        "lstm.weight_ih_l0": u(keys[0], (4 * H, I), k_lstm),
        "lstm.weight_hh_l0": u(keys[1], (4 * H, H), k_lstm),
        "lstm.bias_ih_l0":   u(keys[2], (4 * H,), k_lstm),
        "lstm.bias_hh_l0":   u(keys[3], (4 * H,), k_lstm),
        "lstm.weight_ih_l1": u(keys[4], (4 * H, H), k_lstm),
        "lstm.weight_hh_l1": u(keys[5], (4 * H, H), k_lstm),
        "lstm.bias_ih_l1":   u(keys[6], (4 * H,), k_lstm),
        "lstm.bias_hh_l1":   u(keys[7], (4 * H,), k_lstm),
        "fc.weight":         u(keys[8], (O, H), k_fc),
        "fc.bias":           u(keys[9], (O,), k_fc),
        "prelu.weight":      jnp.array([0.25], jnp.float32),   # PyTorch default
    }


def ref_forward(x, tp):
    """Pure-JAX reference implementing the PyTorch module semantics."""
    batch, seq, _ = x.shape
    H = HIDDEN_SIZE

    def cell(x_t, h, c, w_ih, w_hh, b_ih, b_hh):
        gates = x_t @ w_ih.T + h @ w_hh.T + b_ih + b_hh
        i = jax.nn.sigmoid(gates[:, 0 * H:1 * H])
        f = jax.nn.sigmoid(gates[:, 1 * H:2 * H])
        g = jnp.tanh(gates[:, 2 * H:3 * H])
        o = jax.nn.sigmoid(gates[:, 3 * H:4 * H])
        c = f * c + i * g
        h = o * jnp.tanh(c)
        return h, c

    h1 = c1 = h2 = c2 = jnp.zeros((batch, H), jnp.float32)
    outs = []
    for t in range(seq):
        x_t = x[:, t, :]
        h1, c1 = cell(x_t, h1, c1,
                      tp["lstm.weight_ih_l0"], tp["lstm.weight_hh_l0"],
                      tp["lstm.bias_ih_l0"], tp["lstm.bias_hh_l0"])
        h2, c2 = cell(h1, h2, c2,
                      tp["lstm.weight_ih_l1"], tp["lstm.weight_hh_l1"],
                      tp["lstm.bias_ih_l1"], tp["lstm.bias_hh_l1"])
        y = h2 @ tp["fc.weight"].T + tp["fc.bias"]
        outs.append(jnp.where(y >= 0, y, tp["prelu.weight"][0] * y))
    return jnp.stack(outs, axis=1)


if __name__ == "__main__":
    key = jax.random.PRNGKey(0)
    pkey, xkey = jax.random.split(key)
    torch_params = init_torch_params(pkey)
    kernel_params = pack_params_from_torch_layout(torch_params)

    batch, seq = 2, 8
    x = jax.random.normal(xkey, (batch, seq, INPUT_SIZE), jnp.float32)

    out = jax.block_until_ready(model_forward(x, kernel_params))
    ref = jax.block_until_ready(ref_forward(x, torch_params))

    assert out.shape == (batch, seq, OUTPUT_SIZE), out.shape
    # Recurrent matmuls use bf16 operands (f32 accumulation), so compare
    # against the pure-f32 reference with a correspondingly relaxed tolerance.
    assert jnp.allclose(out, ref, atol=2e-2, rtol=2e-2), (
        float(jnp.max(jnp.abs(out - ref))))
    print("KERNEL_OK")
</pallas_src>

<mosaic_0001>
module attributes {stable_mosaic.version = 11 : i64} {
  func.func @_lstm_fc_prelu_kernel(%arg0: memref<64x128xf32, #tpu.memory_space<vmem>>, %arg1: memref<128x512xf32, #tpu.memory_space<vmem>>, %arg2: memref<128x512xbf16, #tpu.memory_space<vmem>>, %arg3: memref<1x512xf32, #tpu.memory_space<vmem>>, %arg4: memref<128x512xbf16, #tpu.memory_space<vmem>>, %arg5: memref<128x512xbf16, #tpu.memory_space<vmem>>, %arg6: memref<1x512xf32, #tpu.memory_space<vmem>>, %arg7: memref<128x128xf32, #tpu.memory_space<vmem>>, %arg8: memref<1x128xf32, #tpu.memory_space<vmem>>, %arg9: memref<1xf32, #tpu.memory_space<smem>>, %arg10: memref<64x128xf32, #tpu.memory_space<vmem>>) attributes {dimension_semantics = [], scalar_prefetch = 0 : i64, scratch_operands = 0 : i64, tpu.core_type = #tpu.core_type<tc>} {
    %c0 = arith.constant 0 : index
    %c0_0 = arith.constant 0 : index
    %0 = vector.load %arg2[%c0, %c0_0] : memref<128x512xbf16, #tpu.memory_space<vmem>>, vector<128x512xbf16>
    %c0_1 = arith.constant 0 : index
    %c0_2 = arith.constant 0 : index
    %1 = vector.load %arg4[%c0_1, %c0_2] : memref<128x512xbf16, #tpu.memory_space<vmem>>, vector<128x512xbf16>
    %c0_3 = arith.constant 0 : index
    %c0_4 = arith.constant 0 : index
    %2 = vector.load %arg5[%c0_3, %c0_4] : memref<128x512xbf16, #tpu.memory_space<vmem>>, vector<128x512xbf16>
    %c0_5 = arith.constant 0 : index
    %c0_6 = arith.constant 0 : index
    %3 = vector.load %arg6[%c0_5, %c0_6] : memref<1x512xf32, #tpu.memory_space<vmem>>, vector<1x512xf32>
    %c0_7 = arith.constant 0 : index
    %c0_8 = arith.constant 0 : index
    %4 = vector.load %arg0[%c0_7, %c0_8] : memref<64x128xf32, #tpu.memory_space<vmem>>, vector<64x128xf32>
    %c0_9 = arith.constant 0 : index
    %c0_10 = arith.constant 0 : index
    %5 = vector.load %arg1[%c0_9, %c0_10] : memref<128x512xf32, #tpu.memory_space<vmem>>, vector<128x512xf32>
    %cst = arith.constant dense<0.000000e+00> : vector<64x512xf32>
    %6 = tpu.matmul %4, %5, %cst {dimension_numbers = #tpu.dot_dimension_numbers<[1], [0], [0], [1], [0, 0, 1, 1], [], []>} : vector<64x128xf32>, vector<128x512xf32>, vector<64x512xf32> -> vector<64x512xf32>
    %c0_11 = arith.constant 0 : index
    %c0_12 = arith.constant 0 : index
    %7 = vector.load %arg3[%c0_11, %c0_12] : memref<1x512xf32, #tpu.memory_space<vmem>>, vector<1x512xf32>
    %8 = vector.broadcast %7 : vector<1x512xf32> to vector<64x512xf32>
    %9 = arith.addf %6, %8 : vector<64x512xf32>
    %cst_13 = arith.constant 0.000000e+00 : f32
    %10 = vector.broadcast %cst_13 : f32 to vector<8x128xf32>
    %11 = vector.extract_strided_slice %9 {offsets = [0, 0], sizes = [8, 512], strides = [1, 1]} : vector<64x512xf32> to vector<8x512xf32>
    %12 = vector.extract_strided_slice %11 {offsets = [0, 0], sizes = [8, 128], strides = [1, 1]} : vector<8x512xf32> to vector<8x128xf32>
    %13 = arith.negf %12 : vector<8x128xf32>
    %14 = math.exp %13 : vector<8x128xf32>
    %cst_14 = arith.constant 1.000000e+00 : f32
    %15 = vector.broadcast %cst_14 : f32 to vector<8x128xf32>
    %16 = arith.addf %15, %14 : vector<8x128xf32>
    %17 = arith.divf %15, %16 : vector<8x128xf32>
    %18 = vector.extract_strided_slice %11 {offsets = [0, 128], sizes = [8, 128], strides = [1, 1]} : vector<8x512xf32> to vector<8x128xf32>
    %19 = arith.negf %18 : vector<8x128xf32>
    %20 = math.exp %19 : vector<8x128xf32>
    %cst_15 = arith.constant 1.000000e+00 : f32
    %21 = vector.broadcast %cst_15 : f32 to vector<8x128xf32>
    %22 = arith.addf %21, %20 : vector<8x128xf32>
    %23 = arith.divf %21, %22 : vector<8x128xf32>
    %24 = vector.extract_strided_slice %11 {offsets = [0, 256], sizes = [8, 128], strides = [1, 1]} : vector<8x512xf32> to vector<8x128xf32>
    %25 = math.tanh %24 : vector<8x128xf32>
    %26 = vector.extract_strided_slice %11 {offsets = [0, 384], sizes = [8, 128], strides = [1, 1]} : vector<8x512xf32> to vector<8x128xf32>
    %27 = arith.negf %26 : vector<8x128xf32>
    %28 = math.exp %27 : vector<8x128xf32>
    %cst_16 = arith.constant 1.000000e+00 : f32
    %29 = vector.broadcast %cst_16 : f32 to vector<8x128xf32>
    %30 = arith.addf %29, %28 : vector<8x128xf32>
    %31 = arith.divf %29, %30 : vector<8x128xf32>
    %32 = arith.mulf %23, %10 : vector<8x128xf32>
    %33 = arith.mulf %17, %25 : vector<8x128xf32>
    %34 = arith.addf %32, %33 : vector<8x128xf32>
    %35 = math.tanh %34 : vector<8x128xf32>
    %36 = arith.mulf %31, %35 : vector<8x128xf32>
    %37 = arith.truncf %36 : vector<8x128xf32> to vector<8x128xbf16>
    %cst_17 = arith.constant dense<0.000000e+00> : vector<8x512xf32>
    %38 = tpu.matmul %37, %1, %cst_17 {dimension_numbers = #tpu.dot_dimension_numbers<[1], [0], [0], [1], [0, 0, 1, 1], [], []>} : vector<8x128xbf16>, vector<128x512xbf16>, vector<8x512xf32> -> vector<8x512xf32>
    %39 = vector.broadcast %3 : vector<1x512xf32> to vector<8x512xf32>
    %40 = arith.addf %38, %39 : vector<8x512xf32>
    %41 = vector.extract_strided_slice %40 {offsets = [0, 0], sizes = [8, 128], strides = [1, 1]} : vector<8x512xf32> to vector<8x128xf32>
    %42 = arith.negf %41 : vector<8x128xf32>
    %43 = math.exp %42 : vector<8x128xf32>
    %cst_18 = arith.constant 1.000000e+00 : f32
    %44 = vector.broadcast %cst_18 : f32 to vector<8x128xf32>
    %45 = arith.addf %44, %43 : vector<8x128xf32>
    %46 = arith.divf %44, %45 : vector<8x128xf32>
    %47 = vector.extract_strided_slice %40 {offsets = [0, 128], sizes = [8, 128], strides = [1, 1]} : vector<8x512xf32> to vector<8x128xf32>
    %48 = arith.negf %47 : vector<8x128xf32>
    %49 = math.exp %48 : vector<8x128xf32>
    %cst_19 = arith.constant 1.000000e+00 : f32
    %50 = vector.broadcast %cst_19 : f32 to vector<8x128xf32>
    %51 = arith.addf %50, %49 : vector<8x128xf32>
    %52 = arith.divf %50, %51 : vector<8x128xf32>
    %53 = vector.extract_strided_slice %40 {offsets = [0, 256], sizes = [8, 128], strides = [1, 1]} : vector<8x512xf32> to vector<8x128xf32>
    %54 = math.tanh %53 : vector<8x128xf32>
    %55 = vector.extract_strided_slice %40 {offsets = [0, 384], sizes = [8, 128], strides = [1, 1]} : vector<8x512xf32> to vector<8x128xf32>
    %56 = arith.negf %55 : vector<8x128xf32>
    %57 = math.exp %56 : vector<8x128xf32>
    %cst_20 = arith.constant 1.000000e+00 : f32
    %58 = vector.broadcast %cst_20 : f32 to vector<8x128xf32>
    %59 = arith.addf %58, %57 : vector<8x128xf32>
    %60 = arith.divf %58, %59 : vector<8x128xf32>
    %61 = arith.mulf %52, %10 : vector<8x128xf32>
    %62 = arith.mulf %46, %54 : vector<8x128xf32>
    %63 = arith.addf %61, %62 : vector<8x128xf32>
    %64 = math.tanh %63 : vector<8x128xf32>
    %65 = arith.mulf %60, %64 : vector<8x128xf32>
    %66 = vector.extract_strided_slice %9 {offsets = [8, 0], sizes = [8, 512], strides = [1, 1]} : vector<64x512xf32> to vector<8x512xf32>
    %67 = arith.truncf %36 : vector<8x128xf32> to vector<8x128xbf16>
    %cst_21 = arith.constant dense<0.000000e+00> : vector<8x512xf32>
    %68 = tpu.matmul %67, %0, %cst_21 {dimension_numbers = #tpu.dot_dimension_numbers<[1], [0], [0], [1], [0, 0, 1, 1], [], []>} : vector<8x128xbf16>, vector<128x512xbf16>, vector<8x512xf32> -> vector<8x512xf32>
    %69 = arith.addf %66, %68 : vector<8x512xf32>
    %70 = vector.extract_strided_slice %69 {offsets = [0, 0], sizes = [8, 128], strides = [1, 1]} : vector<8x512xf32> to vector<8x128xf32>
    %71 = arith.negf %70 : vector<8x128xf32>
    %72 = math.exp %71 : vector<8x128xf32>
    %cst_22 = arith.constant 1.000000e+00 : f32
    %73 = vector.broadcast %cst_22 : f32 to vector<8x128xf32>
    %74 = arith.addf %73, %72 : vector<8x128xf32>
    %75 = arith.divf %73, %74 : vector<8x128xf32>
    %76 = vector.extract_strided_slice %69 {offsets = [0, 128], sizes = [8, 128], strides = [1, 1]} : vector<8x512xf32> to vector<8x128xf32>
    %77 = arith.negf %76 : vector<8x128xf32>
    %78 = math.exp %77 : vector<8x128xf32>
    %cst_23 = arith.constant 1.000000e+00 : f32
    %79 = vector.broadcast %cst_23 : f32 to vector<8x128xf32>
    %80 = arith.addf %79, %78 : vector<8x128xf32>
    %81 = arith.divf %79, %80 : vector<8x128xf32>
    %82 = vector.extract_strided_slice %69 {offsets = [0, 256], sizes = [8, 128], strides = [1, 1]} : vector<8x512xf32> to vector<8x128xf32>
    %83 = math.tanh %82 : vector<8x128xf32>
    %84 = vector.extract_strided_slice %69 {offsets = [0, 384], sizes = [8, 128], strides = [1, 1]} : vector<8x512xf32> to vector<8x128xf32>
    %85 = arith.negf %84 : vector<8x128xf32>
    %86 = math.exp %85 : vector<8x128xf32>
    %cst_24 = arith.constant 1.000000e+00 : f32
    %87 = vector.broadcast %cst_24 : f32 to vector<8x128xf32>
    %88 = arith.addf %87, %86 : vector<8x128xf32>
    %89 = arith.divf %87, %88 : vector<8x128xf32>
    %90 = arith.mulf %81, %34 : vector<8x128xf32>
    %91 = arith.mulf %75, %83 : vector<8x128xf32>
    %92 = arith.addf %90, %91 : vector<8x128xf32>
    %93 = math.tanh %92 : vector<8x128xf32>
    %94 = arith.mulf %89, %93 : vector<8x128xf32>
    %95 = arith.truncf %94 : vector<8x128xf32> to vector<8x128xbf16>
    %cst_25 = arith.constant dense<0.000000e+00> : vector<8x512xf32>
    %96 = tpu.matmul %95, %1, %cst_25 {dimension_numbers = #tpu.dot_dimension_numbers<[1], [0], [0], [1], [0, 0, 1, 1], [], []>} : vector<8x128xbf16>, vector<128x512xbf16>, vector<8x512xf32> -> vector<8x512xf32>
    %97 = arith.truncf %65 : vector<8x128xf32> to vector<8x128xbf16>
    %cst_26 = arith.constant dense<0.000000e+00> : vector<8x512xf32>
    %98 = tpu.matmul %97, %2, %cst_26 {dimension_numbers = #tpu.dot_dimension_numbers<[1], [0], [0], [1], [0, 0, 1, 1], [], []>} : vector<8x128xbf16>, vector<128x512xbf16>, vector<8x512xf32> -> vector<8x512xf32>
    %99 = arith.addf %96, %98 : vector<8x512xf32>
    %100 = vector.broadcast %3 : vector<1x512xf32> to vector<8x512xf32>
    %101 = arith.addf %99, %100 : vector<8x512xf32>
    %102 = vector.extract_strided_slice %101 {offsets = [0, 0], sizes = [8, 128], strides = [1, 1]} : vector<8x512xf32> to vector<8x128xf32>
    %103 = arith.negf %102 : vector<8x128xf32>
    %104 = math.exp %103 : vector<8x128xf32>
    %cst_27 = arith.constant 1.000000e+00 : f32
    %105 = vector.broadcast %cst_27 : f32 to vector<8x128xf32>
    %106 = arith.addf %105, %104 : vector<8x128xf32>
    %107 = arith.divf %105, %106 : vector<8x128xf32>
    %108 = vector.extract_strided_slice %101 {offsets = [0, 128], sizes = [8, 128], strides = [1, 1]} : vector<8x512xf32> to vector<8x128xf32>
    %109 = arith.negf %108 : vector<8x128xf32>
    %110 = math.exp %109 : vector<8x128xf32>
    %cst_28 = arith.constant 1.000000e+00 : f32
    %111 = vector.broadcast %cst_28 : f32 to vector<8x128xf32>
    %112 = arith.addf %111, %110 : vector<8x128xf32>
    %113 = arith.divf %111, %112 : vector<8x128xf32>
    %114 = vector.extract_strided_slice %101 {offsets = [0, 256], sizes = [8, 128], strides = [1, 1]} : vector<8x512xf32> to vector<8x128xf32>
    %115 = math.tanh %114 : vector<8x128xf32>
    %116 = vector.extract_strided_slice %101 {offsets = [0, 384], sizes = [8, 128], strides = [1, 1]} : vector<8x512xf32> to vector<8x128xf32>
    %117 = arith.negf %116 : vector<8x128xf32>
    %118 = math.exp %117 : vector<8x128xf32>
    %cst_29 = arith.constant 1.000000e+00 : f32
    %119 = vector.broadcast %cst_29 : f32 to vector<8x128xf32>
    %120 = arith.addf %119, %118 : vector<8x128xf32>
    %121 = arith.divf %119, %120 : vector<8x128xf32>
    %122 = arith.mulf %113, %63 : vector<8x128xf32>
    %123 = arith.mulf %107, %115 : vector<8x128xf32>
    %124 = arith.addf %122, %123 : vector<8x128xf32>
    %125 = math.tanh %124 : vector<8x128xf32>
    %126 = arith.mulf %121, %125 : vector<8x128xf32>
    %127 = vector.extract_strided_slice %9 {offsets = [16, 0], sizes = [8, 512], strides = [1, 1]} : vector<64x512xf32> to vector<8x512xf32>
    %128 = arith.truncf %94 : vector<8x128xf32> to vector<8x128xbf16>
    %cst_30 = arith.constant dense<0.000000e+00> : vector<8x512xf32>
    %129 = tpu.matmul %128, %0, %cst_30 {dimension_numbers = #tpu.dot_dimension_numbers<[1], [0], [0], [1], [0, 0, 1, 1], [], []>} : vector<8x128xbf16>, vector<128x512xbf16>, vector<8x512xf32> -> vector<8x512xf32>
    %130 = arith.addf %127, %129 : vector<8x512xf32>
    %131 = vector.extract_strided_slice %130 {offsets = [0, 0], sizes = [8, 128], strides = [1, 1]} : vector<8x512xf32> to vector<8x128xf32>
    %132 = arith.negf %131 : vector<8x128xf32>
    %133 = math.exp %132 : vector<8x128xf32>
    %cst_31 = arith.constant 1.000000e+00 : f32
    %134 = vector.broadcast %cst_31 : f32 to vector<8x128xf32>
    %135 = arith.addf %134, %133 : vector<8x128xf32>
    %136 = arith.divf %134, %135 : vector<8x128xf32>
    %137 = vector.extract_strided_slice %130 {offsets = [0, 128], sizes = [8, 128], strides = [1, 1]} : vector<8x512xf32> to vector<8x128xf32>
    %138 = arith.negf %137 : vector<8x128xf32>
    %139 = math.exp %138 : vector<8x128xf32>
    %cst_32 = arith.constant 1.000000e+00 : f32
    %140 = vector.broadcast %cst_32 : f32 to vector<8x128xf32>
    %141 = arith.addf %140, %139 : vector<8x128xf32>
    %142 = arith.divf %140, %141 : vector<8x128xf32>
    %143 = vector.extract_strided_slice %130 {offsets = [0, 256], sizes = [8, 128], strides = [1, 1]} : vector<8x512xf32> to vector<8x128xf32>
    %144 = math.tanh %143 : vector<8x128xf32>
    %145 = vector.extract_strided_slice %130 {offsets = [0, 384], sizes = [8, 128], strides = [1, 1]} : vector<8x512xf32> to vector<8x128xf32>
    %146 = arith.negf %145 : vector<8x128xf32>
    %147 = math.exp %146 : vector<8x128xf32>
    %cst_33 = arith.constant 1.000000e+00 : f32
    %148 = vector.broadcast %cst_33 : f32 to vector<8x128xf32>
    %149 = arith.addf %148, %147 : vector<8x128xf32>
    %150 = arith.divf %148, %149 : vector<8x128xf32>
    %151 = arith.mulf %142, %92 : vector<8x128xf32>
    %152 = arith.mulf %136, %144 : vector<8x128xf32>
    %153 = arith.addf %151, %152 : vector<8x128xf32>
    %154 = math.tanh %153 : vector<8x128xf32>
    %155 = arith.mulf %150, %154 : vector<8x128xf32>
    %156 = arith.truncf %155 : vector<8x128xf32> to vector<8x128xbf16>
    %cst_34 = arith.constant dense<0.000000e+00> : vector<8x512xf32>
    %157 = tpu.matmul %156, %1, %cst_34 {dimension_numbers = #tpu.dot_dimension_numbers<[1], [0], [0], [1], [0, 0, 1, 1], [], []>} : vector<8x128xbf16>, vector<128x512xbf16>, vector<8x512xf32> -> vector<8x512xf32>
    %158 = arith.truncf %126 : vector<8x128xf32> to vector<8x128xbf16>
    %cst_35 = arith.constant dense<0.000000e+00> : vector<8x512xf32>
    %159 = tpu.matmul %158, %2, %cst_35 {dimension_numbers = #tpu.dot_dimension_numbers<[1], [0], [0], [1], [0, 0, 1, 1], [], []>} : vector<8x128xbf16>, vector<128x512xbf16>, vector<8x512xf32> -> vector<8x512xf32>
    %160 = arith.addf %157, %159 : vector<8x512xf32>
    %161 = vector.broadcast %3 : vector<1x512xf32> to vector<8x512xf32>
    %162 = arith.addf %160, %161 : vector<8x512xf32>
    %163 = vector.extract_strided_slice %162 {offsets = [0, 0], sizes = [8, 128], strides = [1, 1]} : vector<8x512xf32> to vector<8x128xf32>
    %164 = arith.negf %163 : vector<8x128xf32>
    %165 = math.exp %164 : vector<8x128xf32>
    %cst_36 = arith.constant 1.000000e+00 : f32
    %166 = vector.broadcast %cst_36 : f32 to vector<8x128xf32>
    %167 = arith.addf %166, %165 : vector<8x128xf32>
    %168 = arith.divf %166, %167 : vector<8x128xf32>
    %169 = vector.extract_strided_slice %162 {offsets = [0, 128], sizes = [8, 128], strides = [1, 1]} : vector<8x512xf32> to vector<8x128xf32>
    %170 = arith.negf %169 : vector<8x128xf32>
    %171 = math.exp %170 : vector<8x128xf32>
    %cst_37 = arith.constant 1.000000e+00 : f32
    %172 = vector.broadcast %cst_37 : f32 to vector<8x128xf32>
    %173 = arith.addf %172, %171 : vector<8x128xf32>
    %174 = arith.divf %172, %173 : vector<8x128xf32>
    %175 = vector.extract_strided_slice %162 {offsets = [0, 256], sizes = [8, 128], strides = [1, 1]} : vector<8x512xf32> to vector<8x128xf32>
    %176 = math.tanh %175 : vector<8x128xf32>
    %177 = vector.extract_strided_slice %162 {offsets = [0, 384], sizes = [8, 128], strides = [1, 1]} : vector<8x512xf32> to vector<8x128xf32>
    %178 = arith.negf %177 : vector<8x128xf32>
    %179 = math.exp %178 : vector<8x128xf32>
    %cst_38 = arith.constant 1.000000e+00 : f32
    %180 = vector.broadcast %cst_38 : f32 to vector<8x128xf32>
    %181 = arith.addf %180, %179 : vector<8x128xf32>
    %182 = arith.divf %180, %181 : vector<8x128xf32>
    %183 = arith.mulf %174, %124 : vector<8x128xf32>
    %184 = arith.mulf %168, %176 : vector<8x128xf32>
    %185 = arith.addf %183, %184 : vector<8x128xf32>
    %186 = math.tanh %185 : vector<8x128xf32>
    %187 = arith.mulf %182, %186 : vector<8x128xf32>
    %188 = vector.extract_strided_slice %9 {offsets = [24, 0], sizes = [8, 512], strides = [1, 1]} : vector<64x512xf32> to vector<8x512xf32>
    %189 = arith.truncf %155 : vector<8x128xf32> to vector<8x128xbf16>
    %cst_39 = arith.constant dense<0.000000e+00> : vector<8x512xf32>
    %190 = tpu.matmul %189, %0, %cst_39 {dimension_numbers = #tpu.dot_dimension_numbers<[1], [0], [0], [1], [0, 0, 1, 1], [], []>} : vector<8x128xbf16>, vector<128x512xbf16>, vector<8x512xf32> -> vector<8x512xf32>
    %191 = arith.addf %188, %190 : vector<8x512xf32>
    %192 = vector.extract_strided_slice %191 {offsets = [0, 0], sizes = [8, 128], strides = [1, 1]} : vector<8x512xf32> to vector<8x128xf32>
    %193 = arith.negf %192 : vector<8x128xf32>
    %194 = math.exp %193 : vector<8x128xf32>
    %cst_40 = arith.constant 1.000000e+00 : f32
    %195 = vector.broadcast %cst_40 : f32 to vector<8x128xf32>
    %196 = arith.addf %195, %194 : vector<8x128xf32>
    %197 = arith.divf %195, %196 : vector<8x128xf32>
    %198 = vector.extract_strided_slice %191 {offsets = [0, 128], sizes = [8, 128], strides = [1, 1]} : vector<8x512xf32> to vector<8x128xf32>
    %199 = arith.negf %198 : vector<8x128xf32>
    %200 = math.exp %199 : vector<8x128xf32>
    %cst_41 = arith.constant 1.000000e+00 : f32
    %201 = vector.broadcast %cst_41 : f32 to vector<8x128xf32>
    %202 = arith.addf %201, %200 : vector<8x128xf32>
    %203 = arith.divf %201, %202 : vector<8x128xf32>
    %204 = vector.extract_strided_slice %191 {offsets = [0, 256], sizes = [8, 128], strides = [1, 1]} : vector<8x512xf32> to vector<8x128xf32>
    %205 = math.tanh %204 : vector<8x128xf32>
    %206 = vector.extract_strided_slice %191 {offsets = [0, 384], sizes = [8, 128], strides = [1, 1]} : vector<8x512xf32> to vector<8x128xf32>
    %207 = arith.negf %206 : vector<8x128xf32>
    %208 = math.exp %207 : vector<8x128xf32>
    %cst_42 = arith.constant 1.000000e+00 : f32
    %209 = vector.broadcast %cst_42 : f32 to vector<8x128xf32>
    %210 = arith.addf %209, %208 : vector<8x128xf32>
    %211 = arith.divf %209, %210 : vector<8x128xf32>
    %212 = arith.mulf %203, %153 : vector<8x128xf32>
    %213 = arith.mulf %197, %205 : vector<8x128xf32>
    %214 = arith.addf %212, %213 : vector<8x128xf32>
    %215 = math.tanh %214 : vector<8x128xf32>
    %216 = arith.mulf %211, %215 : vector<8x128xf32>
    %217 = arith.truncf %216 : vector<8x128xf32> to vector<8x128xbf16>
    %cst_43 = arith.constant dense<0.000000e+00> : vector<8x512xf32>
    %218 = tpu.matmul %217, %1, %cst_43 {dimension_numbers = #tpu.dot_dimension_numbers<[1], [0], [0], [1], [0, 0, 1, 1], [], []>} : vector<8x128xbf16>, vector<128x512xbf16>, vector<8x512xf32> -> vector<8x512xf32>
    %219 = arith.truncf %187 : vector<8x128xf32> to vector<8x128xbf16>
    %cst_44 = arith.constant dense<0.000000e+00> : vector<8x512xf32>
    %220 = tpu.matmul %219, %2, %cst_44 {dimension_numbers = #tpu.dot_dimension_numbers<[1], [0], [0], [1], [0, 0, 1, 1], [], []>} : vector<8x128xbf16>, vector<128x512xbf16>, vector<8x512xf32> -> vector<8x512xf32>
    %221 = arith.addf %218, %220 : vector<8x512xf32>
    %222 = vector.broadcast %3 : vector<1x512xf32> to vector<8x512xf32>
    %223 = arith.addf %221, %222 : vector<8x512xf32>
    %224 = vector.extract_strided_slice %223 {offsets = [0, 0], sizes = [8, 128], strides = [1, 1]} : vector<8x512xf32> to vector<8x128xf32>
    %225 = arith.negf %224 : vector<8x128xf32>
    %226 = math.exp %225 : vector<8x128xf32>
    %cst_45 = arith.constant 1.000000e+00 : f32
    %227 = vector.broadcast %cst_45 : f32 to vector<8x128xf32>
    %228 = arith.addf %227, %226 : vector<8x128xf32>
    %229 = arith.divf %227, %228 : vector<8x128xf32>
    %230 = vector.extract_strided_slice %223 {offsets = [0, 128], sizes = [8, 128], strides = [1, 1]} : vector<8x512xf32> to vector<8x128xf32>
    %231 = arith.negf %230 : vector<8x128xf32>
    %232 = math.exp %231 : vector<8x128xf32>
    %cst_46 = arith.constant 1.000000e+00 : f32
    %233 = vector.broadcast %cst_46 : f32 to vector<8x128xf32>
    %234 = arith.addf %233, %232 : vector<8x128xf32>
    %235 = arith.divf %233, %234 : vector<8x128xf32>
    %236 = vector.extract_strided_slice %223 {offsets = [0, 256], sizes = [8, 128], strides = [1, 1]} : vector<8x512xf32> to vector<8x128xf32>
    %237 = math.tanh %236 : vector<8x128xf32>
    %238 = vector.extract_strided_slice %223 {offsets = [0, 384], sizes = [8, 128], strides = [1, 1]} : vector<8x512xf32> to vector<8x128xf32>
    %239 = arith.negf %238 : vector<8x128xf32>
    %240 = math.exp %239 : vector<8x128xf32>
    %cst_47 = arith.constant 1.000000e+00 : f32
    %241 = vector.broadcast %cst_47 : f32 to vector<8x128xf32>
    %242 = arith.addf %241, %240 : vector<8x128xf32>
    %243 = arith.divf %241, %242 : vector<8x128xf32>
    %244 = arith.mulf %235, %185 : vector<8x128xf32>
    %245 = arith.mulf %229, %237 : vector<8x128xf32>
    %246 = arith.addf %244, %245 : vector<8x128xf32>
    %247 = math.tanh %246 : vector<8x128xf32>
    %248 = arith.mulf %243, %247 : vector<8x128xf32>
    %249 = vector.extract_strided_slice %9 {offsets = [32, 0], sizes = [8, 512], strides = [1, 1]} : vector<64x512xf32> to vector<8x512xf32>
    %250 = arith.truncf %216 : vector<8x128xf32> to vector<8x128xbf16>
    %cst_48 = arith.constant dense<0.000000e+00> : vector<8x512xf32>
    %251 = tpu.matmul %250, %0, %cst_48 {dimension_numbers = #tpu.dot_dimension_numbers<[1], [0], [0], [1], [0, 0, 1, 1], [], []>} : vector<8x128xbf16>, vector<128x512xbf16>, vector<8x512xf32> -> vector<8x512xf32>
    %252 = arith.addf %249, %251 : vector<8x512xf32>
    %253 = vector.extract_strided_slice %252 {offsets = [0, 0], sizes = [8, 128], strides = [1, 1]} : vector<8x512xf32> to vector<8x128xf32>
    %254 = arith.negf %253 : vector<8x128xf32>
    %255 = math.exp %254 : vector<8x128xf32>
    %cst_49 = arith.constant 1.000000e+00 : f32
    %256 = vector.broadcast %cst_49 : f32 to vector<8x128xf32>
    %257 = arith.addf %256, %255 : vector<8x128xf32>
    %258 = arith.divf %256, %257 : vector<8x128xf32>
    %259 = vector.extract_strided_slice %252 {offsets = [0, 128], sizes = [8, 128], strides = [1, 1]} : vector<8x512xf32> to vector<8x128xf32>
    %260 = arith.negf %259 : vector<8x128xf32>
    %261 = math.exp %260 : vector<8x128xf32>
    %cst_50 = arith.constant 1.000000e+00 : f32
    %262 = vector.broadcast %cst_50 : f32 to vector<8x128xf32>
    %263 = arith.addf %262, %261 : vector<8x128xf32>
    %264 = arith.divf %262, %263 : vector<8x128xf32>
    %265 = vector.extract_strided_slice %252 {offsets = [0, 256], sizes = [8, 128], strides = [1, 1]} : vector<8x512xf32> to vector<8x128xf32>
    %266 = math.tanh %265 : vector<8x128xf32>
    %267 = vector.extract_strided_slice %252 {offsets = [0, 384], sizes = [8, 128], strides = [1, 1]} : vector<8x512xf32> to vector<8x128xf32>
    %268 = arith.negf %267 : vector<8x128xf32>
    %269 = math.exp %268 : vector<8x128xf32>
    %cst_51 = arith.constant 1.000000e+00 : f32
    %270 = vector.broadcast %cst_51 : f32 to vector<8x128xf32>
    %271 = arith.addf %270, %269 : vector<8x128xf32>
    %272 = arith.divf %270, %271 : vector<8x128xf32>
    %273 = arith.mulf %264, %214 : vector<8x128xf32>
    %274 = arith.mulf %258, %266 : vector<8x128xf32>
    %275 = arith.addf %273, %274 : vector<8x128xf32>
    %276 = math.tanh %275 : vector<8x128xf32>
    %277 = arith.mulf %272, %276 : vector<8x128xf32>
    %278 = arith.truncf %277 : vector<8x128xf32> to vector<8x128xbf16>
    %cst_52 = arith.constant dense<0.000000e+00> : vector<8x512xf32>
    %279 = tpu.matmul %278, %1, %cst_52 {dimension_numbers = #tpu.dot_dimension_numbers<[1], [0], [0], [1], [0, 0, 1, 1], [], []>} : vector<8x128xbf16>, vector<128x512xbf16>, vector<8x512xf32> -> vector<8x512xf32>
    %280 = arith.truncf %248 : vector<8x128xf32> to vector<8x128xbf16>
    %cst_53 = arith.constant dense<0.000000e+00> : vector<8x512xf32>
    %281 = tpu.matmul %280, %2, %cst_53 {dimension_numbers = #tpu.dot_dimension_numbers<[1], [0], [0], [1], [0, 0, 1, 1], [], []>} : vector<8x128xbf16>, vector<128x512xbf16>, vector<8x512xf32> -> vector<8x512xf32>
    %282 = arith.addf %279, %281 : vector<8x512xf32>
    %283 = vector.broadcast %3 : vector<1x512xf32> to vector<8x512xf32>
    %284 = arith.addf %282, %283 : vector<8x512xf32>
    %285 = vector.extract_strided_slice %284 {offsets = [0, 0], sizes = [8, 128], strides = [1, 1]} : vector<8x512xf32> to vector<8x128xf32>
    %286 = arith.negf %285 : vector<8x128xf32>
    %287 = math.exp %286 : vector<8x128xf32>
    %cst_54 = arith.constant 1.000000e+00 : f32
    %288 = vector.broadcast %cst_54 : f32 to vector<8x128xf32>
    %289 = arith.addf %288, %287 : vector<8x128xf32>
    %290 = arith.divf %288, %289 : vector<8x128xf32>
    %291 = vector.extract_strided_slice %284 {offsets = [0, 128], sizes = [8, 128], strides = [1, 1]} : vector<8x512xf32> to vector<8x128xf32>
    %292 = arith.negf %291 : vector<8x128xf32>
    %293 = math.exp %292 : vector<8x128xf32>
    %cst_55 = arith.constant 1.000000e+00 : f32
    %294 = vector.broadcast %cst_55 : f32 to vector<8x128xf32>
    %295 = arith.addf %294, %293 : vector<8x128xf32>
    %296 = arith.divf %294, %295 : vector<8x128xf32>
    %297 = vector.extract_strided_slice %284 {offsets = [0, 256], sizes = [8, 128], strides = [1, 1]} : vector<8x512xf32> to vector<8x128xf32>
    %298 = math.tanh %297 : vector<8x128xf32>
    %299 = vector.extract_strided_slice %284 {offsets = [0, 384], sizes = [8, 128], strides = [1, 1]} : vector<8x512xf32> to vector<8x128xf32>
    %300 = arith.negf %299 : vector<8x128xf32>
    %301 = math.exp %300 : vector<8x128xf32>
    %cst_56 = arith.constant 1.000000e+00 : f32
    %302 = vector.broadcast %cst_56 : f32 to vector<8x128xf32>
    %303 = arith.addf %302, %301 : vector<8x128xf32>
    %304 = arith.divf %302, %303 : vector<8x128xf32>
    %305 = arith.mulf %296, %246 : vector<8x128xf32>
    %306 = arith.mulf %290, %298 : vector<8x128xf32>
    %307 = arith.addf %305, %306 : vector<8x128xf32>
    %308 = math.tanh %307 : vector<8x128xf32>
    %309 = arith.mulf %304, %308 : vector<8x128xf32>
    %310 = vector.extract_strided_slice %9 {offsets = [40, 0], sizes = [8, 512], strides = [1, 1]} : vector<64x512xf32> to vector<8x512xf32>
    %311 = arith.truncf %277 : vector<8x128xf32> to vector<8x128xbf16>
    %cst_57 = arith.constant dense<0.000000e+00> : vector<8x512xf32>
    %312 = tpu.matmul %311, %0, %cst_57 {dimension_numbers = #tpu.dot_dimension_numbers<[1], [0], [0], [1], [0, 0, 1, 1], [], []>} : vector<8x128xbf16>, vector<128x512xbf16>, vector<8x512xf32> -> vector<8x512xf32>
    %313 = arith.addf %310, %312 : vector<8x512xf32>
    %314 = vector.extract_strided_slice %313 {offsets = [0, 0], sizes = [8, 128], strides = [1, 1]} : vector<8x512xf32> to vector<8x128xf32>
    %315 = arith.negf %314 : vector<8x128xf32>
    %316 = math.exp %315 : vector<8x128xf32>
    %cst_58 = arith.constant 1.000000e+00 : f32
    %317 = vector.broadcast %cst_58 : f32 to vector<8x128xf32>
    %318 = arith.addf %317, %316 : vector<8x128xf32>
    %319 = arith.divf %317, %318 : vector<8x128xf32>
    %320 = vector.extract_strided_slice %313 {offsets = [0, 128], sizes = [8, 128], strides = [1, 1]} : vector<8x512xf32> to vector<8x128xf32>
    %321 = arith.negf %320 : vector<8x128xf32>
    %322 = math.exp %321 : vector<8x128xf32>
    %cst_59 = arith.constant 1.000000e+00 : f32
    %323 = vector.broadcast %cst_59 : f32 to vector<8x128xf32>
    %324 = arith.addf %323, %322 : vector<8x128xf32>
    %325 = arith.divf %323, %324 : vector<8x128xf32>
    %326 = vector.extract_strided_slice %313 {offsets = [0, 256], sizes = [8, 128], strides = [1, 1]} : vector<8x512xf32> to vector<8x128xf32>
    %327 = math.tanh %326 : vector<8x128xf32>
    %328 = vector.extract_strided_slice %313 {offsets = [0, 384], sizes = [8, 128], strides = [1, 1]} : vector<8x512xf32> to vector<8x128xf32>
    %329 = arith.negf %328 : vector<8x128xf32>
    %330 = math.exp %329 : vector<8x128xf32>
    %cst_60 = arith.constant 1.000000e+00 : f32
    %331 = vector.broadcast %cst_60 : f32 to vector<8x128xf32>
    %332 = arith.addf %331, %330 : vector<8x128xf32>
    %333 = arith.divf %331, %332 : vector<8x128xf32>
    %334 = arith.mulf %325, %275 : vector<8x128xf32>
    %335 = arith.mulf %319, %327 : vector<8x128xf32>
    %336 = arith.addf %334, %335 : vector<8x128xf32>
    %337 = math.tanh %336 : vector<8x128xf32>
    %338 = arith.mulf %333, %337 : vector<8x128xf32>
    %339 = arith.truncf %338 : vector<8x128xf32> to vector<8x128xbf16>
    %cst_61 = arith.constant dense<0.000000e+00> : vector<8x512xf32>
    %340 = tpu.matmul %339, %1, %cst_61 {dimension_numbers = #tpu.dot_dimension_numbers<[1], [0], [0], [1], [0, 0, 1, 1], [], []>} : vector<8x128xbf16>, vector<128x512xbf16>, vector<8x512xf32> -> vector<8x512xf32>
    %341 = arith.truncf %309 : vector<8x128xf32> to vector<8x128xbf16>
    %cst_62 = arith.constant dense<0.000000e+00> : vector<8x512xf32>
    %342 = tpu.matmul %341, %2, %cst_62 {dimension_numbers = #tpu.dot_dimension_numbers<[1], [0], [0], [1], [0, 0, 1, 1], [], []>} : vector<8x128xbf16>, vector<128x512xbf16>, vector<8x512xf32> -> vector<8x512xf32>
    %343 = arith.addf %340, %342 : vector<8x512xf32>
    %344 = vector.broadcast %3 : vector<1x512xf32> to vector<8x512xf32>
    %345 = arith.addf %343, %344 : vector<8x512xf32>
    %346 = vector.extract_strided_slice %345 {offsets = [0, 0], sizes = [8, 128], strides = [1, 1]} : vector<8x512xf32> to vector<8x128xf32>
    %347 = arith.negf %346 : vector<8x128xf32>
    %348 = math.exp %347 : vector<8x128xf32>
    %cst_63 = arith.constant 1.000000e+00 : f32
    %349 = vector.broadcast %cst_63 : f32 to vector<8x128xf32>
    %350 = arith.addf %349, %348 : vector<8x128xf32>
    %351 = arith.divf %349, %350 : vector<8x128xf32>
    %352 = vector.extract_strided_slice %345 {offsets = [0, 128], sizes = [8, 128], strides = [1, 1]} : vector<8x512xf32> to vector<8x128xf32>
    %353 = arith.negf %352 : vector<8x128xf32>
    %354 = math.exp %353 : vector<8x128xf32>
    %cst_64 = arith.constant 1.000000e+00 : f32
    %355 = vector.broadcast %cst_64 : f32 to vector<8x128xf32>
    %356 = arith.addf %355, %354 : vector<8x128xf32>
    %357 = arith.divf %355, %356 : vector<8x128xf32>
    %358 = vector.extract_strided_slice %345 {offsets = [0, 256], sizes = [8, 128], strides = [1, 1]} : vector<8x512xf32> to vector<8x128xf32>
    %359 = math.tanh %358 : vector<8x128xf32>
    %360 = vector.extract_strided_slice %345 {offsets = [0, 384], sizes = [8, 128], strides = [1, 1]} : vector<8x512xf32> to vector<8x128xf32>
    %361 = arith.negf %360 : vector<8x128xf32>
    %362 = math.exp %361 : vector<8x128xf32>
    %cst_65 = arith.constant 1.000000e+00 : f32
    %363 = vector.broadcast %cst_65 : f32 to vector<8x128xf32>
    %364 = arith.addf %363, %362 : vector<8x128xf32>
    %365 = arith.divf %363, %364 : vector<8x128xf32>
    %366 = arith.mulf %357, %307 : vector<8x128xf32>
    %367 = arith.mulf %351, %359 : vector<8x128xf32>
    %368 = arith.addf %366, %367 : vector<8x128xf32>
    %369 = math.tanh %368 : vector<8x128xf32>
    %370 = arith.mulf %365, %369 : vector<8x128xf32>
    %371 = vector.extract_strided_slice %9 {offsets = [48, 0], sizes = [8, 512], strides = [1, 1]} : vector<64x512xf32> to vector<8x512xf32>
    %372 = arith.truncf %338 : vector<8x128xf32> to vector<8x128xbf16>
    %cst_66 = arith.constant dense<0.000000e+00> : vector<8x512xf32>
    %373 = tpu.matmul %372, %0, %cst_66 {dimension_numbers = #tpu.dot_dimension_numbers<[1], [0], [0], [1], [0, 0, 1, 1], [], []>} : vector<8x128xbf16>, vector<128x512xbf16>, vector<8x512xf32> -> vector<8x512xf32>
    %374 = arith.addf %371, %373 : vector<8x512xf32>
    %375 = vector.extract_strided_slice %374 {offsets = [0, 0], sizes = [8, 128], strides = [1, 1]} : vector<8x512xf32> to vector<8x128xf32>
    %376 = arith.negf %375 : vector<8x128xf32>
    %377 = math.exp %376 : vector<8x128xf32>
    %cst_67 = arith.constant 1.000000e+00 : f32
    %378 = vector.broadcast %cst_67 : f32 to vector<8x128xf32>
    %379 = arith.addf %378, %377 : vector<8x128xf32>
    %380 = arith.divf %378, %379 : vector<8x128xf32>
    %381 = vector.extract_strided_slice %374 {offsets = [0, 128], sizes = [8, 128], strides = [1, 1]} : vector<8x512xf32> to vector<8x128xf32>
    %382 = arith.negf %381 : vector<8x128xf32>
    %383 = math.exp %382 : vector<8x128xf32>
    %cst_68 = arith.constant 1.000000e+00 : f32
    %384 = vector.broadcast %cst_68 : f32 to vector<8x128xf32>
    %385 = arith.addf %384, %383 : vector<8x128xf32>
    %386 = arith.divf %384, %385 : vector<8x128xf32>
    %387 = vector.extract_strided_slice %374 {offsets = [0, 256], sizes = [8, 128], strides = [1, 1]} : vector<8x512xf32> to vector<8x128xf32>
    %388 = math.tanh %387 : vector<8x128xf32>
    %389 = vector.extract_strided_slice %374 {offsets = [0, 384], sizes = [8, 128], strides = [1, 1]} : vector<8x512xf32> to vector<8x128xf32>
    %390 = arith.negf %389 : vector<8x128xf32>
    %391 = math.exp %390 : vector<8x128xf32>
    %cst_69 = arith.constant 1.000000e+00 : f32
    %392 = vector.broadcast %cst_69 : f32 to vector<8x128xf32>
    %393 = arith.addf %392, %391 : vector<8x128xf32>
    %394 = arith.divf %392, %393 : vector<8x128xf32>
    %395 = arith.mulf %386, %336 : vector<8x128xf32>
    %396 = arith.mulf %380, %388 : vector<8x128xf32>
    %397 = arith.addf %395, %396 : vector<8x128xf32>
    %398 = math.tanh %397 : vector<8x128xf32>
    %399 = arith.mulf %394, %398 : vector<8x128xf32>
    %400 = arith.truncf %399 : vector<8x128xf32> to vector<8x128xbf16>
    %cst_70 = arith.constant dense<0.000000e+00> : vector<8x512xf32>
    %401 = tpu.matmul %400, %1, %cst_70 {dimension_numbers = #tpu.dot_dimension_numbers<[1], [0], [0], [1], [0, 0, 1, 1], [], []>} : vector<8x128xbf16>, vector<128x512xbf16>, vector<8x512xf32> -> vector<8x512xf32>
    %402 = arith.truncf %370 : vector<8x128xf32> to vector<8x128xbf16>
    %cst_71 = arith.constant dense<0.000000e+00> : vector<8x512xf32>
    %403 = tpu.matmul %402, %2, %cst_71 {dimension_numbers = #tpu.dot_dimension_numbers<[1], [0], [0], [1], [0, 0, 1, 1], [], []>} : vector<8x128xbf16>, vector<128x512xbf16>, vector<8x512xf32> -> vector<8x512xf32>
    %404 = arith.addf %401, %403 : vector<8x512xf32>
    %405 = vector.broadcast %3 : vector<1x512xf32> to vector<8x512xf32>
    %406 = arith.addf %404, %405 : vector<8x512xf32>
    %407 = vector.extract_strided_slice %406 {offsets = [0, 0], sizes = [8, 128], strides = [1, 1]} : vector<8x512xf32> to vector<8x128xf32>
    %408 = arith.negf %407 : vector<8x128xf32>
    %409 = math.exp %408 : vector<8x128xf32>
    %cst_72 = arith.constant 1.000000e+00 : f32
    %410 = vector.broadcast %cst_72 : f32 to vector<8x128xf32>
    %411 = arith.addf %410, %409 : vector<8x128xf32>
    %412 = arith.divf %410, %411 : vector<8x128xf32>
    %413 = vector.extract_strided_slice %406 {offsets = [0, 128], sizes = [8, 128], strides = [1, 1]} : vector<8x512xf32> to vector<8x128xf32>
    %414 = arith.negf %413 : vector<8x128xf32>
    %415 = math.exp %414 : vector<8x128xf32>
    %cst_73 = arith.constant 1.000000e+00 : f32
    %416 = vector.broadcast %cst_73 : f32 to vector<8x128xf32>
    %417 = arith.addf %416, %415 : vector<8x128xf32>
    %418 = arith.divf %416, %417 : vector<8x128xf32>
    %419 = vector.extract_strided_slice %406 {offsets = [0, 256], sizes = [8, 128], strides = [1, 1]} : vector<8x512xf32> to vector<8x128xf32>
    %420 = math.tanh %419 : vector<8x128xf32>
    %421 = vector.extract_strided_slice %406 {offsets = [0, 384], sizes = [8, 128], strides = [1, 1]} : vector<8x512xf32> to vector<8x128xf32>
    %422 = arith.negf %421 : vector<8x128xf32>
    %423 = math.exp %422 : vector<8x128xf32>
    %cst_74 = arith.constant 1.000000e+00 : f32
    %424 = vector.broadcast %cst_74 : f32 to vector<8x128xf32>
    %425 = arith.addf %424, %423 : vector<8x128xf32>
    %426 = arith.divf %424, %425 : vector<8x128xf32>
    %427 = arith.mulf %418, %368 : vector<8x128xf32>
    %428 = arith.mulf %412, %420 : vector<8x128xf32>
    %429 = arith.addf %427, %428 : vector<8x128xf32>
    %430 = math.tanh %429 : vector<8x128xf32>
    %431 = arith.mulf %426, %430 : vector<8x128xf32>
    %432 = vector.extract_strided_slice %9 {offsets = [56, 0], sizes = [8, 512], strides = [1, 1]} : vector<64x512xf32> to vector<8x512xf32>
    %433 = arith.truncf %399 : vector<8x128xf32> to vector<8x128xbf16>
    %cst_75 = arith.constant dense<0.000000e+00> : vector<8x512xf32>
    %434 = tpu.matmul %433, %0, %cst_75 {dimension_numbers = #tpu.dot_dimension_numbers<[1], [0], [0], [1], [0, 0, 1, 1], [], []>} : vector<8x128xbf16>, vector<128x512xbf16>, vector<8x512xf32> -> vector<8x512xf32>
    %435 = arith.addf %432, %434 : vector<8x512xf32>
    %436 = vector.extract_strided_slice %435 {offsets = [0, 0], sizes = [8, 128], strides = [1, 1]} : vector<8x512xf32> to vector<8x128xf32>
    %437 = arith.negf %436 : vector<8x128xf32>
    %438 = math.exp %437 : vector<8x128xf32>
    %cst_76 = arith.constant 1.000000e+00 : f32
    %439 = vector.broadcast %cst_76 : f32 to vector<8x128xf32>
    %440 = arith.addf %439, %438 : vector<8x128xf32>
    %441 = arith.divf %439, %440 : vector<8x128xf32>
    %442 = vector.extract_strided_slice %435 {offsets = [0, 128], sizes = [8, 128], strides = [1, 1]} : vector<8x512xf32> to vector<8x128xf32>
    %443 = arith.negf %442 : vector<8x128xf32>
    %444 = math.exp %443 : vector<8x128xf32>
    %cst_77 = arith.constant 1.000000e+00 : f32
    %445 = vector.broadcast %cst_77 : f32 to vector<8x128xf32>
    %446 = arith.addf %445, %444 : vector<8x128xf32>
    %447 = arith.divf %445, %446 : vector<8x128xf32>
    %448 = vector.extract_strided_slice %435 {offsets = [0, 256], sizes = [8, 128], strides = [1, 1]} : vector<8x512xf32> to vector<8x128xf32>
    %449 = math.tanh %448 : vector<8x128xf32>
    %450 = vector.extract_strided_slice %435 {offsets = [0, 384], sizes = [8, 128], strides = [1, 1]} : vector<8x512xf32> to vector<8x128xf32>
    %451 = arith.negf %450 : vector<8x128xf32>
    %452 = math.exp %451 : vector<8x128xf32>
    %cst_78 = arith.constant 1.000000e+00 : f32
    %453 = vector.broadcast %cst_78 : f32 to vector<8x128xf32>
    %454 = arith.addf %453, %452 : vector<8x128xf32>
    %455 = arith.divf %453, %454 : vector<8x128xf32>
    %456 = arith.mulf %447, %397 : vector<8x128xf32>
    %457 = arith.mulf %441, %449 : vector<8x128xf32>
    %458 = arith.addf %456, %457 : vector<8x128xf32>
    %459 = math.tanh %458 : vector<8x128xf32>
    %460 = arith.mulf %455, %459 : vector<8x128xf32>
    %461 = arith.truncf %460 : vector<8x128xf32> to vector<8x128xbf16>
    %cst_79 = arith.constant dense<0.000000e+00> : vector<8x512xf32>
    %462 = tpu.matmul %461, %1, %cst_79 {dimension_numbers = #tpu.dot_dimension_numbers<[1], [0], [0], [1], [0, 0, 1, 1], [], []>} : vector<8x128xbf16>, vector<128x512xbf16>, vector<8x512xf32> -> vector<8x512xf32>
    %463 = arith.truncf %431 : vector<8x128xf32> to vector<8x128xbf16>
    %cst_80 = arith.constant dense<0.000000e+00> : vector<8x512xf32>
    %464 = tpu.matmul %463, %2, %cst_80 {dimension_numbers = #tpu.dot_dimension_numbers<[1], [0], [0], [1], [0, 0, 1, 1], [], []>} : vector<8x128xbf16>, vector<128x512xbf16>, vector<8x512xf32> -> vector<8x512xf32>
    %465 = arith.addf %462, %464 : vector<8x512xf32>
    %466 = vector.broadcast %3 : vector<1x512xf32> to vector<8x512xf32>
    %467 = arith.addf %465, %466 : vector<8x512xf32>
    %468 = vector.extract_strided_slice %467 {offsets = [0, 0], sizes = [8, 128], strides = [1, 1]} : vector<8x512xf32> to vector<8x128xf32>
    %469 = arith.negf %468 : vector<8x128xf32>
    %470 = math.exp %469 : vector<8x128xf32>
    %cst_81 = arith.constant 1.000000e+00 : f32
    %471 = vector.broadcast %cst_81 : f32 to vector<8x128xf32>
    %472 = arith.addf %471, %470 : vector<8x128xf32>
    %473 = arith.divf %471, %472 : vector<8x128xf32>
    %474 = vector.extract_strided_slice %467 {offsets = [0, 128], sizes = [8, 128], strides = [1, 1]} : vector<8x512xf32> to vector<8x128xf32>
    %475 = arith.negf %474 : vector<8x128xf32>
    %476 = math.exp %475 : vector<8x128xf32>
    %cst_82 = arith.constant 1.000000e+00 : f32
    %477 = vector.broadcast %cst_82 : f32 to vector<8x128xf32>
    %478 = arith.addf %477, %476 : vector<8x128xf32>
    %479 = arith.divf %477, %478 : vector<8x128xf32>
    %480 = vector.extract_strided_slice %467 {offsets = [0, 256], sizes = [8, 128], strides = [1, 1]} : vector<8x512xf32> to vector<8x128xf32>
    %481 = math.tanh %480 : vector<8x128xf32>
    %482 = vector.extract_strided_slice %467 {offsets = [0, 384], sizes = [8, 128], strides = [1, 1]} : vector<8x512xf32> to vector<8x128xf32>
    %483 = arith.negf %482 : vector<8x128xf32>
    %484 = math.exp %483 : vector<8x128xf32>
    %cst_83 = arith.constant 1.000000e+00 : f32
    %485 = vector.broadcast %cst_83 : f32 to vector<8x128xf32>
    %486 = arith.addf %485, %484 : vector<8x128xf32>
    %487 = arith.divf %485, %486 : vector<8x128xf32>
    %488 = arith.mulf %479, %429 : vector<8x128xf32>
    %489 = arith.mulf %473, %481 : vector<8x128xf32>
    %490 = arith.addf %488, %489 : vector<8x128xf32>
    %491 = math.tanh %490 : vector<8x128xf32>
    %492 = arith.mulf %487, %491 : vector<8x128xf32>
    %493 = tpu.concatenate %65, %126, %187, %248, %309, %370, %431, %492 in 0 : vector<8x128xf32>, vector<8x128xf32>, vector<8x128xf32>, vector<8x128xf32>, vector<8x128xf32>, vector<8x128xf32>, vector<8x128xf32>, vector<8x128xf32> -> vector<64x128xf32>
    %c0_84 = arith.constant 0 : index
    %c0_85 = arith.constant 0 : index
    %494 = vector.load %arg7[%c0_84, %c0_85] : memref<128x128xf32, #tpu.memory_space<vmem>>, vector<128x128xf32>
    %cst_86 = arith.constant dense<0.000000e+00> : vector<64x128xf32>
    %495 = tpu.matmul %493, %494, %cst_86 {dimension_numbers = #tpu.dot_dimension_numbers<[1], [0], [0], [1], [0, 0, 1, 1], [], []>} : vector<64x128xf32>, vector<128x128xf32>, vector<64x128xf32> -> vector<64x128xf32>
    %c0_87 = arith.constant 0 : index
    %c0_88 = arith.constant 0 : index
    %496 = vector.load %arg8[%c0_87, %c0_88] : memref<1x128xf32, #tpu.memory_space<vmem>>, vector<1x128xf32>
    %497 = vector.broadcast %496 : vector<1x128xf32> to vector<64x128xf32>
    %498 = arith.addf %495, %497 : vector<64x128xf32>
    %c0_89 = arith.constant 0 : index
    %499 = memref.load %arg9[%c0_89] : memref<1xf32, #tpu.memory_space<smem>>
    %cst_90 = arith.constant 0.000000e+00 : f32
    %500 = vector.broadcast %cst_90 : f32 to vector<64x128xf32>
    %501 = arith.cmpf oge, %498, %500 : vector<64x128xf32>
    %502 = vector.broadcast %499 : f32 to vector<64x128xf32>
    %503 = arith.mulf %502, %498 : vector<64x128xf32>
    %504 = arith.select %501, %498, %503 : vector<64x128xi1>, vector<64x128xf32>
    %c0_91 = arith.constant 0 : index
    %c0_92 = arith.constant 0 : index
    %505 = vector.load %arg10[%c0_91, %c0_92] : memref<64x128xf32, #tpu.memory_space<vmem>>, vector<64x128xf32>
    tpu.vector_store %arg10[%c0_91, %c0_92], %504 {strides = array<i32>} : memref<64x128xf32, #tpu.memory_space<vmem>>, vector<64x128xf32>,
    return
  }
}

</mosaic_0001>

<llo_original>
// kernel: tpu_custom_call.1
$region0: #{tpu_custom_call.1}
  #allocation0 [shape = 'u32[]', space=smem, size = 0x4, offset = 0x4, fixed_abs, tag = 'smem constant byte address 0x4 - core index']
  #allocation1 [shape = 'u32[144,128]{1,0:T(1,128)}', space=vmem, size = 0x12000, scoped, tag = 'internal scratch']
  #allocation2 [shape = 'f32[1]{0:T(128)S(6)}', space=smem, size = 0x200, scoped, tag = 'scoped memory for tpu_custom_call.1']
  %s0 = inlined_call_operand.hbm [shape: f32[64,128], index: 0, kind: input, shape index: {}]
  %s1 = inlined_call_operand.hbm [shape: f32[128,512], index: 1, kind: input, shape index: {}]
  %s2 = inlined_call_operand.hbm [shape: bf16[128,512], index: 2, kind: input, shape index: {}]
  %s3 = inlined_call_operand.vmem [shape: f32[1,512], index: 3, kind: input, shape index: {}]
  %s4 = inlined_call_operand.hbm [shape: bf16[128,512], index: 4, kind: input, shape index: {}]
  %s5 = inlined_call_operand.hbm [shape: bf16[128,512], index: 5, kind: input, shape index: {}]
  %s6 = inlined_call_operand.vmem [shape: f32[1,512], index: 6, kind: input, shape index: {}]
  %s7 = inlined_call_operand.hbm [shape: f32[128,128], index: 7, kind: input, shape index: {}]
  %s8 = inlined_call_operand.vmem [shape: f32[1,128], index: 8, kind: input, shape index: {}]
  %s9 = inlined_call_operand.<no memory space> [shape: f32[1], index: 9, kind: input, shape index: {}]
  %s10 = inlined_call_operand.hbm [shape: f32[64,128], index: 10, kind: output, shape index: {}]
  %s11 = sld [smem:[#allocation0]]
  $region74: #{tpu_custom_call.1} parent=0
    _
  %s13 = ssub.s32 1, %s11
  %s14 = scalar_select 0, %s13, %s11
  %15 = sst [smem:[#allocation2]] %s9
  $region1: #{tpu_custom_call.1} parent=0
    #allocation3 [shape = 'u8[32768]{0}', space=vmem, size = 0x8000, scoped, tag = 'input window, operand 0, single buffered']
    #allocation4 [shape = 's32[1]{0}', space=sflag, size = 0x4, scoped, tag = 'scoped memory for tpu_custom_call.1']
    #allocation5 [shape = 's32[1]{0}', space=sflag, size = 0x4, scoped, tag = 'scoped memory for tpu_custom_call.1']
    #allocation6 [shape = 'u8[262144]{0}', space=vmem, size = 0x40000, scoped, tag = 'input window, operand 1, single buffered']
    #allocation7 [shape = 's32[1]{0}', space=sflag, size = 0x4, scoped, tag = 'scoped memory for tpu_custom_call.1']
    #allocation8 [shape = 'u8[131072]{0}', space=vmem, size = 0x20000, scoped, tag = 'input window, operand 2, single buffered']
    #allocation9 [shape = 'u8[131072]{0}', space=vmem, size = 0x20000, scoped, tag = 'input window, operand 4, single buffered']
    #allocation10 [shape = 's32[1]{0}', space=sflag, size = 0x4, scoped, tag = 'scoped memory for tpu_custom_call.1']
    #allocation11 [shape = 'u8[131072]{0}', space=vmem, size = 0x20000, scoped, tag = 'input window, operand 5, single buffered']
    #allocation12 [shape = 'u8[65536]{0}', space=vmem, size = 0x10000, scoped, tag = 'input window, operand 7, single buffered']
    #allocation13 [shape = 's32[1]{0}', space=sflag, size = 0x4, scoped, tag = 'scoped memory for tpu_custom_call.1']
    #allocation14 [shape = 'u8[32768]{0}', space=vmem, size = 0x8000, scoped, tag = 'output window, operand 0, single buffered']
    %16 = vsyncpa [#allocation4], 0
    %17 = vsyncpa [#allocation7], 0
    %18 = vsyncpa [#allocation10], 0
    %19 = vsyncpa [#allocation13], 0
    %20 = vsyncpa [#allocation5], 0
    // Predicated region
    $region2: #{tpu_custom_call.1} parent=1 // pred_check
      _
    $region3: #{tpu_custom_call.1} parent=1 // pred_check_branch
      %22 = sbr.rel (0) target = $region5
    $region4: #{tpu_custom_call.1} parent=1 // pred_region
      %s24 = ssub.s32 1024, 1024
      %25 = vsyncadd [#allocation4], %s24
      %s26 = sshll.u32 [#allocation3], 4
      %s27 = int_to_ptr.vmem [resolvable:$true] %s26
      %32 = dma.hbm_to_vmem [thread:$0]  %s0, 1024, %s27, [#allocation4], 128, 128, 8
    $region5: #{tpu_custom_call.1} parent=1 // pred_fallthru
      _
    // Predicated region
    $region6: #{tpu_custom_call.1} parent=1 // pred_check
      _
    $region7: #{tpu_custom_call.1} parent=1 // pred_check_branch
      %34 = sbr.rel (0) target = $region9
    $region8: #{tpu_custom_call.1} parent=1 // pred_region
      %s36 = ssub.s32 8192, 8192
      %37 = vsyncadd [#allocation7], %s36
      %s38 = sshll.u32 [#allocation6], 4
      %s39 = int_to_ptr.vmem [resolvable:$true] %s38
      %44 = dma.hbm_to_vmem [thread:$0]  %s1, 8192, %s39, [#allocation7], 512, 512, 32
    $region9: #{tpu_custom_call.1} parent=1 // pred_fallthru
      _
    // Predicated region
    $region10: #{tpu_custom_call.1} parent=1 // pred_check
      _
    $region11: #{tpu_custom_call.1} parent=1 // pred_check_branch
      %46 = sbr.rel (0) target = $region13
    $region12: #{tpu_custom_call.1} parent=1 // pred_region
      %s48 = ssub.s32 4096, 4096
      %49 = vsyncadd [#allocation7], %s48
      %s50 = sshll.u32 [#allocation8], 4
      %s51 = int_to_ptr.vmem [resolvable:$true] %s50
      %56 = dma.hbm_to_vmem [thread:$0]  %s2, 4096, %s51, [#allocation7], 256, 256, 16
    $region13: #{tpu_custom_call.1} parent=1 // pred_fallthru
      _
    // Predicated region
    $region14: #{tpu_custom_call.1} parent=1 // pred_check
      _
    $region15: #{tpu_custom_call.1} parent=1 // pred_check_branch
      %58 = sbr.rel (0) target = $region17
    $region16: #{tpu_custom_call.1} parent=1 // pred_region
      _
    $region17: #{tpu_custom_call.1} parent=1 // pred_fallthru
      _
    // Predicated region
    $region18: #{tpu_custom_call.1} parent=1 // pred_check
      _
    $region19: #{tpu_custom_call.1} parent=1 // pred_check_branch
      %60 = sbr.rel (0) target = $region21
    $region20: #{tpu_custom_call.1} parent=1 // pred_region
      %s62 = ssub.s32 4096, 4096
      %63 = vsyncadd [#allocation10], %s62
      %s64 = sshll.u32 [#allocation9], 4
      %s65 = int_to_ptr.vmem [resolvable:$true] %s64
      %70 = dma.hbm_to_vmem [thread:$0]  %s4, 4096, %s65, [#allocation10], 256, 256, 16
    $region21: #{tpu_custom_call.1} parent=1 // pred_fallthru
      _
    // Predicated region
    $region22: #{tpu_custom_call.1} parent=1 // pred_check
      _
    $region23: #{tpu_custom_call.1} parent=1 // pred_check_branch
      %72 = sbr.rel (0) target = $region25
    $region24: #{tpu_custom_call.1} parent=1 // pred_region
      %s74 = ssub.s32 4096, 4096
      %75 = vsyncadd [#allocation10], %s74
      %s76 = sshll.u32 [#allocation11], 4
      %s77 = int_to_ptr.vmem [resolvable:$true] %s76
      %82 = dma.hbm_to_vmem [thread:$0]  %s5, 4096, %s77, [#allocation10], 256, 256, 16
    $region25: #{tpu_custom_call.1} parent=1 // pred_fallthru
      _
    // Predicated region
    $region26: #{tpu_custom_call.1} parent=1 // pred_check
      _
    $region27: #{tpu_custom_call.1} parent=1 // pred_check_branch
      %84 = sbr.rel (0) target = $region29
    $region28: #{tpu_custom_call.1} parent=1 // pred_region
      _
    $region29: #{tpu_custom_call.1} parent=1 // pred_fallthru
      _
    // Predicated region
    $region30: #{tpu_custom_call.1} parent=1 // pred_check
      _
    $region31: #{tpu_custom_call.1} parent=1 // pred_check_branch
      %86 = sbr.rel (0) target = $region33
    $region32: #{tpu_custom_call.1} parent=1 // pred_region
      %s88 = ssub.s32 2048, 2048
      %89 = vsyncadd [#allocation13], %s88
      %s90 = sshll.u32 [#allocation12], 4
      %s91 = int_to_ptr.vmem [resolvable:$true] %s90
      %96 = dma.hbm_to_vmem [thread:$0]  %s7, 2048, %s91, [#allocation13], 128, 128, 8
    $region33: #{tpu_custom_call.1} parent=1 // pred_fallthru
      _
    // Predicated region
    $region34: #{tpu_custom_call.1} parent=1 // pred_check
      _
    $region35: #{tpu_custom_call.1} parent=1 // pred_check_branch
      %98 = sbr.rel (0) target = $region37
    $region36: #{tpu_custom_call.1} parent=1 // pred_region
      _
    $region37: #{tpu_custom_call.1} parent=1 // pred_fallthru
      _
    // Predicated region
    $region38: #{tpu_custom_call.1} parent=1 // pred_check
      _
    $region39: #{tpu_custom_call.1} parent=1 // pred_check_branch
      %100 = sbr.rel (0) target = $region41
    $region40: #{tpu_custom_call.1} parent=1 // pred_region
      _
    $region41: #{tpu_custom_call.1} parent=1 // pred_fallthru
      _
    // Predicated region
    $region42: #{tpu_custom_call.1} parent=1 // pred_check
      _
    $region43: #{tpu_custom_call.1} parent=1 // pred_check_branch
      %102 = sbr.rel (0) target = $region45
    $region44: #{tpu_custom_call.1} parent=1 // pred_region
      %103 = dma.done [#allocation4], 1024
    $region45: #{tpu_custom_call.1} parent=1 // pred_fallthru
      _
    // Predicated region
    $region46: #{tpu_custom_call.1} parent=1 // pred_check
      _
    $region47: #{tpu_custom_call.1} parent=1 // pred_check_branch
      %105 = sbr.rel (0) target = $region49
    $region48: #{tpu_custom_call.1} parent=1 // pred_region
      %106 = dma.done [#allocation7], 8192
    $region49: #{tpu_custom_call.1} parent=1 // pred_fallthru
      _
    // Predicated region
    $region50: #{tpu_custom_call.1} parent=1 // pred_check
      _
    $region51: #{tpu_custom_call.1} parent=1 // pred_check_branch
      %108 = sbr.rel (0) target = $region53
    $region52: #{tpu_custom_call.1} parent=1 // pred_region
      %109 = dma.done [#allocation7], 4096
    $region53: #{tpu_custom_call.1} parent=1 // pred_fallthru
      _
    // Predicated region
    $region54: #{tpu_custom_call.1} parent=1 // pred_check
      _
    $region55: #{tpu_custom_call.1} parent=1 // pred_check_branch
      %111 = sbr.rel (0) target = $region57
    $region56: #{tpu_custom_call.1} parent=1 // pred_region
      %112 = dma.done [#allocation10], 4096
    $region57: #{tpu_custom_call.1} parent=1 // pred_fallthru
      _
    // Predicated region
    $region58: #{tpu_custom_call.1} parent=1 // pred_check
      _
    $region59: #{tpu_custom_call.1} parent=1 // pred_check_branch
      %114 = sbr.rel (0) target = $region61
    $region60: #{tpu_custom_call.1} parent=1 // pred_region
      %115 = dma.done [#allocation10], 4096
    $region61: #{tpu_custom_call.1} parent=1 // pred_fallthru
      _
    // Predicated region
    $region62: #{tpu_custom_call.1} parent=1 // pred_check
      _
    $region63: #{tpu_custom_call.1} parent=1 // pred_check_branch
      %117 = sbr.rel (0) target = $region65
    $region64: #{tpu_custom_call.1} parent=1 // pred_region
      %118 = dma.done [#allocation13], 2048
    $region65: #{tpu_custom_call.1} parent=1 // pred_fallthru
      _
    %v120 = vld [vmem:[#allocation8] sm:$0xff]
    %v121 = vld [vmem:[#allocation8 + $0x8] sm:$0xff]
    %v122 = vld [vmem:[#allocation8 + $0x10] sm:$0xff]
    %v123 = vld [vmem:[#allocation8 + $0x18] sm:$0xff]
    %v124 = vld [vmem:[#allocation8 + $0x20] sm:$0xff]
    %v125 = vld [vmem:[#allocation8 + $0x28] sm:$0xff]
    %v126 = vld [vmem:[#allocation8 + $0x30] sm:$0xff]
    %v127 = vld [vmem:[#allocation8 + $0x38] sm:$0xff]
    %v128 = vld [vmem:[#allocation8 + $0x40] sm:$0xff]
    %v129 = vld [vmem:[#allocation8 + $0x48] sm:$0xff]
    %v130 = vld [vmem:[#allocation8 + $0x50] sm:$0xff]
    %v131 = vld [vmem:[#allocation8 + $0x58] sm:$0xff]
    %v132 = vld [vmem:[#allocation8 + $0x60] sm:$0xff]
    %v133 = vld [vmem:[#allocation8 + $0x68] sm:$0xff]
    %v134 = vld [vmem:[#allocation8 + $0x70] sm:$0xff]
    %v135 = vld [vmem:[#allocation8 + $0x78] sm:$0xff]
    %v136 = vld [vmem:[#allocation8 + $0x80] sm:$0xff]
    %v137 = vld [vmem:[#allocation8 + $0x88] sm:$0xff]
    %v138 = vld [vmem:[#allocation8 + $0x90] sm:$0xff]
    %v139 = vld [vmem:[#allocation8 + $0x98] sm:$0xff]
    %v140 = vld [vmem:[#allocation8 + $0xa0] sm:$0xff]
    %v141 = vld [vmem:[#allocation8 + $0xa8] sm:$0xff]
    %v142 = vld [vmem:[#allocation8 + $0xb0] sm:$0xff]
    %v143 = vld [vmem:[#allocation8 + $0xb8] sm:$0xff]
    %v144 = vld [vmem:[#allocation8 + $0xc0] sm:$0xff]
    %v145 = vld [vmem:[#allocation8 + $0xc8] sm:$0xff]
    %v146 = vld [vmem:[#allocation8 + $0xd0] sm:$0xff]
    %v147 = vld [vmem:[#allocation8 + $0xd8] sm:$0xff]
    %v148 = vld [vmem:[#allocation8 + $0xe0] sm:$0xff]
    %v149 = vld [vmem:[#allocation8 + $0xe8] sm:$0xff]
    %v150 = vld [vmem:[#allocation8 + $0xf0] sm:$0xff]
    %v151 = vld [vmem:[#allocation8 + $0xf8] sm:$0xff]
    %v152 = vld [vmem:[#allocation9] sm:$0xff]
    %v153 = vld [vmem:[#allocation9 + $0x8] sm:$0xff]
    %v154 = vld [vmem:[#allocation9 + $0x10] sm:$0xff]
    %v155 = vld [vmem:[#allocation9 + $0x18] sm:$0xff]
    %v156 = vld [vmem:[#allocation9 + $0x20] sm:$0xff]
    %v157 = vld [vmem:[#allocation9 + $0x28] sm:$0xff]
    %v158 = vld [vmem:[#allocation9 + $0x30] sm:$0xff]
    %v159 = vld [vmem:[#allocation9 + $0x38] sm:$0xff]
    %v160 = vld [vmem:[#allocation9 + $0x40] sm:$0xff]
    %v161 = vld [vmem:[#allocation9 + $0x48] sm:$0xff]
    %v162 = vld [vmem:[#allocation9 + $0x50] sm:$0xff]
    %v163 = vld [vmem:[#allocation9 + $0x58] sm:$0xff]
    %v164 = vld [vmem:[#allocation9 + $0x60] sm:$0xff]
    %v165 = vld [vmem:[#allocation9 + $0x68] sm:$0xff]
    %v166 = vld [vmem:[#allocation9 + $0x70] sm:$0xff]
    %v167 = vld [vmem:[#allocation9 + $0x78] sm:$0xff]
    %v168 = vld [vmem:[#allocation9 + $0x80] sm:$0xff]
    %v169 = vld [vmem:[#allocation9 + $0x88] sm:$0xff]
    %v170 = vld [vmem:[#allocation9 + $0x90] sm:$0xff]
    %v171 = vld [vmem:[#allocation9 + $0x98] sm:$0xff]
    %v172 = vld [vmem:[#allocation9 + $0xa0] sm:$0xff]
    %v173 = vld [vmem:[#allocation9 + $0xa8] sm:$0xff]
    %v174 = vld [vmem:[#allocation9 + $0xb0] sm:$0xff]
    %v175 = vld [vmem:[#allocation9 + $0xb8] sm:$0xff]
    %v176 = vld [vmem:[#allocation9 + $0xc0] sm:$0xff]
    %v177 = vld [vmem:[#allocation9 + $0xc8] sm:$0xff]
    %v178 = vld [vmem:[#allocation9 + $0xd0] sm:$0xff]
    %v179 = vld [vmem:[#allocation9 + $0xd8] sm:$0xff]
    %v180 = vld [vmem:[#allocation9 + $0xe0] sm:$0xff]
    %v181 = vld [vmem:[#allocation9 + $0xe8] sm:$0xff]
    %v182 = vld [vmem:[#allocation9 + $0xf0] sm:$0xff]
    %v183 = vld [vmem:[#allocation9 + $0xf8] sm:$0xff]
    %v184 = vld [vmem:[#allocation11] sm:$0xff]
    %v185 = vld [vmem:[#allocation11 + $0x8] sm:$0xff]
    %v186 = vld [vmem:[#allocation11 + $0x10] sm:$0xff]
    %v187 = vld [vmem:[#allocation11 + $0x18] sm:$0xff]
    %v188 = vld [vmem:[#allocation11 + $0x20] sm:$0xff]
    %v189 = vld [vmem:[#allocation11 + $0x28] sm:$0xff]
    %v190 = vld [vmem:[#allocation11 + $0x30] sm:$0xff]
    %v191 = vld [vmem:[#allocation11 + $0x38] sm:$0xff]
    %v192 = vld [vmem:[#allocation11 + $0x40] sm:$0xff]
    %v193 = vld [vmem:[#allocation11 + $0x48] sm:$0xff]
    %v194 = vld [vmem:[#allocation11 + $0x50] sm:$0xff]
    %v195 = vld [vmem:[#allocation11 + $0x58] sm:$0xff]
    %v196 = vld [vmem:[#allocation11 + $0x60] sm:$0xff]
    %v197 = vld [vmem:[#allocation11 + $0x68] sm:$0xff]
    %v198 = vld [vmem:[#allocation11 + $0x70] sm:$0xff]
    %v199 = vld [vmem:[#allocation11 + $0x78] sm:$0xff]
    %v200 = vld [vmem:[#allocation11 + $0x80] sm:$0xff]
    %v201 = vld [vmem:[#allocation11 + $0x88] sm:$0xff]
    %v202 = vld [vmem:[#allocation11 + $0x90] sm:$0xff]
    %v203 = vld [vmem:[#allocation11 + $0x98] sm:$0xff]
    %v204 = vld [vmem:[#allocation11 + $0xa0] sm:$0xff]
    %v205 = vld [vmem:[#allocation11 + $0xa8] sm:$0xff]
    %v206 = vld [vmem:[#allocation11 + $0xb0] sm:$0xff]
    %v207 = vld [vmem:[#allocation11 + $0xb8] sm:$0xff]
    %v208 = vld [vmem:[#allocation11 + $0xc0] sm:$0xff]
    %v209 = vld [vmem:[#allocation11 + $0xc8] sm:$0xff]
    %v210 = vld [vmem:[#allocation11 + $0xd0] sm:$0xff]
    %v211 = vld [vmem:[#allocation11 + $0xd8] sm:$0xff]
    %v212 = vld [vmem:[#allocation11 + $0xe0] sm:$0xff]
    %v213 = vld [vmem:[#allocation11 + $0xe8] sm:$0xff]
    %v214 = vld [vmem:[#allocation11 + $0xf0] sm:$0xff]
    %v215 = vld [vmem:[#allocation11 + $0xf8] sm:$0xff]
    %v216 = vld [vmem:[%s6] sm:$0xf]
    %v217 = vld [vmem:[#allocation3] sm:$0xff]
    %v218 = vld [vmem:[#allocation3 + $0x8] sm:$0xff]
    %v219 = vld [vmem:[#allocation3 + $0x10] sm:$0xff]
    %v220 = vld [vmem:[#allocation3 + $0x18] sm:$0xff]
    %v221 = vld [vmem:[#allocation3 + $0x20] sm:$0xff]
    %v222 = vld [vmem:[#allocation3 + $0x28] sm:$0xff]
    %v223 = vld [vmem:[#allocation3 + $0x30] sm:$0xff]
    %v224 = vld [vmem:[#allocation3 + $0x38] sm:$0xff]
    %v225 = vld [vmem:[#allocation6] sm:$0xff]
    %v226 = vld [vmem:[#allocation6 + $0x8] sm:$0xff]
    %v227 = vld [vmem:[#allocation6 + $0x10] sm:$0xff]
    %v228 = vld [vmem:[#allocation6 + $0x18] sm:$0xff]
    %v229 = vld [vmem:[#allocation6 + $0x20] sm:$0xff]
    %v230 = vld [vmem:[#allocation6 + $0x28] sm:$0xff]
    %v231 = vld [vmem:[#allocation6 + $0x30] sm:$0xff]
    %v232 = vld [vmem:[#allocation6 + $0x38] sm:$0xff]
    %v233 = vld [vmem:[#allocation6 + $0x40] sm:$0xff]
    %v234 = vld [vmem:[#allocation6 + $0x48] sm:$0xff]
    %v235 = vld [vmem:[#allocation6 + $0x50] sm:$0xff]
    %v236 = vld [vmem:[#allocation6 + $0x58] sm:$0xff]
    %v237 = vld [vmem:[#allocation6 + $0x60] sm:$0xff]
    %v238 = vld [vmem:[#allocation6 + $0x68] sm:$0xff]
    %v239 = vld [vmem:[#allocation6 + $0x70] sm:$0xff]
    %v240 = vld [vmem:[#allocation6 + $0x78] sm:$0xff]
    %v241 = vld [vmem:[#allocation6 + $0x80] sm:$0xff]
    %v242 = vld [vmem:[#allocation6 + $0x88] sm:$0xff]
    %v243 = vld [vmem:[#allocation6 + $0x90] sm:$0xff]
    %v244 = vld [vmem:[#allocation6 + $0x98] sm:$0xff]
    %v245 = vld [vmem:[#allocation6 + $0xa0] sm:$0xff]
    %v246 = vld [vmem:[#allocation6 + $0xa8] sm:$0xff]
    %v247 = vld [vmem:[#allocation6 + $0xb0] sm:$0xff]
    %v248 = vld [vmem:[#allocation6 + $0xb8] sm:$0xff]
    %v249 = vld [vmem:[#allocation6 + $0xc0] sm:$0xff]
    %v250 = vld [vmem:[#allocation6 + $0xc8] sm:$0xff]
    %v251 = vld [vmem:[#allocation6 + $0xd0] sm:$0xff]
    %v252 = vld [vmem:[#allocation6 + $0xd8] sm:$0xff]
    %v253 = vld [vmem:[#allocation6 + $0xe0] sm:$0xff]
    %v254 = vld [vmem:[#allocation6 + $0xe8] sm:$0xff]
    %v255 = vld [vmem:[#allocation6 + $0xf0] sm:$0xff]
    %v256 = vld [vmem:[#allocation6 + $0xf8] sm:$0xff]
    %v257 = vld [vmem:[#allocation6 + $0x100] sm:$0xff]
    %v258 = vld [vmem:[#allocation6 + $0x108] sm:$0xff]
    %v259 = vld [vmem:[#allocation6 + $0x110] sm:$0xff]
    %v260 = vld [vmem:[#allocation6 + $0x118] sm:$0xff]
    %v261 = vld [vmem:[#allocation6 + $0x120] sm:$0xff]
    %v262 = vld [vmem:[#allocation6 + $0x128] sm:$0xff]
    %v263 = vld [vmem:[#allocation6 + $0x130] sm:$0xff]
    %v264 = vld [vmem:[#allocation6 + $0x138] sm:$0xff]
    %v265 = vld [vmem:[#allocation6 + $0x140] sm:$0xff]
    %v266 = vld [vmem:[#allocation6 + $0x148] sm:$0xff]
    %v267 = vld [vmem:[#allocation6 + $0x150] sm:$0xff]
    %v268 = vld [vmem:[#allocation6 + $0x158] sm:$0xff]
    %v269 = vld [vmem:[#allocation6 + $0x160] sm:$0xff]
    %v270 = vld [vmem:[#allocation6 + $0x168] sm:$0xff]
    %v271 = vld [vmem:[#allocation6 + $0x170] sm:$0xff]
    %v272 = vld [vmem:[#allocation6 + $0x178] sm:$0xff]
    %v273 = vld [vmem:[#allocation6 + $0x180] sm:$0xff]
    %v274 = vld [vmem:[#allocation6 + $0x188] sm:$0xff]
    %v275 = vld [vmem:[#allocation6 + $0x190] sm:$0xff]
    %v276 = vld [vmem:[#allocation6 + $0x198] sm:$0xff]
    %v277 = vld [vmem:[#allocation6 + $0x1a0] sm:$0xff]
    %v278 = vld [vmem:[#allocation6 + $0x1a8] sm:$0xff]
    %v279 = vld [vmem:[#allocation6 + $0x1b0] sm:$0xff]
    %v280 = vld [vmem:[#allocation6 + $0x1b8] sm:$0xff]
    %v281 = vld [vmem:[#allocation6 + $0x1c0] sm:$0xff]
    %v282 = vld [vmem:[#allocation6 + $0x1c8] sm:$0xff]
    %v283 = vld [vmem:[#allocation6 + $0x1d0] sm:$0xff]
    %v284 = vld [vmem:[#allocation6 + $0x1d8] sm:$0xff]
    %v285 = vld [vmem:[#allocation6 + $0x1e0] sm:$0xff]
    %v286 = vld [vmem:[#allocation6 + $0x1e8] sm:$0xff]
    %v287 = vld [vmem:[#allocation6 + $0x1f0] sm:$0xff]
    %v288 = vld [vmem:[#allocation6 + $0x1f8] sm:$0xff]
    %v289 = vld [vmem:[%s3] sm:$0xf]
    %v291 = vlaneseq
    %v292 = vshrl.u32 %v291, 7
    %v293 = vsub.s32 0, %v292
    %v294 = vrot.slane %v289, %v293
    %v295 = vlaneseq
    %v296 = vshrl.u32 %v295, 7
    %v297 = vsub.s32 1, %v296
    %v298 = vrot.slane %v289, %v297
    %v299 = vlaneseq
    %v300 = vshrl.u32 %v299, 7
    %v301 = vsub.s32 2, %v300
    %v302 = vrot.slane %v289, %v301
    %v303 = vlaneseq
    %v304 = vshrl.u32 %v303, 7
    %v305 = vsub.s32 3, %v304
    %v306 = vrot.slane %v289, %v305
    %311 = vmatprep.subr.mxu0 %v226
    %312 = vmatpush1.msra.mxu0 %v225
    %313 = vmatprep.subr.mxu0 %v230
    %314 = vmatpush1.msra.mxu0 %v229
    %315 = vmatprep.subr.mxu0 %v234
    %316 = vmatpush1.msra.mxu0 %v233
    %317 = vmatprep.subr.mxu0 %v238
    %318 = vmatpush1.msra.mxu0 %v237
    %319 = vmatprep.subr.mxu0 %v242
    %320 = vmatpush1.msra.mxu0 %v241
    %321 = vmatprep.subr.mxu0 %v246
    %322 = vmatpush1.msra.mxu0 %v245
    %323 = vmatprep.subr.mxu0 %v250
    %324 = vmatpush1.msra.mxu0 %v249
    %325 = vmatprep.subr.mxu0 %v254
    %326 = vmatpush1.msra.mxu0 %v253
    %327 = vmatprep.subr.mxu0 %v258
    %328 = vmatpush1.msra.mxu0 %v257
    %329 = vmatprep.subr.mxu0 %v262
    %330 = vmatpush1.msra.mxu0 %v261
    %331 = vmatprep.subr.mxu0 %v266
    %332 = vmatpush1.msra.mxu0 %v265
    %333 = vmatprep.subr.mxu0 %v270
    %334 = vmatpush1.msra.mxu0 %v269
    %335 = vmatprep.subr.mxu0 %v274
    %336 = vmatpush1.msra.mxu0 %v273
    %337 = vmatprep.subr.mxu0 %v278
    %338 = vmatpush1.msra.mxu0 %v277
    %339 = vmatprep.subr.mxu0 %v282
    %340 = vmatpush1.msra.mxu0 %v281
    %341 = vmatprep.subr.mxu0 %v286
    %342 = vmatpush1.msra.mxu0 %v285
    %343 = vmatprep.subr.mxu0 0.0
    %344 = vmatpush1.msra.mxu0 0.0
    %345 = vmatprep.subr.mxu0 0.0
    %346 = vmatpush1.msra.mxu0 0.0
    %347 = vmatprep.subr.mxu0 0.0
    %348 = vmatpush1.msra.mxu0 0.0
    %349 = vmatprep.subr.mxu0 0.0
    %350 = vmatpush1.msra.mxu0 0.0
    %351 = vmatprep.subr.mxu0 0.0
    %352 = vmatpush1.msra.mxu0 0.0
    %353 = vmatprep.subr.mxu0 0.0
    %354 = vmatpush1.msra.mxu0 0.0
    %355 = vmatprep.subr.mxu0 0.0
    %356 = vmatpush1.msra.mxu0 0.0
    %357 = vmatprep.subr.mxu0 0.0
    %358 = vmatpush1.msra.mxu0 0.0
    %359 = vmatprep.subr.mxu0 0.0
    %360 = vmatpush1.msra.mxu0 0.0
    %361 = vmatprep.subr.mxu0 0.0
    %362 = vmatpush1.msra.mxu0 0.0
    %363 = vmatprep.subr.mxu0 0.0
    %364 = vmatpush1.msra.mxu0 0.0
    %365 = vmatprep.subr.mxu0 0.0
    %366 = vmatpush1.msra.mxu0 0.0
    %367 = vmatprep.subr.mxu0 0.0
    %368 = vmatpush1.msra.mxu0 0.0
    %369 = vmatprep.subr.mxu0 0.0
    %370 = vmatpush1.msra.mxu0 0.0
    %371 = vmatprep.subr.mxu0 0.0
    %372 = vmatpush1.msra.mxu0 0.0
    %373 = vmatprep.subr.mxu0 0.0
    %374 = vmatpush1.msra.mxu0 0.0
    %375 = vmatprep.mubr.f32.mxu0 0.0
    %376 = vmatmul.mubr.f32.gmra.mrb[0].mxu0 %v217
    %v377 = vpop.f32.mrb[0].mxu0
    %v378 = vadd.f32 %v294, %v377
    %v379 = vpop.f32.mrb[0].mxu0
    %v380 = vadd.f32 %v298, %v379
    %381 = vmatprep.mubr.f32.mxu0 0.0
    %382 = vmatmul.mubr.f32.gmra.mrb[0].mxu0 %v218
    %v383 = vpop.f32.mrb[0].mxu0
    %v384 = vadd.f32 %v294, %v383
    %v385 = vpop.f32.mrb[0].mxu0
    %v386 = vadd.f32 %v298, %v385
    %387 = vmatprep.mubr.f32.mxu0 0.0
    %388 = vmatmul.mubr.f32.gmra.mrb[0].mxu0 %v219
    %v389 = vpop.f32.mrb[0].mxu0
    %v390 = vadd.f32 %v294, %v389
    %v391 = vpop.f32.mrb[0].mxu0
    %v392 = vadd.f32 %v298, %v391
    %393 = vmatprep.mubr.f32.mxu0 0.0
    %394 = vmatmul.mubr.f32.gmra.mrb[0].mxu0 %v220
    %v395 = vpop.f32.mrb[0].mxu0
    %v396 = vadd.f32 %v294, %v395
    %v397 = vpop.f32.mrb[0].mxu0
    %v398 = vadd.f32 %v298, %v397
    %399 = vmatprep.mubr.f32.mxu0 0.0
    %400 = vmatmul.mubr.f32.gmra.mrb[0].mxu0 %v221
    %v401 = vpop.f32.mrb[0].mxu0
    %v402 = vadd.f32 %v294, %v401
    %v403 = vpop.f32.mrb[0].mxu0
    %v404 = vadd.f32 %v298, %v403
    %405 = vmatprep.mubr.f32.mxu0 0.0
    %406 = vmatmul.mubr.f32.gmra.mrb[0].mxu0 %v222
    %v407 = vpop.f32.mrb[0].mxu0
    %v408 = vadd.f32 %v294, %v407
    %v409 = vpop.f32.mrb[0].mxu0
    %v410 = vadd.f32 %v298, %v409
    %411 = vmatprep.mubr.f32.mxu0 0.0
    %412 = vmatmul.mubr.f32.gmra.mrb[0].mxu0 %v223
    %v413 = vpop.f32.mrb[0].mxu0
    %v414 = vadd.f32 %v294, %v413
    %v415 = vpop.f32.mrb[0].mxu0
    %v416 = vadd.f32 %v298, %v415
    %417 = vmatprep.mubr.f32.mxu0 0.0
    %418 = vmatmul.mubr.f32.gmra.mrb[0].mxu0 %v224
    %v419 = vpop.f32.mrb[0].mxu0
    %v420 = vadd.f32 %v294, %v419
    %v421 = vpop.f32.mrb[0].mxu0
    %v422 = vadd.f32 %v298, %v421
    %423 = vdwg.mxu0
    %424 = vmatprep.subr.mxu0 %v228
    %425 = vmatpush1.msra.mxu0 %v227
    %426 = vmatprep.subr.mxu0 %v232
    %427 = vmatpush1.msra.mxu0 %v231
    %428 = vmatprep.subr.mxu0 %v236
    %429 = vmatpush1.msra.mxu0 %v235
    %430 = vmatprep.subr.mxu0 %v240
    %431 = vmatpush1.msra.mxu0 %v239
    %432 = vmatprep.subr.mxu0 %v244
    %433 = vmatpush1.msra.mxu0 %v243
    %434 = vmatprep.subr.mxu0 %v248
    %435 = vmatpush1.msra.mxu0 %v247
    %436 = vmatprep.subr.mxu0 %v252
    %437 = vmatpush1.msra.mxu0 %v251
    %438 = vmatprep.subr.mxu0 %v256
    %439 = vmatpush1.msra.mxu0 %v255
    %440 = vmatprep.subr.mxu0 %v260
    %441 = vmatpush1.msra.mxu0 %v259
    %442 = vmatprep.subr.mxu0 %v264
    %443 = vmatpush1.msra.mxu0 %v263
    %444 = vmatprep.subr.mxu0 %v268
    %445 = vmatpush1.msra.mxu0 %v267
    %446 = vmatprep.subr.mxu0 %v272
    %447 = vmatpush1.msra.mxu0 %v271
    %448 = vmatprep.subr.mxu0 %v276
    %449 = vmatpush1.msra.mxu0 %v275
    %450 = vmatprep.subr.mxu0 %v280
    %451 = vmatpush1.msra.mxu0 %v279
    %452 = vmatprep.subr.mxu0 %v284
    %453 = vmatpush1.msra.mxu0 %v283
    %454 = vmatprep.subr.mxu0 %v288
    %455 = vmatpush1.msra.mxu0 %v287
    %456 = vmatprep.subr.mxu0 0.0
    %457 = vmatpush1.msra.mxu0 0.0
    %458 = vmatprep.subr.mxu0 0.0
    %459 = vmatpush1.msra.mxu0 0.0
    %460 = vmatprep.subr.mxu0 0.0
    %461 = vmatpush1.msra.mxu0 0.0
    %462 = vmatprep.subr.mxu0 0.0
    %463 = vmatpush1.msra.mxu0 0.0
    %464 = vmatprep.subr.mxu0 0.0
    %465 = vmatpush1.msra.mxu0 0.0
    %466 = vmatprep.subr.mxu0 0.0
    %467 = vmatpush1.msra.mxu0 0.0
    %468 = vmatprep.subr.mxu0 0.0
    %469 = vmatpush1.msra.mxu0 0.0
    %470 = vmatprep.subr.mxu0 0.0
    %471 = vmatpush1.msra.mxu0 0.0
    %472 = vmatprep.subr.mxu0 0.0
    %473 = vmatpush1.msra.mxu0 0.0
    %474 = vmatprep.subr.mxu0 0.0
    %475 = vmatpush1.msra.mxu0 0.0
    %476 = vmatprep.subr.mxu0 0.0
    %477 = vmatpush1.msra.mxu0 0.0
    %478 = vmatprep.subr.mxu0 0.0
    %479 = vmatpush1.msra.mxu0 0.0
    %480 = vmatprep.subr.mxu0 0.0
    %481 = vmatpush1.msra.mxu0 0.0
    %482 = vmatprep.subr.mxu0 0.0
    %483 = vmatpush1.msra.mxu0 0.0
    %484 = vmatprep.subr.mxu0 0.0
    %485 = vmatpush1.msra.mxu0 0.0
    %486 = vmatprep.subr.mxu0 0.0
    %487 = vmatpush1.msra.mxu0 0.0
    %488 = vmatprep.mubr.f32.mxu0 0.0
    %489 = vmatmul.mubr.f32.gmra.mrb[0].mxu0 %v217
    %v490 = vpop.f32.mrb[0].mxu0
    %v491 = vadd.f32 %v302, %v490
    %v492 = vpop.f32.mrb[0].mxu0
    %v493 = vadd.f32 %v306, %v492
    %494 = vmatprep.mubr.f32.mxu0 0.0
    %495 = vmatmul.mubr.f32.gmra.mrb[0].mxu0 %v218
    %v496 = vpop.f32.mrb[0].mxu0
    %v497 = vadd.f32 %v302, %v496
    %v498 = vpop.f32.mrb[0].mxu0
    %v499 = vadd.f32 %v306, %v498
    %500 = vmatprep.mubr.f32.mxu0 0.0
    %501 = vmatmul.mubr.f32.gmra.mrb[0].mxu0 %v219
    %v502 = vpop.f32.mrb[0].mxu0
    %v503 = vadd.f32 %v302, %v502
    %v504 = vpop.f32.mrb[0].mxu0
    %v505 = vadd.f32 %v306, %v504
    %506 = vmatprep.mubr.f32.mxu0 0.0
    %507 = vmatmul.mubr.f32.gmra.mrb[0].mxu0 %v220
    %v508 = vpop.f32.mrb[0].mxu0
    %v509 = vadd.f32 %v302, %v508
    %v510 = vpop.f32.mrb[0].mxu0
    %v511 = vadd.f32 %v306, %v510
    %512 = vmatprep.mubr.f32.mxu0 0.0
    %513 = vmatmul.mubr.f32.gmra.mrb[0].mxu0 %v221
    %v514 = vpop.f32.mrb[0].mxu0
    %v515 = vadd.f32 %v302, %v514
    %v516 = vpop.f32.mrb[0].mxu0
    %v517 = vadd.f32 %v306, %v516
    %518 = vmatprep.mubr.f32.mxu0 0.0
    %519 = vmatmul.mubr.f32.gmra.mrb[0].mxu0 %v222
    %v520 = vpop.f32.mrb[0].mxu0
    %v521 = vadd.f32 %v302, %v520
    %v522 = vpop.f32.mrb[0].mxu0
    %v523 = vadd.f32 %v306, %v522
    %524 = vmatprep.mubr.f32.mxu0 0.0
    %525 = vmatmul.mubr.f32.gmra.mrb[0].mxu0 %v223
    %v526 = vpop.f32.mrb[0].mxu0
    %v527 = vadd.f32 %v302, %v526
    %v528 = vpop.f32.mrb[0].mxu0
    %v529 = vadd.f32 %v306, %v528
    %530 = vmatprep.mubr.f32.mxu0 0.0
    %531 = vmatmul.mubr.f32.gmra.mrb[0].mxu0 %v224
    %v532 = vpop.f32.mrb[0].mxu0
    %v533 = vadd.f32 %v302, %v532
    %v534 = vpop.f32.mrb[0].mxu0
    %v535 = vadd.f32 %v306, %v534
    %536 = vdwg.mxu0
    %v537 = vxor.u32 %v378, 2147483648
    %v538 = vmul.f32 %v537, 1.442695
    %v539 = vpow.pop %v538
    %v540 = vadd.f32 %v539, 1.0
    %v541 = vrcp.pop %v540
    %v542 = vmul.f32 1.0, %v541
    %v543 = vxor.u32 %v380, 2147483648
    %v544 = vmul.f32 %v543, 1.442695
    %v545 = vpow.pop %v544
    %v546 = vadd.f32 %v545, 1.0
    %v547 = vrcp.pop %v546
    %v548 = vmul.f32 1.0, %v547
    %v549 = vtanh.pop %v491
    %v550 = vxor.u32 %v493, 2147483648
    %v551 = vmul.f32 %v550, 1.442695
    %v552 = vpow.pop %v551
    %v553 = vadd.f32 %v552, 1.0
    %v554 = vrcp.pop %v553
    %v555 = vmul.f32 1.0, %v554
    %v556 = vmul.f32 %v548, 0.0
    %v557 = vmul.f32 %v542, %v549
    %v558 = vadd.f32 %v556, %v557
    %v559 = vtanh.pop %v558
    %v560 = vmul.f32 %v555, %v559
    %v561 = vpack.c.bf16 %v560, %v560
    %v563 = vlaneseq
    %v564 = vshrl.u32 %v563, 7
    %v565 = vsub.s32 0, %v564
    %v566 = vrot.slane %v216, %v565
    %v567 = vlaneseq
    %v568 = vshrl.u32 %v567, 7
    %v569 = vsub.s32 1, %v568
    %v570 = vrot.slane %v216, %v569
    %v571 = vlaneseq
    %v572 = vshrl.u32 %v571, 7
    %v573 = vsub.s32 2, %v572
    %v574 = vrot.slane %v216, %v573
    %v575 = vlaneseq
    %v576 = vshrl.u32 %v575, 7
    %v577 = vsub.s32 3, %v576
    %v578 = vrot.slane %v216, %v577
    %v615 = vunpack.c.l.b16 %v152
    %v616 = vunpack.c.h.b16 %v152
    %v617 = vunpack.c.l.b16 %v153
    %v618 = vunpack.c.h.b16 %v153
    %v619 = vunpack.c.l.b16 %v154
    %v620 = vunpack.c.h.b16 %v154
    %v621 = vunpack.c.l.b16 %v155
    %v622 = vunpack.c.h.b16 %v155
    %v623 = vunpack.c.l.b16 %v156
    %v624 = vunpack.c.h.b16 %v156
    %v625 = vunpack.c.l.b16 %v157
    %v626 = vunpack.c.h.b16 %v157
    %v627 = vunpack.c.l.b16 %v158
    %v628 = vunpack.c.h.b16 %v158
    %v629 = vunpack.c.l.b16 %v159
    %v630 = vunpack.c.h.b16 %v159
    %v631 = vunpack.c.l.b16 %v160
    %v632 = vunpack.c.h.b16 %v160
    %v633 = vunpack.c.l.b16 %v161
    %v634 = vunpack.c.h.b16 %v161
    %v635 = vunpack.c.l.b16 %v162
    %v636 = vunpack.c.h.b16 %v162
    %v637 = vunpack.c.l.b16 %v163
    %v638 = vunpack.c.h.b16 %v163
    %v639 = vunpack.c.l.b16 %v164
    %v640 = vunpack.c.h.b16 %v164
    %v641 = vunpack.c.l.b16 %v165
    %v642 = vunpack.c.h.b16 %v165
    %v643 = vunpack.c.l.b16 %v166
    %v644 = vunpack.c.h.b16 %v166
    %v645 = vunpack.c.l.b16 %v167
    %v646 = vunpack.c.h.b16 %v167
    %v647 = vunpack.c.l.b16 %v168
    %v648 = vunpack.c.h.b16 %v168
    %v649 = vunpack.c.l.b16 %v169
    %v650 = vunpack.c.h.b16 %v169
    %v651 = vunpack.c.l.b16 %v170
    %v652 = vunpack.c.h.b16 %v170
    %v653 = vunpack.c.l.b16 %v171
    %v654 = vunpack.c.h.b16 %v171
    %v655 = vunpack.c.l.b16 %v172
    %v656 = vunpack.c.h.b16 %v172
    %v657 = vunpack.c.l.b16 %v173
    %v658 = vunpack.c.h.b16 %v173
    %v659 = vunpack.c.l.b16 %v174
    %v660 = vunpack.c.h.b16 %v174
    %v661 = vunpack.c.l.b16 %v175
    %v662 = vunpack.c.h.b16 %v175
    %v663 = vunpack.c.l.b16 %v176
    %v664 = vunpack.c.h.b16 %v176
    %v665 = vunpack.c.l.b16 %v177
    %v666 = vunpack.c.h.b16 %v177
    %v667 = vunpack.c.l.b16 %v178
    %v668 = vunpack.c.h.b16 %v178
    %v669 = vunpack.c.l.b16 %v179
    %v670 = vunpack.c.h.b16 %v179
    %v671 = vunpack.c.l.b16 %v180
    %v672 = vunpack.c.h.b16 %v180
    %v673 = vunpack.c.l.b16 %v181
    %v674 = vunpack.c.h.b16 %v181
    %v675 = vunpack.c.l.b16 %v182
    %v676 = vunpack.c.h.b16 %v182
    %v677 = vunpack.c.l.b16 %v183
    %v678 = vunpack.c.h.b16 %v183
    %v679 = vpack.c.b16 %v619, %v615
    %v680 = vpack.c.b16 %v620, %v616
    %v681 = vpack.c.b16 %v621, %v617
    %v682 = vpack.c.b16 %v622, %v618
    %v683 = vpack.c.b16 %v627, %v623
    %v684 = vpack.c.b16 %v628, %v624
    %v685 = vpack.c.b16 %v629, %v625
    %v686 = vpack.c.b16 %v630, %v626
    %v687 = vpack.c.b16 %v635, %v631
    %v688 = vpack.c.b16 %v636, %v632
    %v689 = vpack.c.b16 %v637, %v633
    %v690 = vpack.c.b16 %v638, %v634
    %v691 = vpack.c.b16 %v643, %v639
    %v692 = vpack.c.b16 %v644, %v640
    %v693 = vpack.c.b16 %v645, %v641
    %v694 = vpack.c.b16 %v646, %v642
    %v695 = vpack.c.b16 %v651, %v647
    %v696 = vpack.c.b16 %v652, %v648
    %v697 = vpack.c.b16 %v653, %v649
    %v698 = vpack.c.b16 %v654, %v650
    %v699 = vpack.c.b16 %v659, %v655
    %v700 = vpack.c.b16 %v660, %v656
    %v701 = vpack.c.b16 %v661, %v657
    %v702 = vpack.c.b16 %v662, %v658
    %v703 = vpack.c.b16 %v667, %v663
    %v704 = vpack.c.b16 %v668, %v664
    %v705 = vpack.c.b16 %v669, %v665
    %v706 = vpack.c.b16 %v670, %v666
    %v707 = vpack.c.b16 %v675, %v671
    %v708 = vpack.c.b16 %v676, %v672
    %v709 = vpack.c.b16 %v677, %v673
    %v710 = vpack.c.b16 %v678, %v674
    %743 = vmatprep.subr.bf16.mxu0 %v680
    %744 = vmatpush1.bf16.msra.mxu0 %v679
    %745 = vmatprep.subr.bf16.mxu0 %v684
    %746 = vmatpush1.bf16.msra.mxu0 %v683
    %747 = vmatprep.subr.bf16.mxu0 %v688
    %748 = vmatpush1.bf16.msra.mxu0 %v687
    %749 = vmatprep.subr.bf16.mxu0 %v692
    %750 = vmatpush1.bf16.msra.mxu0 %v691
    %751 = vmatprep.subr.bf16.mxu0 %v696
    %752 = vmatpush1.bf16.msra.mxu0 %v695
    %753 = vmatprep.subr.bf16.mxu0 %v700
    %754 = vmatpush1.bf16.msra.mxu0 %v699
    %755 = vmatprep.subr.bf16.mxu0 %v704
    %756 = vmatpush1.bf16.msra.mxu0 %v703
    %757 = vmatprep.subr.bf16.mxu0 %v708
    %758 = vmatpush1.bf16.msra.mxu0 %v707
    %759 = vmatprep.subr.bf16.mxu0 0
    %760 = vmatpush1.bf16.msra.mxu0 0
    %761 = vmatprep.subr.bf16.mxu0 0
    %762 = vmatpush1.bf16.msra.mxu0 0
    %763 = vmatprep.subr.bf16.mxu0 0
    %764 = vmatpush1.bf16.msra.mxu0 0
    %765 = vmatprep.subr.bf16.mxu0 0
    %766 = vmatpush1.bf16.msra.mxu0 0
    %767 = vmatprep.subr.bf16.mxu0 0
    %768 = vmatpush1.bf16.msra.mxu0 0
    %769 = vmatprep.subr.bf16.mxu0 0
    %770 = vmatpush1.bf16.msra.mxu0 0
    %771 = vmatprep.subr.bf16.mxu0 0
    %772 = vmatpush1.bf16.msra.mxu0 0
    %773 = vmatprep.subr.bf16.mxu0 0
    %774 = vmatpush1.bf16.msra.mxu0 0
    %775 = vmatprep.mubr.bf16.mxu0 0
    %776 = vmatmul.mubr.bf16.gmra.mrb[0].mxu0 %v561
    %v777 = vpop.f32.mrb[0].mxu0
    %v778 = vadd.f32 %v566, %v777
    %v779 = vpop.f32.mrb[0].mxu0
    %v780 = vadd.f32 %v570, %v779
    %v781 = vpop.f32.mrb[0].mxu0
    %v782 = vpop.f32.mrb[0].mxu0
    %783 = vdwg.mxu0
    %784 = vmatprep.subr.bf16.mxu0 %v682
    %785 = vmatpush1.bf16.msra.mxu0 %v681
    %786 = vmatprep.subr.bf16.mxu0 %v686
    %787 = vmatpush1.bf16.msra.mxu0 %v685
    %788 = vmatprep.subr.bf16.mxu0 %v690
    %789 = vmatpush1.bf16.msra.mxu0 %v689
    %790 = vmatprep.subr.bf16.mxu0 %v694
    %791 = vmatpush1.bf16.msra.mxu0 %v693
    %792 = vmatprep.subr.bf16.mxu0 %v698
    %793 = vmatpush1.bf16.msra.mxu0 %v697
    %794 = vmatprep.subr.bf16.mxu0 %v702
    %795 = vmatpush1.bf16.msra.mxu0 %v701
    %796 = vmatprep.subr.bf16.mxu0 %v706
    %797 = vmatpush1.bf16.msra.mxu0 %v705
    %798 = vmatprep.subr.bf16.mxu0 %v710
    %799 = vmatpush1.bf16.msra.mxu0 %v709
    %800 = vmatprep.subr.bf16.mxu0 0
    %801 = vmatpush1.bf16.msra.mxu0 0
    %802 = vmatprep.subr.bf16.mxu0 0
    %803 = vmatpush1.bf16.msra.mxu0 0
    %804 = vmatprep.subr.bf16.mxu0 0
    %805 = vmatpush1.bf16.msra.mxu0 0
    %806 = vmatprep.subr.bf16.mxu0 0
    %807 = vmatpush1.bf16.msra.mxu0 0
    %808 = vmatprep.subr.bf16.mxu0 0
    %809 = vmatpush1.bf16.msra.mxu0 0
    %810 = vmatprep.subr.bf16.mxu0 0
    %811 = vmatpush1.bf16.msra.mxu0 0
    %812 = vmatprep.subr.bf16.mxu0 0
    %813 = vmatpush1.bf16.msra.mxu0 0
    %814 = vmatprep.subr.bf16.mxu0 0
    %815 = vmatpush1.bf16.msra.mxu0 0
    %816 = vmatprep.mubr.bf16.mxu0 0
    %817 = vmatmul.mubr.bf16.gmra.mrb[0].mxu0 %v561
    %v818 = vpop.f32.mrb[0].mxu0
    %v819 = vadd.f32 %v574, %v818
    %v820 = vpop.f32.mrb[0].mxu0
    %v821 = vadd.f32 %v578, %v820
    %v822 = vpop.f32.mrb[0].mxu0
    %v823 = vpop.f32.mrb[0].mxu0
    %824 = vdwg.mxu0
    %v825 = vxor.u32 %v778, 2147483648
    %v826 = vmul.f32 %v825, 1.442695
    %v827 = vpow.pop %v826
    %v828 = vadd.f32 %v827, 1.0
    %v829 = vrcp.pop %v828
    %v830 = vmul.f32 1.0, %v829
    %v831 = vxor.u32 %v780, 2147483648
    %v832 = vmul.f32 %v831, 1.442695
    %v833 = vpow.pop %v832
    %v834 = vadd.f32 %v833, 1.0
    %v835 = vrcp.pop %v834
    %v836 = vmul.f32 1.0, %v835
    %v837 = vtanh.pop %v819
    %v838 = vxor.u32 %v821, 2147483648
    %v839 = vmul.f32 %v838, 1.442695
    %v840 = vpow.pop %v839
    %v841 = vadd.f32 %v840, 1.0
    %v842 = vrcp.pop %v841
    %v843 = vmul.f32 1.0, %v842
    %v844 = vmul.f32 %v836, 0.0
    %v845 = vmul.f32 %v830, %v837
    %v846 = vadd.f32 %v844, %v845
    %v847 = vtanh.pop %v846
    %v848 = vmul.f32 %v843, %v847
    %v881 = vunpack.c.l.b16 %v120
    %v882 = vunpack.c.h.b16 %v120
    %v883 = vunpack.c.l.b16 %v121
    %v884 = vunpack.c.h.b16 %v121
    %v885 = vunpack.c.l.b16 %v122
    %v886 = vunpack.c.h.b16 %v122
    %v887 = vunpack.c.l.b16 %v123
    %v888 = vunpack.c.h.b16 %v123
    %v889 = vunpack.c.l.b16 %v124
    %v890 = vunpack.c.h.b16 %v124
    %v891 = vunpack.c.l.b16 %v125
    %v892 = vunpack.c.h.b16 %v125
    %v893 = vunpack.c.l.b16 %v126
    %v894 = vunpack.c.h.b16 %v126
    %v895 = vunpack.c.l.b16 %v127
    %v896 = vunpack.c.h.b16 %v127
    %v897 = vunpack.c.l.b16 %v128
    %v898 = vunpack.c.h.b16 %v128
    %v899 = vunpack.c.l.b16 %v129
    %v900 = vunpack.c.h.b16 %v129
    %v901 = vunpack.c.l.b16 %v130
    %v902 = vunpack.c.h.b16 %v130
    %v903 = vunpack.c.l.b16 %v131
    %v904 = vunpack.c.h.b16 %v131
    %v905 = vunpack.c.l.b16 %v132
    %v906 = vunpack.c.h.b16 %v132
    %v907 = vunpack.c.l.b16 %v133
    %v908 = vunpack.c.h.b16 %v133
    %v909 = vunpack.c.l.b16 %v134
    %v910 = vunpack.c.h.b16 %v134
    %v911 = vunpack.c.l.b16 %v135
    %v912 = vunpack.c.h.b16 %v135
    %v913 = vunpack.c.l.b16 %v136
    %v914 = vunpack.c.h.b16 %v136
    %v915 = vunpack.c.l.b16 %v137
    %v916 = vunpack.c.h.b16 %v137
    %v917 = vunpack.c.l.b16 %v138
    %v918 = vunpack.c.h.b16 %v138
    %v919 = vunpack.c.l.b16 %v139
    %v920 = vunpack.c.h.b16 %v139
    %v921 = vunpack.c.l.b16 %v140
    %v922 = vunpack.c.h.b16 %v140
    %v923 = vunpack.c.l.b16 %v141
    %v924 = vunpack.c.h.b16 %v141
    %v925 = vunpack.c.l.b16 %v142
    %v926 = vunpack.c.h.b16 %v142
    %v927 = vunpack.c.l.b16 %v143
    %v928 = vunpack.c.h.b16 %v143
    %v929 = vunpack.c.l.b16 %v144
    %v930 = vunpack.c.h.b16 %v144
    %v931 = vunpack.c.l.b16 %v145
    %v932 = vunpack.c.h.b16 %v145
    %v933 = vunpack.c.l.b16 %v146
    %v934 = vunpack.c.h.b16 %v146
    %v935 = vunpack.c.l.b16 %v147
    %v936 = vunpack.c.h.b16 %v147
    %v937 = vunpack.c.l.b16 %v148
    %v938 = vunpack.c.h.b16 %v148
    %v939 = vunpack.c.l.b16 %v149
    %v940 = vunpack.c.h.b16 %v149
    %v941 = vunpack.c.l.b16 %v150
    %v942 = vunpack.c.h.b16 %v150
    %v943 = vunpack.c.l.b16 %v151
    %v944 = vunpack.c.h.b16 %v151
    %v945 = vpack.c.b16 %v885, %v881
    %v946 = vpack.c.b16 %v886, %v882
    %v947 = vpack.c.b16 %v887, %v883
    %v948 = vpack.c.b16 %v888, %v884
    %v949 = vpack.c.b16 %v893, %v889
    %v950 = vpack.c.b16 %v894, %v890
    %v951 = vpack.c.b16 %v895, %v891
    %v952 = vpack.c.b16 %v896, %v892
    %v953 = vpack.c.b16 %v901, %v897
    %v954 = vpack.c.b16 %v902, %v898
    %v955 = vpack.c.b16 %v903, %v899
    %v956 = vpack.c.b16 %v904, %v900
    %v957 = vpack.c.b16 %v909, %v905
    %v958 = vpack.c.b16 %v910, %v906
    %v959 = vpack.c.b16 %v911, %v907
    %v960 = vpack.c.b16 %v912, %v908
    %v961 = vpack.c.b16 %v917, %v913
    %v962 = vpack.c.b16 %v918, %v914
    %v963 = vpack.c.b16 %v919, %v915
    %v964 = vpack.c.b16 %v920, %v916
    %v965 = vpack.c.b16 %v925, %v921
    %v966 = vpack.c.b16 %v926, %v922
    %v967 = vpack.c.b16 %v927, %v923
    %v968 = vpack.c.b16 %v928, %v924
    %v969 = vpack.c.b16 %v933, %v929
    %v970 = vpack.c.b16 %v934, %v930
    %v971 = vpack.c.b16 %v935, %v931
    %v972 = vpack.c.b16 %v936, %v932
    %v973 = vpack.c.b16 %v941, %v937
    %v974 = vpack.c.b16 %v942, %v938
    %v975 = vpack.c.b16 %v943, %v939
    %v976 = vpack.c.b16 %v944, %v940
    %1009 = vmatprep.subr.bf16.mxu0 %v946
    %1010 = vmatpush1.bf16.msra.mxu0 %v945
    %1011 = vmatprep.subr.bf16.mxu0 %v950
    %1012 = vmatpush1.bf16.msra.mxu0 %v949
    %1013 = vmatprep.subr.bf16.mxu0 %v954
    %1014 = vmatpush1.bf16.msra.mxu0 %v953
    %1015 = vmatprep.subr.bf16.mxu0 %v958
    %1016 = vmatpush1.bf16.msra.mxu0 %v957
    %1017 = vmatprep.subr.bf16.mxu0 %v962
    %1018 = vmatpush1.bf16.msra.mxu0 %v961
    %1019 = vmatprep.subr.bf16.mxu0 %v966
    %1020 = vmatpush1.bf16.msra.mxu0 %v965
    %1021 = vmatprep.subr.bf16.mxu0 %v970
    %1022 = vmatpush1.bf16.msra.mxu0 %v969
    %1023 = vmatprep.subr.bf16.mxu0 %v974
    %1024 = vmatpush1.bf16.msra.mxu0 %v973
    %1025 = vmatprep.subr.bf16.mxu0 0
    %1026 = vmatpush1.bf16.msra.mxu0 0
    %1027 = vmatprep.subr.bf16.mxu0 0
    %1028 = vmatpush1.bf16.msra.mxu0 0
    %1029 = vmatprep.subr.bf16.mxu0 0
    %1030 = vmatpush1.bf16.msra.mxu0 0
    %1031 = vmatprep.subr.bf16.mxu0 0
    %1032 = vmatpush1.bf16.msra.mxu0 0
    %1033 = vmatprep.subr.bf16.mxu0 0
    %1034 = vmatpush1.bf16.msra.mxu0 0
    %1035 = vmatprep.subr.bf16.mxu0 0
    %1036 = vmatpush1.bf16.msra.mxu0 0
    %1037 = vmatprep.subr.bf16.mxu0 0
    %1038 = vmatpush1.bf16.msra.mxu0 0
    %1039 = vmatprep.subr.bf16.mxu0 0
    %1040 = vmatpush1.bf16.msra.mxu0 0
    %1041 = vmatprep.mubr.bf16.mxu0 0
    %1042 = vmatmul.mubr.bf16.gmra.mrb[0].mxu0 %v561
    %v1043 = vpop.f32.mrb[0].mxu0
    %v1044 = vadd.f32 0.0, %v1043
    %v1045 = vpop.f32.mrb[0].mxu0
    %v1046 = vadd.f32 0.0, %v1045
    %v1047 = vpop.f32.mrb[0].mxu0
    %v1048 = vpop.f32.mrb[0].mxu0
    %1049 = vdwg.mxu0
    %1050 = vmatprep.subr.bf16.mxu0 %v948
    %1051 = vmatpush1.bf16.msra.mxu0 %v947
    %1052 = vmatprep.subr.bf16.mxu0 %v952
    %1053 = vmatpush1.bf16.msra.mxu0 %v951
    %1054 = vmatprep.subr.bf16.mxu0 %v956
    %1055 = vmatpush1.bf16.msra.mxu0 %v955
    %1056 = vmatprep.subr.bf16.mxu0 %v960
    %1057 = vmatpush1.bf16.msra.mxu0 %v959
    %1058 = vmatprep.subr.bf16.mxu0 %v964
    %1059 = vmatpush1.bf16.msra.mxu0 %v963
    %1060 = vmatprep.subr.bf16.mxu0 %v968
    %1061 = vmatpush1.bf16.msra.mxu0 %v967
    %1062 = vmatprep.subr.bf16.mxu0 %v972
    %1063 = vmatpush1.bf16.msra.mxu0 %v971
    %1064 = vmatprep.subr.bf16.mxu0 %v976
    %1065 = vmatpush1.bf16.msra.mxu0 %v975
    %1066 = vmatprep.subr.bf16.mxu0 0
    %1067 = vmatpush1.bf16.msra.mxu0 0
    %1068 = vmatprep.subr.bf16.mxu0 0
    %1069 = vmatpush1.bf16.msra.mxu0 0
    %1070 = vmatprep.subr.bf16.mxu0 0
    %1071 = vmatpush1.bf16.msra.mxu0 0
    %1072 = vmatprep.subr.bf16.mxu0 0
    %1073 = vmatpush1.bf16.msra.mxu0 0
    %1074 = vmatprep.subr.bf16.mxu0 0
    %1075 = vmatpush1.bf16.msra.mxu0 0
    %1076 = vmatprep.subr.bf16.mxu0 0
    %1077 = vmatpush1.bf16.msra.mxu0 0
    %1078 = vmatprep.subr.bf16.mxu0 0
    %1079 = vmatpush1.bf16.msra.mxu0 0
    %1080 = vmatprep.subr.bf16.mxu0 0
    %1081 = vmatpush1.bf16.msra.mxu0 0
    %1082 = vmatprep.mubr.bf16.mxu0 0
    %1083 = vmatmul.mubr.bf16.gmra.mrb[0].mxu0 %v561
    %v1084 = vpop.f32.mrb[0].mxu0
    %v1085 = vadd.f32 0.0, %v1084
    %v1086 = vpop.f32.mrb[0].mxu0
    %v1087 = vadd.f32 0.0, %v1086
    %v1088 = vpop.f32.mrb[0].mxu0
    %v1089 = vpop.f32.mrb[0].mxu0
    %1090 = vdwg.mxu0
    %v1091 = vadd.f32 %v384, %v1044
    %v1092 = vadd.f32 %v386, %v1046
    %v1093 = vadd.f32 %v497, %v1085
    %v1094 = vadd.f32 %v499, %v1087
    %v1095 = vxor.u32 %v1091, 2147483648
    %v1096 = vmul.f32 %v1095, 1.442695
    %v1097 = vpow.pop %v1096
    %v1098 = vadd.f32 %v1097, 1.0
    %v1099 = vrcp.pop %v1098
    %v1100 = vmul.f32 1.0, %v1099
    %v1101 = vxor.u32 %v1092, 2147483648
    %v1102 = vmul.f32 %v1101, 1.442695
    %v1103 = vpow.pop %v1102
    %v1104 = vadd.f32 %v1103, 1.0
    %v1105 = vrcp.pop %v1104
    %v1106 = vmul.f32 1.0, %v1105
    %v1107 = vtanh.pop %v1093
    %v1108 = vxor.u32 %v1094, 2147483648
    %v1109 = vmul.f32 %v1108, 1.442695
    %v1110 = vpow.pop %v1109
    %v1111 = vadd.f32 %v1110, 1.0
    %v1112 = vrcp.pop %v1111
    %v1113 = vmul.f32 1.0, %v1112
    %v1114 = vmul.f32 %v1106, %v558
    %v1115 = vmul.f32 %v1100, %v1107
    %v1116 = vadd.f32 %v1114, %v1115
    %v1117 = vtanh.pop %v1116
    %v1118 = vmul.f32 %v1113, %v1117
    %v1119 = vpack.c.bf16 %v1118, %v1118
    %v1120 = vpack.c.bf16 %v848, %v848
    %v1153 = vunpack.c.l.b16 %v184
    %v1154 = vunpack.c.h.b16 %v184
    %v1155 = vunpack.c.l.b16 %v185
    %v1156 = vunpack.c.h.b16 %v185
    %v1157 = vunpack.c.l.b16 %v186
    %v1158 = vunpack.c.h.b16 %v186
    %v1159 = vunpack.c.l.b16 %v187
    %v1160 = vunpack.c.h.b16 %v187
    %v1161 = vunpack.c.l.b16 %v188
    %v1162 = vunpack.c.h.b16 %v188
    %v1163 = vunpack.c.l.b16 %v189
    %v1164 = vunpack.c.h.b16 %v189
    %v1165 = vunpack.c.l.b16 %v190
    %v1166 = vunpack.c.h.b16 %v190
    %v1167 = vunpack.c.l.b16 %v191
    %v1168 = vunpack.c.h.b16 %v191
    %v1169 = vunpack.c.l.b16 %v192
    %v1170 = vunpack.c.h.b16 %v192
    %v1171 = vunpack.c.l.b16 %v193
    %v1172 = vunpack.c.h.b16 %v193
    %v1173 = vunpack.c.l.b16 %v194
    %v1174 = vunpack.c.h.b16 %v194
    %v1175 = vunpack.c.l.b16 %v195
    %v1176 = vunpack.c.h.b16 %v195
    %v1177 = vunpack.c.l.b16 %v196
    %v1178 = vunpack.c.h.b16 %v196
    %v1179 = vunpack.c.l.b16 %v197
    %v1180 = vunpack.c.h.b16 %v197
    %v1181 = vunpack.c.l.b16 %v198
    %v1182 = vunpack.c.h.b16 %v198
    %v1183 = vunpack.c.l.b16 %v199
    %v1184 = vunpack.c.h.b16 %v199
    %v1185 = vunpack.c.l.b16 %v200
    %v1186 = vunpack.c.h.b16 %v200
    %v1187 = vunpack.c.l.b16 %v201
    %v1188 = vunpack.c.h.b16 %v201
    %v1189 = vunpack.c.l.b16 %v202
    %v1190 = vunpack.c.h.b16 %v202
    %v1191 = vunpack.c.l.b16 %v203
    %v1192 = vunpack.c.h.b16 %v203
    %v1193 = vunpack.c.l.b16 %v204
    %v1194 = vunpack.c.h.b16 %v204
    %v1195 = vunpack.c.l.b16 %v205
    %v1196 = vunpack.c.h.b16 %v205
    %v1197 = vunpack.c.l.b16 %v206
    %v1198 = vunpack.c.h.b16 %v206
    %v1199 = vunpack.c.l.b16 %v207
    %v1200 = vunpack.c.h.b16 %v207
    %v1201 = vunpack.c.l.b16 %v208
    %v1202 = vunpack.c.h.b16 %v208
    %v1203 = vunpack.c.l.b16 %v209
    %v1204 = vunpack.c.h.b16 %v209
    %v1205 = vunpack.c.l.b16 %v210
    %v1206 = vunpack.c.h.b16 %v210
    %v1207 = vunpack.c.l.b16 %v211
    %v1208 = vunpack.c.h.b16 %v211
    %v1209 = vunpack.c.l.b16 %v212
    %v1210 = vunpack.c.h.b16 %v212
    %v1211 = vunpack.c.l.b16 %v213
    %v1212 = vunpack.c.h.b16 %v213
    %v1213 = vunpack.c.l.b16 %v214
    %v1214 = vunpack.c.h.b16 %v214
    %v1215 = vunpack.c.l.b16 %v215
    %v1216 = vunpack.c.h.b16 %v215
    %v1217 = vpack.c.b16 %v1157, %v1153
    %v1218 = vpack.c.b16 %v1158, %v1154
    %v1219 = vpack.c.b16 %v1159, %v1155
    %v1220 = vpack.c.b16 %v1160, %v1156
    %v1221 = vpack.c.b16 %v1165, %v1161
    %v1222 = vpack.c.b16 %v1166, %v1162
    %v1223 = vpack.c.b16 %v1167, %v1163
    %v1224 = vpack.c.b16 %v1168, %v1164
    %v1225 = vpack.c.b16 %v1173, %v1169
    %v1226 = vpack.c.b16 %v1174, %v1170
    %v1227 = vpack.c.b16 %v1175, %v1171
    %v1228 = vpack.c.b16 %v1176, %v1172
    %v1229 = vpack.c.b16 %v1181, %v1177
    %v1230 = vpack.c.b16 %v1182, %v1178
    %v1231 = vpack.c.b16 %v1183, %v1179
    %v1232 = vpack.c.b16 %v1184, %v1180
    %v1233 = vpack.c.b16 %v1189, %v1185
    %v1234 = vpack.c.b16 %v1190, %v1186
    %v1235 = vpack.c.b16 %v1191, %v1187
    %v1236 = vpack.c.b16 %v1192, %v1188
    %v1237 = vpack.c.b16 %v1197, %v1193
    %v1238 = vpack.c.b16 %v1198, %v1194
    %v1239 = vpack.c.b16 %v1199, %v1195
    %v1240 = vpack.c.b16 %v1200, %v1196
    %v1241 = vpack.c.b16 %v1205, %v1201
    %v1242 = vpack.c.b16 %v1206, %v1202
    %v1243 = vpack.c.b16 %v1207, %v1203
    %v1244 = vpack.c.b16 %v1208, %v1204
    %v1245 = vpack.c.b16 %v1213, %v1209
    %v1246 = vpack.c.b16 %v1214, %v1210
    %v1247 = vpack.c.b16 %v1215, %v1211
    %v1248 = vpack.c.b16 %v1216, %v1212
    %1281 = vmatprep.subr.bf16.mxu0 %v1218
    %1282 = vmatpush1.bf16.msra.mxu0 %v1217
    %1283 = vmatprep.subr.bf16.mxu0 %v1222
    %1284 = vmatpush1.bf16.msra.mxu0 %v1221
    %1285 = vmatprep.subr.bf16.mxu0 %v1226
    %1286 = vmatpush1.bf16.msra.mxu0 %v1225
    %1287 = vmatprep.subr.bf16.mxu0 %v1230
    %1288 = vmatpush1.bf16.msra.mxu0 %v1229
    %1289 = vmatprep.subr.bf16.mxu0 %v1234
    %1290 = vmatpush1.bf16.msra.mxu0 %v1233
    %1291 = vmatprep.subr.bf16.mxu0 %v1238
    %1292 = vmatpush1.bf16.msra.mxu0 %v1237
    %1293 = vmatprep.subr.bf16.mxu0 %v1242
    %1294 = vmatpush1.bf16.msra.mxu0 %v1241
    %1295 = vmatprep.subr.bf16.mxu0 %v1246
    %1296 = vmatpush1.bf16.msra.mxu0 %v1245
    %1297 = vmatprep.subr.bf16.mxu0 0
    %1298 = vmatpush1.bf16.msra.mxu0 0
    %1299 = vmatprep.subr.bf16.mxu0 0
    %1300 = vmatpush1.bf16.msra.mxu0 0
    %1301 = vmatprep.subr.bf16.mxu0 0
    %1302 = vmatpush1.bf16.msra.mxu0 0
    %1303 = vmatprep.subr.bf16.mxu0 0
    %1304 = vmatpush1.bf16.msra.mxu0 0
    %1305 = vmatprep.subr.bf16.mxu0 0
    %1306 = vmatpush1.bf16.msra.mxu0 0
    %1307 = vmatprep.subr.bf16.mxu0 0
    %1308 = vmatpush1.bf16.msra.mxu0 0
    %1309 = vmatprep.subr.bf16.mxu0 0
    %1310 = vmatpush1.bf16.msra.mxu0 0
    %1311 = vmatprep.subr.bf16.mxu0 0
    %1312 = vmatpush1.bf16.msra.mxu0 0
    %1313 = vmatprep.mubr.bf16.mxu0 0
    %1314 = vmatmul.mubr.bf16.gmra.mrb[0].mxu0 %v1120
    %v1315 = vpop.f32.mrb[0].mxu0
    %v1316 = vadd.f32 0.0, %v1315
    %v1317 = vpop.f32.mrb[0].mxu0
    %v1318 = vadd.f32 0.0, %v1317
    %v1319 = vpop.f32.mrb[0].mxu0
    %v1320 = vpop.f32.mrb[0].mxu0
    %1321 = vdwg.mxu0
    %1322 = vmatprep.subr.bf16.mxu0 %v1220
    %1323 = vmatpush1.bf16.msra.mxu0 %v1219
    %1324 = vmatprep.subr.bf16.mxu0 %v1224
    %1325 = vmatpush1.bf16.msra.mxu0 %v1223
    %1326 = vmatprep.subr.bf16.mxu0 %v1228
    %1327 = vmatpush1.bf16.msra.mxu0 %v1227
    %1328 = vmatprep.subr.bf16.mxu0 %v1232
    %1329 = vmatpush1.bf16.msra.mxu0 %v1231
    %1330 = vmatprep.subr.bf16.mxu0 %v1236
    %1331 = vmatpush1.bf16.msra.mxu0 %v1235
    %1332 = vmatprep.subr.bf16.mxu0 %v1240
    %1333 = vmatpush1.bf16.msra.mxu0 %v1239
    %1334 = vmatprep.subr.bf16.mxu0 %v1244
    %1335 = vmatpush1.bf16.msra.mxu0 %v1243
    %1336 = vmatprep.subr.bf16.mxu0 %v1248
    %1337 = vmatpush1.bf16.msra.mxu0 %v1247
    %1338 = vmatprep.subr.bf16.mxu0 0
    %1339 = vmatpush1.bf16.msra.mxu0 0
    %1340 = vmatprep.subr.bf16.mxu0 0
    %1341 = vmatpush1.bf16.msra.mxu0 0
    %1342 = vmatprep.subr.bf16.mxu0 0
    %1343 = vmatpush1.bf16.msra.mxu0 0
    %1344 = vmatprep.subr.bf16.mxu0 0
    %1345 = vmatpush1.bf16.msra.mxu0 0
    %1346 = vmatprep.subr.bf16.mxu0 0
    %1347 = vmatpush1.bf16.msra.mxu0 0
    %1348 = vmatprep.subr.bf16.mxu0 0
    %1349 = vmatpush1.bf16.msra.mxu0 0
    %1350 = vmatprep.subr.bf16.mxu0 0
    %1351 = vmatpush1.bf16.msra.mxu0 0
    %1352 = vmatprep.subr.bf16.mxu0 0
    %1353 = vmatpush1.bf16.msra.mxu0 0
    %1354 = vmatprep.mubr.bf16.mxu0 0
    %1355 = vmatmul.mubr.bf16.gmra.mrb[0].mxu0 %v1120
    %v1356 = vpop.f32.mrb[0].mxu0
    %v1357 = vadd.f32 0.0, %v1356
    %v1358 = vpop.f32.mrb[0].mxu0
    %v1359 = vadd.f32 0.0, %v1358
    %v1360 = vpop.f32.mrb[0].mxu0
    %v1361 = vpop.f32.mrb[0].mxu0
    %1362 = vdwg.mxu0
    %1363 = vmatprep.subr.bf16.mxu0 %v680
    %1364 = vmatpush1.bf16.msra.mxu0 %v679
    %1365 = vmatprep.subr.bf16.mxu0 %v684
    %1366 = vmatpush1.bf16.msra.mxu0 %v683
    %1367 = vmatprep.subr.bf16.mxu0 %v688
    %1368 = vmatpush1.bf16.msra.mxu0 %v687
    %1369 = vmatprep.subr.bf16.mxu0 %v692
    %1370 = vmatpush1.bf16.msra.mxu0 %v691
    %1371 = vmatprep.subr.bf16.mxu0 %v696
    %1372 = vmatpush1.bf16.msra.mxu0 %v695
    %1373 = vmatprep.subr.bf16.mxu0 %v700
    %1374 = vmatpush1.bf16.msra.mxu0 %v699
    %1375 = vmatprep.subr.bf16.mxu0 %v704
    %1376 = vmatpush1.bf16.msra.mxu0 %v703
    %1377 = vmatprep.subr.bf16.mxu0 %v708
    %1378 = vmatpush1.bf16.msra.mxu0 %v707
    %1379 = vmatprep.subr.bf16.mxu0 0
    %1380 = vmatpush1.bf16.msra.mxu0 0
    %1381 = vmatprep.subr.bf16.mxu0 0
    %1382 = vmatpush1.bf16.msra.mxu0 0
    %1383 = vmatprep.subr.bf16.mxu0 0
    %1384 = vmatpush1.bf16.msra.mxu0 0
    %1385 = vmatprep.subr.bf16.mxu0 0
    %1386 = vmatpush1.bf16.msra.mxu0 0
    %1387 = vmatprep.subr.bf16.mxu0 0
    %1388 = vmatpush1.bf16.msra.mxu0 0
    %1389 = vmatprep.subr.bf16.mxu0 0
    %1390 = vmatpush1.bf16.msra.mxu0 0
    %1391 = vmatprep.subr.bf16.mxu0 0
    %1392 = vmatpush1.bf16.msra.mxu0 0
    %1393 = vmatprep.subr.bf16.mxu0 0
    %1394 = vmatpush1.bf16.msra.mxu0 0
    %1395 = vmatprep.mubr.bf16.mxu0 0
    %1396 = vmatmul.mubr.bf16.gmra.mrb[0].mxu0 %v1119
    %v1397 = vpop.f32.mrb[0].mxu0
    %v1398 = vadd.f32 %v1316, %v1397
    %v1399 = vpop.f32.mrb[0].mxu0
    %v1400 = vadd.f32 %v1318, %v1399
    %v1401 = vpop.f32.mrb[0].mxu0
    %v1402 = vpop.f32.mrb[0].mxu0
    %1403 = vdwg.mxu0
    %1404 = vmatprep.subr.bf16.mxu0 %v682
    %1405 = vmatpush1.bf16.msra.mxu0 %v681
    %1406 = vmatprep.subr.bf16.mxu0 %v686
    %1407 = vmatpush1.bf16.msra.mxu0 %v685
    %1408 = vmatprep.subr.bf16.mxu0 %v690
    %1409 = vmatpush1.bf16.msra.mxu0 %v689
    %1410 = vmatprep.subr.bf16.mxu0 %v694
    %1411 = vmatpush1.bf16.msra.mxu0 %v693
    %1412 = vmatprep.subr.bf16.mxu0 %v698
    %1413 = vmatpush1.bf16.msra.mxu0 %v697
    %1414 = vmatprep.subr.bf16.mxu0 %v702
    %1415 = vmatpush1.bf16.msra.mxu0 %v701
    %1416 = vmatprep.subr.bf16.mxu0 %v706
    %1417 = vmatpush1.bf16.msra.mxu0 %v705
    %1418 = vmatprep.subr.bf16.mxu0 %v710
    %1419 = vmatpush1.bf16.msra.mxu0 %v709
    %1420 = vmatprep.subr.bf16.mxu0 0
    %1421 = vmatpush1.bf16.msra.mxu0 0
    %1422 = vmatprep.subr.bf16.mxu0 0
    %1423 = vmatpush1.bf16.msra.mxu0 0
    %1424 = vmatprep.subr.bf16.mxu0 0
    %1425 = vmatpush1.bf16.msra.mxu0 0
    %1426 = vmatprep.subr.bf16.mxu0 0
    %1427 = vmatpush1.bf16.msra.mxu0 0
    %1428 = vmatprep.subr.bf16.mxu0 0
    %1429 = vmatpush1.bf16.msra.mxu0 0
    %1430 = vmatprep.subr.bf16.mxu0 0
    %1431 = vmatpush1.bf16.msra.mxu0 0
    %1432 = vmatprep.subr.bf16.mxu0 0
    %1433 = vmatpush1.bf16.msra.mxu0 0
    %1434 = vmatprep.subr.bf16.mxu0 0
    %1435 = vmatpush1.bf16.msra.mxu0 0
    %1436 = vmatprep.mubr.bf16.mxu0 0
    %1437 = vmatmul.mubr.bf16.gmra.mrb[0].mxu0 %v1119
    %v1438 = vpop.f32.mrb[0].mxu0
    %v1439 = vadd.f32 %v1357, %v1438
    %v1440 = vpop.f32.mrb[0].mxu0
    %v1441 = vadd.f32 %v1359, %v1440
    %v1442 = vpop.f32.mrb[0].mxu0
    %v1443 = vpop.f32.mrb[0].mxu0
    %1444 = vdwg.mxu0
    %v1445 = vadd.f32 %v1398, %v566
    %v1446 = vadd.f32 %v1400, %v570
    %v1447 = vadd.f32 %v1439, %v574
    %v1448 = vadd.f32 %v1441, %v578
    %v1449 = vxor.u32 %v1445, 2147483648
    %v1450 = vmul.f32 %v1449, 1.442695
    %v1451 = vpow.pop %v1450
    %v1452 = vadd.f32 %v1451, 1.0
    %v1453 = vrcp.pop %v1452
    %v1454 = vmul.f32 1.0, %v1453
    %v1455 = vxor.u32 %v1446, 2147483648
    %v1456 = vmul.f32 %v1455, 1.442695
    %v1457 = vpow.pop %v1456
    %v1458 = vadd.f32 %v1457, 1.0
    %v1459 = vrcp.pop %v1458
    %v1460 = vmul.f32 1.0, %v1459
    %v1461 = vtanh.pop %v1447
    %v1462 = vxor.u32 %v1448, 2147483648
    %v1463 = vmul.f32 %v1462, 1.442695
    %v1464 = vpow.pop %v1463
    %v1465 = vadd.f32 %v1464, 1.0
    %v1466 = vrcp.pop %v1465
    %v1467 = vmul.f32 1.0, %v1466
    %v1468 = vmul.f32 %v1460, %v846
    %v1469 = vmul.f32 %v1454, %v1461
    %v1470 = vadd.f32 %v1468, %v1469
    %v1471 = vtanh.pop %v1470
    %v1472 = vmul.f32 %v1467, %v1471
    %1473 = vmatprep.subr.bf16.mxu0 %v946
    %1474 = vmatpush1.bf16.msra.mxu0 %v945
    %1475 = vmatprep.subr.bf16.mxu0 %v950
    %1476 = vmatpush1.bf16.msra.mxu0 %v949
    %1477 = vmatprep.subr.bf16.mxu0 %v954
    %1478 = vmatpush1.bf16.msra.mxu0 %v953
    %1479 = vmatprep.subr.bf16.mxu0 %v958
    %1480 = vmatpush1.bf16.msra.mxu0 %v957
    %1481 = vmatprep.subr.bf16.mxu0 %v962
    %1482 = vmatpush1.bf16.msra.mxu0 %v961
    %1483 = vmatprep.subr.bf16.mxu0 %v966
    %1484 = vmatpush1.bf16.msra.mxu0 %v965
    %1485 = vmatprep.subr.bf16.mxu0 %v970
    %1486 = vmatpush1.bf16.msra.mxu0 %v969
    %1487 = vmatprep.subr.bf16.mxu0 %v974
    %1488 = vmatpush1.bf16.msra.mxu0 %v973
    %1489 = vmatprep.subr.bf16.mxu0 0
    %1490 = vmatpush1.bf16.msra.mxu0 0
    %1491 = vmatprep.subr.bf16.mxu0 0
    %1492 = vmatpush1.bf16.msra.mxu0 0
    %1493 = vmatprep.subr.bf16.mxu0 0
    %1494 = vmatpush1.bf16.msra.mxu0 0
    %1495 = vmatprep.subr.bf16.mxu0 0
    %1496 = vmatpush1.bf16.msra.mxu0 0
    %1497 = vmatprep.subr.bf16.mxu0 0
    %1498 = vmatpush1.bf16.msra.mxu0 0
    %1499 = vmatprep.subr.bf16.mxu0 0
    %1500 = vmatpush1.bf16.msra.mxu0 0
    %1501 = vmatprep.subr.bf16.mxu0 0
    %1502 = vmatpush1.bf16.msra.mxu0 0
    %1503 = vmatprep.subr.bf16.mxu0 0
    %1504 = vmatpush1.bf16.msra.mxu0 0
    %1505 = vmatprep.mubr.bf16.mxu0 0
    %1506 = vmatmul.mubr.bf16.gmra.mrb[0].mxu0 %v1119
    %v1507 = vpop.f32.mrb[0].mxu0
    %v1508 = vadd.f32 0.0, %v1507
    %v1509 = vpop.f32.mrb[0].mxu0
    %v1510 = vadd.f32 0.0, %v1509
    %v1511 = vpop.f32.mrb[0].mxu0
    %v1512 = vpop.f32.mrb[0].mxu0
    %1513 = vdwg.mxu0
    %1514 = vmatprep.subr.bf16.mxu0 %v948
    %1515 = vmatpush1.bf16.msra.mxu0 %v947
    %1516 = vmatprep.subr.bf16.mxu0 %v952
    %1517 = vmatpush1.bf16.msra.mxu0 %v951
    %1518 = vmatprep.subr.bf16.mxu0 %v956
    %1519 = vmatpush1.bf16.msra.mxu0 %v955
    %1520 = vmatprep.subr.bf16.mxu0 %v960
    %1521 = vmatpush1.bf16.msra.mxu0 %v959
    %1522 = vmatprep.subr.bf16.mxu0 %v964
    %1523 = vmatpush1.bf16.msra.mxu0 %v963
    %1524 = vmatprep.subr.bf16.mxu0 %v968
    %1525 = vmatpush1.bf16.msra.mxu0 %v967
    %1526 = vmatprep.subr.bf16.mxu0 %v972
    %1527 = vmatpush1.bf16.msra.mxu0 %v971
    %1528 = vmatprep.subr.bf16.mxu0 %v976
    %1529 = vmatpush1.bf16.msra.mxu0 %v975
    %1530 = vmatprep.subr.bf16.mxu0 0
    %1531 = vmatpush1.bf16.msra.mxu0 0
    %1532 = vmatprep.subr.bf16.mxu0 0
    %1533 = vmatpush1.bf16.msra.mxu0 0
    %1534 = vmatprep.subr.bf16.mxu0 0
    %1535 = vmatpush1.bf16.msra.mxu0 0
    %1536 = vmatprep.subr.bf16.mxu0 0
    %1537 = vmatpush1.bf16.msra.mxu0 0
    %1538 = vmatprep.subr.bf16.mxu0 0
    %1539 = vmatpush1.bf16.msra.mxu0 0
    %1540 = vmatprep.subr.bf16.mxu0 0
    %1541 = vmatpush1.bf16.msra.mxu0 0
    %1542 = vmatprep.subr.bf16.mxu0 0
    %1543 = vmatpush1.bf16.msra.mxu0 0
    %1544 = vmatprep.subr.bf16.mxu0 0
    %1545 = vmatpush1.bf16.msra.mxu0 0
    %1546 = vmatprep.mubr.bf16.mxu0 0
    %1547 = vmatmul.mubr.bf16.gmra.mrb[0].mxu0 %v1119
    %v1548 = vpop.f32.mrb[0].mxu0
    %v1549 = vadd.f32 0.0, %v1548
    %v1550 = vpop.f32.mrb[0].mxu0
    %v1551 = vadd.f32 0.0, %v1550
    %v1552 = vpop.f32.mrb[0].mxu0
    %v1553 = vpop.f32.mrb[0].mxu0
    %1554 = vdwg.mxu0
    %v1555 = vadd.f32 %v390, %v1508
    %v1556 = vadd.f32 %v392, %v1510
    %v1557 = vadd.f32 %v503, %v1549
    %v1558 = vadd.f32 %v505, %v1551
    %v1559 = vxor.u32 %v1555, 2147483648
    %v1560 = vmul.f32 %v1559, 1.442695
    %v1561 = vpow.pop %v1560
    %v1562 = vadd.f32 %v1561, 1.0
    %v1563 = vrcp.pop %v1562
    %v1564 = vmul.f32 1.0, %v1563
    %v1565 = vxor.u32 %v1556, 2147483648
    %v1566 = vmul.f32 %v1565, 1.442695
    %v1567 = vpow.pop %v1566
    %v1568 = vadd.f32 %v1567, 1.0
    %v1569 = vrcp.pop %v1568
    %v1570 = vmul.f32 1.0, %v1569
    %v1571 = vtanh.pop %v1557
    %v1572 = vxor.u32 %v1558, 2147483648
    %v1573 = vmul.f32 %v1572, 1.442695
    %v1574 = vpow.pop %v1573
    %v1575 = vadd.f32 %v1574, 1.0
    %v1576 = vrcp.pop %v1575
    %v1577 = vmul.f32 1.0, %v1576
    %v1578 = vmul.f32 %v1570, %v1116
    %v1579 = vmul.f32 %v1564, %v1571
    %v1580 = vadd.f32 %v1578, %v1579
    %v1581 = vtanh.pop %v1580
    %v1582 = vmul.f32 %v1577, %v1581
    %v1583 = vpack.c.bf16 %v1582, %v1582
    %v1584 = vpack.c.bf16 %v1472, %v1472
    %1585 = vmatprep.subr.bf16.mxu0 %v1218
    %1586 = vmatpush1.bf16.msra.mxu0 %v1217
    %1587 = vmatprep.subr.bf16.mxu0 %v1222
    %1588 = vmatpush1.bf16.msra.mxu0 %v1221
    %1589 = vmatprep.subr.bf16.mxu0 %v1226
    %1590 = vmatpush1.bf16.msra.mxu0 %v1225
    %1591 = vmatprep.subr.bf16.mxu0 %v1230
    %1592 = vmatpush1.bf16.msra.mxu0 %v1229
    %1593 = vmatprep.subr.bf16.mxu0 %v1234
    %1594 = vmatpush1.bf16.msra.mxu0 %v1233
    %1595 = vmatprep.subr.bf16.mxu0 %v1238
    %1596 = vmatpush1.bf16.msra.mxu0 %v1237
    %1597 = vmatprep.subr.bf16.mxu0 %v1242
    %1598 = vmatpush1.bf16.msra.mxu0 %v1241
    %1599 = vmatprep.subr.bf16.mxu0 %v1246
    %1600 = vmatpush1.bf16.msra.mxu0 %v1245
    %1601 = vmatprep.subr.bf16.mxu0 0
    %1602 = vmatpush1.bf16.msra.mxu0 0
    %1603 = vmatprep.subr.bf16.mxu0 0
    %1604 = vmatpush1.bf16.msra.mxu0 0
    %1605 = vmatprep.subr.bf16.mxu0 0
    %1606 = vmatpush1.bf16.msra.mxu0 0
    %1607 = vmatprep.subr.bf16.mxu0 0
    %1608 = vmatpush1.bf16.msra.mxu0 0
    %1609 = vmatprep.subr.bf16.mxu0 0
    %1610 = vmatpush1.bf16.msra.mxu0 0
    %1611 = vmatprep.subr.bf16.mxu0 0
    %1612 = vmatpush1.bf16.msra.mxu0 0
    %1613 = vmatprep.subr.bf16.mxu0 0
    %1614 = vmatpush1.bf16.msra.mxu0 0
    %1615 = vmatprep.subr.bf16.mxu0 0
    %1616 = vmatpush1.bf16.msra.mxu0 0
    %1617 = vmatprep.mubr.bf16.mxu0 0
    %1618 = vmatmul.mubr.bf16.gmra.mrb[0].mxu0 %v1584
    %v1619 = vpop.f32.mrb[0].mxu0
    %v1620 = vadd.f32 0.0, %v1619
    %v1621 = vpop.f32.mrb[0].mxu0
    %v1622 = vadd.f32 0.0, %v1621
    %v1623 = vpop.f32.mrb[0].mxu0
    %v1624 = vpop.f32.mrb[0].mxu0
    %1625 = vdwg.mxu0
    %1626 = vmatprep.subr.bf16.mxu0 %v1220
    %1627 = vmatpush1.bf16.msra.mxu0 %v1219
    %1628 = vmatprep.subr.bf16.mxu0 %v1224
    %1629 = vmatpush1.bf16.msra.mxu0 %v1223
    %1630 = vmatprep.subr.bf16.mxu0 %v1228
    %1631 = vmatpush1.bf16.msra.mxu0 %v1227
    %1632 = vmatprep.subr.bf16.mxu0 %v1232
    %1633 = vmatpush1.bf16.msra.mxu0 %v1231
    %1634 = vmatprep.subr.bf16.mxu0 %v1236
    %1635 = vmatpush1.bf16.msra.mxu0 %v1235
    %1636 = vmatprep.subr.bf16.mxu0 %v1240
    %1637 = vmatpush1.bf16.msra.mxu0 %v1239
    %1638 = vmatprep.subr.bf16.mxu0 %v1244
    %1639 = vmatpush1.bf16.msra.mxu0 %v1243
    %1640 = vmatprep.subr.bf16.mxu0 %v1248
    %1641 = vmatpush1.bf16.msra.mxu0 %v1247
    %1642 = vmatprep.subr.bf16.mxu0 0
    %1643 = vmatpush1.bf16.msra.mxu0 0
    %1644 = vmatprep.subr.bf16.mxu0 0
    %1645 = vmatpush1.bf16.msra.mxu0 0
    %1646 = vmatprep.subr.bf16.mxu0 0
    %1647 = vmatpush1.bf16.msra.mxu0 0
    %1648 = vmatprep.subr.bf16.mxu0 0
    %1649 = vmatpush1.bf16.msra.mxu0 0
    %1650 = vmatprep.subr.bf16.mxu0 0
    %1651 = vmatpush1.bf16.msra.mxu0 0
    %1652 = vmatprep.subr.bf16.mxu0 0
    %1653 = vmatpush1.bf16.msra.mxu0 0
    %1654 = vmatprep.subr.bf16.mxu0 0
    %1655 = vmatpush1.bf16.msra.mxu0 0
    %1656 = vmatprep.subr.bf16.mxu0 0
    %1657 = vmatpush1.bf16.msra.mxu0 0
    %1658 = vmatprep.mubr.bf16.mxu0 0
    %1659 = vmatmul.mubr.bf16.gmra.mrb[0].mxu0 %v1584
    %v1660 = vpop.f32.mrb[0].mxu0
    %v1661 = vadd.f32 0.0, %v1660
    %v1662 = vpop.f32.mrb[0].mxu0
    %v1663 = vadd.f32 0.0, %v1662
    %v1664 = vpop.f32.mrb[0].mxu0
    %v1665 = vpop.f32.mrb[0].mxu0
    %1666 = vdwg.mxu0
    %1667 = vmatprep.subr.bf16.mxu0 %v680
    %1668 = vmatpush1.bf16.msra.mxu0 %v679
    %1669 = vmatprep.subr.bf16.mxu0 %v684
    %1670 = vmatpush1.bf16.msra.mxu0 %v683
    %1671 = vmatprep.subr.bf16.mxu0 %v688
    %1672 = vmatpush1.bf16.msra.mxu0 %v687
    %1673 = vmatprep.subr.bf16.mxu0 %v692
    %1674 = vmatpush1.bf16.msra.mxu0 %v691
    %1675 = vmatprep.subr.bf16.mxu0 %v696
    %1676 = vmatpush1.bf16.msra.mxu0 %v695
    %1677 = vmatprep.subr.bf16.mxu0 %v700
    %1678 = vmatpush1.bf16.msra.mxu0 %v699
    %1679 = vmatprep.subr.bf16.mxu0 %v704
    %1680 = vmatpush1.bf16.msra.mxu0 %v703
    %1681 = vmatprep.subr.bf16.mxu0 %v708
    %1682 = vmatpush1.bf16.msra.mxu0 %v707
    %1683 = vmatprep.subr.bf16.mxu0 0
    %1684 = vmatpush1.bf16.msra.mxu0 0
    %1685 = vmatprep.subr.bf16.mxu0 0
    %1686 = vmatpush1.bf16.msra.mxu0 0
    %1687 = vmatprep.subr.bf16.mxu0 0
    %1688 = vmatpush1.bf16.msra.mxu0 0
    %1689 = vmatprep.subr.bf16.mxu0 0
    %1690 = vmatpush1.bf16.msra.mxu0 0
    %1691 = vmatprep.subr.bf16.mxu0 0
    %1692 = vmatpush1.bf16.msra.mxu0 0
    %1693 = vmatprep.subr.bf16.mxu0 0
    %1694 = vmatpush1.bf16.msra.mxu0 0
    %1695 = vmatprep.subr.bf16.mxu0 0
    %1696 = vmatpush1.bf16.msra.mxu0 0
    %1697 = vmatprep.subr.bf16.mxu0 0
    %1698 = vmatpush1.bf16.msra.mxu0 0
    %1699 = vmatprep.mubr.bf16.mxu0 0
    %1700 = vmatmul.mubr.bf16.gmra.mrb[0].mxu0 %v1583
    %v1701 = vpop.f32.mrb[0].mxu0
    %v1702 = vadd.f32 %v1620, %v1701
    %v1703 = vpop.f32.mrb[0].mxu0
    %v1704 = vadd.f32 %v1622, %v1703
    %v1705 = vpop.f32.mrb[0].mxu0
    %v1706 = vpop.f32.mrb[0].mxu0
    %1707 = vdwg.mxu0
    %1708 = vmatprep.subr.bf16.mxu0 %v682
    %1709 = vmatpush1.bf16.msra.mxu0 %v681
    %1710 = vmatprep.subr.bf16.mxu0 %v686
    %1711 = vmatpush1.bf16.msra.mxu0 %v685
    %1712 = vmatprep.subr.bf16.mxu0 %v690
    %1713 = vmatpush1.bf16.msra.mxu0 %v689
    %1714 = vmatprep.subr.bf16.mxu0 %v694
    %1715 = vmatpush1.bf16.msra.mxu0 %v693
    %1716 = vmatprep.subr.bf16.mxu0 %v698
    %1717 = vmatpush1.bf16.msra.mxu0 %v697
    %1718 = vmatprep.subr.bf16.mxu0 %v702
    %1719 = vmatpush1.bf16.msra.mxu0 %v701
    %1720 = vmatprep.subr.bf16.mxu0 %v706
    %1721 = vmatpush1.bf16.msra.mxu0 %v705
    %1722 = vmatprep.subr.bf16.mxu0 %v710
    %1723 = vmatpush1.bf16.msra.mxu0 %v709
    %1724 = vmatprep.subr.bf16.mxu0 0
    %1725 = vmatpush1.bf16.msra.mxu0 0
    %1726 = vmatprep.subr.bf16.mxu0 0
    %1727 = vmatpush1.bf16.msra.mxu0 0
    %1728 = vmatprep.subr.bf16.mxu0 0
    %1729 = vmatpush1.bf16.msra.mxu0 0
    %1730 = vmatprep.subr.bf16.mxu0 0
    %1731 = vmatpush1.bf16.msra.mxu0 0
    %1732 = vmatprep.subr.bf16.mxu0 0
    %1733 = vmatpush1.bf16.msra.mxu0 0
    %1734 = vmatprep.subr.bf16.mxu0 0
    %1735 = vmatpush1.bf16.msra.mxu0 0
    %1736 = vmatprep.subr.bf16.mxu0 0
    %1737 = vmatpush1.bf16.msra.mxu0 0
    %1738 = vmatprep.subr.bf16.mxu0 0
    %1739 = vmatpush1.bf16.msra.mxu0 0
    %1740 = vmatprep.mubr.bf16.mxu0 0
    %1741 = vmatmul.mubr.bf16.gmra.mrb[0].mxu0 %v1583
    %v1742 = vpop.f32.mrb[0].mxu0
    %v1743 = vadd.f32 %v1661, %v1742
    %v1744 = vpop.f32.mrb[0].mxu0
    %v1745 = vadd.f32 %v1663, %v1744
    %v1746 = vpop.f32.mrb[0].mxu0
    %v1747 = vpop.f32.mrb[0].mxu0
    %1748 = vdwg.mxu0
    %v1749 = vadd.f32 %v1702, %v566
    %v1750 = vadd.f32 %v1704, %v570
    %v1751 = vadd.f32 %v1743, %v574
    %v1752 = vadd.f32 %v1745, %v578
    %v1753 = vxor.u32 %v1749, 2147483648
    %v1754 = vmul.f32 %v1753, 1.442695
    %v1755 = vpow.pop %v1754
    %v1756 = vadd.f32 %v1755, 1.0
    %v1757 = vrcp.pop %v1756
    %v1758 = vmul.f32 1.0, %v1757
    %v1759 = vxor.u32 %v1750, 2147483648
    %v1760 = vmul.f32 %v1759, 1.442695
    %v1761 = vpow.pop %v1760
    %v1762 = vadd.f32 %v1761, 1.0
    %v1763 = vrcp.pop %v1762
    %v1764 = vmul.f32 1.0, %v1763
    %v1765 = vtanh.pop %v1751
    %v1766 = vxor.u32 %v1752, 2147483648
    %v1767 = vmul.f32 %v1766, 1.442695
    %v1768 = vpow.pop %v1767
    %v1769 = vadd.f32 %v1768, 1.0
    %v1770 = vrcp.pop %v1769
    %v1771 = vmul.f32 1.0, %v1770
    %v1772 = vmul.f32 %v1764, %v1470
    %v1773 = vmul.f32 %v1758, %v1765
    %v1774 = vadd.f32 %v1772, %v1773
    %v1775 = vtanh.pop %v1774
    %v1776 = vmul.f32 %v1771, %v1775
    %1777 = vmatprep.subr.bf16.mxu0 %v946
    %1778 = vmatpush1.bf16.msra.mxu0 %v945
    %1779 = vmatprep.subr.bf16.mxu0 %v950
    %1780 = vmatpush1.bf16.msra.mxu0 %v949
    %1781 = vmatprep.subr.bf16.mxu0 %v954
    %1782 = vmatpush1.bf16.msra.mxu0 %v953
    %1783 = vmatprep.subr.bf16.mxu0 %v958
    %1784 = vmatpush1.bf16.msra.mxu0 %v957
    %1785 = vmatprep.subr.bf16.mxu0 %v962
    %1786 = vmatpush1.bf16.msra.mxu0 %v961
    %1787 = vmatprep.subr.bf16.mxu0 %v966
    %1788 = vmatpush1.bf16.msra.mxu0 %v965
    %1789 = vmatprep.subr.bf16.mxu0 %v970
    %1790 = vmatpush1.bf16.msra.mxu0 %v969
    %1791 = vmatprep.subr.bf16.mxu0 %v974
    %1792 = vmatpush1.bf16.msra.mxu0 %v973
    %1793 = vmatprep.subr.bf16.mxu0 0
    %1794 = vmatpush1.bf16.msra.mxu0 0
    %1795 = vmatprep.subr.bf16.mxu0 0
    %1796 = vmatpush1.bf16.msra.mxu0 0
    %1797 = vmatprep.subr.bf16.mxu0 0
    %1798 = vmatpush1.bf16.msra.mxu0 0
    %1799 = vmatprep.subr.bf16.mxu0 0
    %1800 = vmatpush1.bf16.msra.mxu0 0
    %1801 = vmatprep.subr.bf16.mxu0 0
    %1802 = vmatpush1.bf16.msra.mxu0 0
    %1803 = vmatprep.subr.bf16.mxu0 0
    %1804 = vmatpush1.bf16.msra.mxu0 0
    %1805 = vmatprep.subr.bf16.mxu0 0
    %1806 = vmatpush1.bf16.msra.mxu0 0
    %1807 = vmatprep.subr.bf16.mxu0 0
    %1808 = vmatpush1.bf16.msra.mxu0 0
    %1809 = vmatprep.mubr.bf16.mxu0 0
    %1810 = vmatmul.mubr.bf16.gmra.mrb[0].mxu0 %v1583
    %v1811 = vpop.f32.mrb[0].mxu0
    %v1812 = vadd.f32 0.0, %v1811
    %v1813 = vpop.f32.mrb[0].mxu0
    %v1814 = vadd.f32 0.0, %v1813
    %v1815 = vpop.f32.mrb[0].mxu0
    %v1816 = vpop.f32.mrb[0].mxu0
    %1817 = vdwg.mxu0
    %1818 = vmatprep.subr.bf16.mxu0 %v948
    %1819 = vmatpush1.bf16.msra.mxu0 %v947
    %1820 = vmatprep.subr.bf16.mxu0 %v952
    %1821 = vmatpush1.bf16.msra.mxu0 %v951
    %1822 = vmatprep.subr.bf16.mxu0 %v956
    %1823 = vmatpush1.bf16.msra.mxu0 %v955
    %1824 = vmatprep.subr.bf16.mxu0 %v960
    %1825 = vmatpush1.bf16.msra.mxu0 %v959
    %1826 = vmatprep.subr.bf16.mxu0 %v964
    %1827 = vmatpush1.bf16.msra.mxu0 %v963
    %1828 = vmatprep.subr.bf16.mxu0 %v968
    %1829 = vmatpush1.bf16.msra.mxu0 %v967
    %1830 = vmatprep.subr.bf16.mxu0 %v972
    %1831 = vmatpush1.bf16.msra.mxu0 %v971
    %1832 = vmatprep.subr.bf16.mxu0 %v976
    %1833 = vmatpush1.bf16.msra.mxu0 %v975
    %1834 = vmatprep.subr.bf16.mxu0 0
    %1835 = vmatpush1.bf16.msra.mxu0 0
    %1836 = vmatprep.subr.bf16.mxu0 0
    %1837 = vmatpush1.bf16.msra.mxu0 0
    %1838 = vmatprep.subr.bf16.mxu0 0
    %1839 = vmatpush1.bf16.msra.mxu0 0
    %1840 = vmatprep.subr.bf16.mxu0 0
    %1841 = vmatpush1.bf16.msra.mxu0 0
    %1842 = vmatprep.subr.bf16.mxu0 0
    %1843 = vmatpush1.bf16.msra.mxu0 0
    %1844 = vmatprep.subr.bf16.mxu0 0
    %1845 = vmatpush1.bf16.msra.mxu0 0
    %1846 = vmatprep.subr.bf16.mxu0 0
    %1847 = vmatpush1.bf16.msra.mxu0 0
    %1848 = vmatprep.subr.bf16.mxu0 0
    %1849 = vmatpush1.bf16.msra.mxu0 0
    %1850 = vmatprep.mubr.bf16.mxu0 0
    %1851 = vmatmul.mubr.bf16.gmra.mrb[0].mxu0 %v1583
    %v1852 = vpop.f32.mrb[0].mxu0
    %v1853 = vadd.f32 0.0, %v1852
    %v1854 = vpop.f32.mrb[0].mxu0
    %v1855 = vadd.f32 0.0, %v1854
    %v1856 = vpop.f32.mrb[0].mxu0
    %v1857 = vpop.f32.mrb[0].mxu0
    %1858 = vdwg.mxu0
    %v1859 = vadd.f32 %v396, %v1812
    %v1860 = vadd.f32 %v398, %v1814
    %v1861 = vadd.f32 %v509, %v1853
    %v1862 = vadd.f32 %v511, %v1855
    %v1863 = vxor.u32 %v1859, 2147483648
    %v1864 = vmul.f32 %v1863, 1.442695
    %v1865 = vpow.pop %v1864
    %v1866 = vadd.f32 %v1865, 1.0
    %v1867 = vrcp.pop %v1866
    %v1868 = vmul.f32 1.0, %v1867
    %v1869 = vxor.u32 %v1860, 2147483648
    %v1870 = vmul.f32 %v1869, 1.442695
    %v1871 = vpow.pop %v1870
    %v1872 = vadd.f32 %v1871, 1.0
    %v1873 = vrcp.pop %v1872
    %v1874 = vmul.f32 1.0, %v1873
    %v1875 = vtanh.pop %v1861
    %v1876 = vxor.u32 %v1862, 2147483648
    %v1877 = vmul.f32 %v1876, 1.442695
    %v1878 = vpow.pop %v1877
    %v1879 = vadd.f32 %v1878, 1.0
    %v1880 = vrcp.pop %v1879
    %v1881 = vmul.f32 1.0, %v1880
    %v1882 = vmul.f32 %v1874, %v1580
    %v1883 = vmul.f32 %v1868, %v1875
    %v1884 = vadd.f32 %v1882, %v1883
    %v1885 = vtanh.pop %v1884
    %v1886 = vmul.f32 %v1881, %v1885
    %v1887 = vpack.c.bf16 %v1886, %v1886
    %v1888 = vpack.c.bf16 %v1776, %v1776
    %1889 = vmatprep.subr.bf16.mxu0 %v1218
    %1890 = vmatpush1.bf16.msra.mxu0 %v1217
    %1891 = vmatprep.subr.bf16.mxu0 %v1222
    %1892 = vmatpush1.bf16.msra.mxu0 %v1221
    %1893 = vmatprep.subr.bf16.mxu0 %v1226
    %1894 = vmatpush1.bf16.msra.mxu0 %v1225
    %1895 = vmatprep.subr.bf16.mxu0 %v1230
    %1896 = vmatpush1.bf16.msra.mxu0 %v1229
    %1897 = vmatprep.subr.bf16.mxu0 %v1234
    %1898 = vmatpush1.bf16.msra.mxu0 %v1233
    %1899 = vmatprep.subr.bf16.mxu0 %v1238
    %1900 = vmatpush1.bf16.msra.mxu0 %v1237
    %1901 = vmatprep.subr.bf16.mxu0 %v1242
    %1902 = vmatpush1.bf16.msra.mxu0 %v1241
    %1903 = vmatprep.subr.bf16.mxu0 %v1246
    %1904 = vmatpush1.bf16.msra.mxu0 %v1245
    %1905 = vmatprep.subr.bf16.mxu0 0
    %1906 = vmatpush1.bf16.msra.mxu0 0
    %1907 = vmatprep.subr.bf16.mxu0 0
    %1908 = vmatpush1.bf16.msra.mxu0 0
    %1909 = vmatprep.subr.bf16.mxu0 0
    %1910 = vmatpush1.bf16.msra.mxu0 0
    %1911 = vmatprep.subr.bf16.mxu0 0
    %1912 = vmatpush1.bf16.msra.mxu0 0
    %1913 = vmatprep.subr.bf16.mxu0 0
    %1914 = vmatpush1.bf16.msra.mxu0 0
    %1915 = vmatprep.subr.bf16.mxu0 0
    %1916 = vmatpush1.bf16.msra.mxu0 0
    %1917 = vmatprep.subr.bf16.mxu0 0
    %1918 = vmatpush1.bf16.msra.mxu0 0
    %1919 = vmatprep.subr.bf16.mxu0 0
    %1920 = vmatpush1.bf16.msra.mxu0 0
    %1921 = vmatprep.mubr.bf16.mxu0 0
    %1922 = vmatmul.mubr.bf16.gmra.mrb[0].mxu0 %v1888
    %v1923 = vpop.f32.mrb[0].mxu0
    %v1924 = vadd.f32 0.0, %v1923
    %v1925 = vpop.f32.mrb[0].mxu0
    %v1926 = vadd.f32 0.0, %v1925
    %v1927 = vpop.f32.mrb[0].mxu0
    %v1928 = vpop.f32.mrb[0].mxu0
    %1929 = vdwg.mxu0
    %1930 = vmatprep.subr.bf16.mxu0 %v1220
    %1931 = vmatpush1.bf16.msra.mxu0 %v1219
    %1932 = vmatprep.subr.bf16.mxu0 %v1224
    %1933 = vmatpush1.bf16.msra.mxu0 %v1223
    %1934 = vmatprep.subr.bf16.mxu0 %v1228
    %1935 = vmatpush1.bf16.msra.mxu0 %v1227
    %1936 = vmatprep.subr.bf16.mxu0 %v1232
    %1937 = vmatpush1.bf16.msra.mxu0 %v1231
    %1938 = vmatprep.subr.bf16.mxu0 %v1236
    %1939 = vmatpush1.bf16.msra.mxu0 %v1235
    %1940 = vmatprep.subr.bf16.mxu0 %v1240
    %1941 = vmatpush1.bf16.msra.mxu0 %v1239
    %1942 = vmatprep.subr.bf16.mxu0 %v1244
    %1943 = vmatpush1.bf16.msra.mxu0 %v1243
    %1944 = vmatprep.subr.bf16.mxu0 %v1248
    %1945 = vmatpush1.bf16.msra.mxu0 %v1247
    %1946 = vmatprep.subr.bf16.mxu0 0
    %1947 = vmatpush1.bf16.msra.mxu0 0
    %1948 = vmatprep.subr.bf16.mxu0 0
    %1949 = vmatpush1.bf16.msra.mxu0 0
    %1950 = vmatprep.subr.bf16.mxu0 0
    %1951 = vmatpush1.bf16.msra.mxu0 0
    %1952 = vmatprep.subr.bf16.mxu0 0
    %1953 = vmatpush1.bf16.msra.mxu0 0
    %1954 = vmatprep.subr.bf16.mxu0 0
    %1955 = vmatpush1.bf16.msra.mxu0 0
    %1956 = vmatprep.subr.bf16.mxu0 0
    %1957 = vmatpush1.bf16.msra.mxu0 0
    %1958 = vmatprep.subr.bf16.mxu0 0
    %1959 = vmatpush1.bf16.msra.mxu0 0
    %1960 = vmatprep.subr.bf16.mxu0 0
    %1961 = vmatpush1.bf16.msra.mxu0 0
    %1962 = vmatprep.mubr.bf16.mxu0 0
    %1963 = vmatmul.mubr.bf16.gmra.mrb[0].mxu0 %v1888
    %v1964 = vpop.f32.mrb[0].mxu0
    %v1965 = vadd.f32 0.0, %v1964
    %v1966 = vpop.f32.mrb[0].mxu0
    %v1967 = vadd.f32 0.0, %v1966
    %v1968 = vpop.f32.mrb[0].mxu0
    %v1969 = vpop.f32.mrb[0].mxu0
    %1970 = vdwg.mxu0
    %1971 = vmatprep.subr.bf16.mxu0 %v680
    %1972 = vmatpush1.bf16.msra.mxu0 %v679
    %1973 = vmatprep.subr.bf16.mxu0 %v684
    %1974 = vmatpush1.bf16.msra.mxu0 %v683
    %1975 = vmatprep.subr.bf16.mxu0 %v688
    %1976 = vmatpush1.bf16.msra.mxu0 %v687
    %1977 = vmatprep.subr.bf16.mxu0 %v692
    %1978 = vmatpush1.bf16.msra.mxu0 %v691
    %1979 = vmatprep.subr.bf16.mxu0 %v696
    %1980 = vmatpush1.bf16.msra.mxu0 %v695
    %1981 = vmatprep.subr.bf16.mxu0 %v700
    %1982 = vmatpush1.bf16.msra.mxu0 %v699
    %1983 = vmatprep.subr.bf16.mxu0 %v704
    %1984 = vmatpush1.bf16.msra.mxu0 %v703
    %1985 = vmatprep.subr.bf16.mxu0 %v708
    %1986 = vmatpush1.bf16.msra.mxu0 %v707
    %1987 = vmatprep.subr.bf16.mxu0 0
    %1988 = vmatpush1.bf16.msra.mxu0 0
    %1989 = vmatprep.subr.bf16.mxu0 0
    %1990 = vmatpush1.bf16.msra.mxu0 0
    %1991 = vmatprep.subr.bf16.mxu0 0
    %1992 = vmatpush1.bf16.msra.mxu0 0
    %1993 = vmatprep.subr.bf16.mxu0 0
    %1994 = vmatpush1.bf16.msra.mxu0 0
    %1995 = vmatprep.subr.bf16.mxu0 0
    %1996 = vmatpush1.bf16.msra.mxu0 0
    %1997 = vmatprep.subr.bf16.mxu0 0
    %1998 = vmatpush1.bf16.msra.mxu0 0
    %1999 = vmatprep.subr.bf16.mxu0 0
    %2000 = vmatpush1.bf16.msra.mxu0 0
    %2001 = vmatprep.subr.bf16.mxu0 0
    %2002 = vmatpush1.bf16.msra.mxu0 0
    %2003 = vmatprep.mubr.bf16.mxu0 0
    %2004 = vmatmul.mubr.bf16.gmra.mrb[0].mxu0 %v1887
    %v2005 = vpop.f32.mrb[0].mxu0
    %v2006 = vadd.f32 %v1924, %v2005
    %v2007 = vpop.f32.mrb[0].mxu0
    %v2008 = vadd.f32 %v1926, %v2007
    %v2009 = vpop.f32.mrb[0].mxu0
    %v2010 = vpop.f32.mrb[0].mxu0
    %2011 = vdwg.mxu0
    %2012 = vmatprep.subr.bf16.mxu0 %v682
    %2013 = vmatpush1.bf16.msra.mxu0 %v681
    %2014 = vmatprep.subr.bf16.mxu0 %v686
    %2015 = vmatpush1.bf16.msra.mxu0 %v685
    %2016 = vmatprep.subr.bf16.mxu0 %v690
    %2017 = vmatpush1.bf16.msra.mxu0 %v689
    %2018 = vmatprep.subr.bf16.mxu0 %v694
    %2019 = vmatpush1.bf16.msra.mxu0 %v693
    %2020 = vmatprep.subr.bf16.mxu0 %v698
    %2021 = vmatpush1.bf16.msra.mxu0 %v697
    %2022 = vmatprep.subr.bf16.mxu0 %v702
    %2023 = vmatpush1.bf16.msra.mxu0 %v701
    %2024 = vmatprep.subr.bf16.mxu0 %v706
    %2025 = vmatpush1.bf16.msra.mxu0 %v705
    %2026 = vmatprep.subr.bf16.mxu0 %v710
    %2027 = vmatpush1.bf16.msra.mxu0 %v709
    %2028 = vmatprep.subr.bf16.mxu0 0
    %2029 = vmatpush1.bf16.msra.mxu0 0
    %2030 = vmatprep.subr.bf16.mxu0 0
    %2031 = vmatpush1.bf16.msra.mxu0 0
    %2032 = vmatprep.subr.bf16.mxu0 0
    %2033 = vmatpush1.bf16.msra.mxu0 0
    %2034 = vmatprep.subr.bf16.mxu0 0
    %2035 = vmatpush1.bf16.msra.mxu0 0
    %2036 = vmatprep.subr.bf16.mxu0 0
    %2037 = vmatpush1.bf16.msra.mxu0 0
    %2038 = vmatprep.subr.bf16.mxu0 0
    %2039 = vmatpush1.bf16.msra.mxu0 0
    %2040 = vmatprep.subr.bf16.mxu0 0
    %2041 = vmatpush1.bf16.msra.mxu0 0
    %2042 = vmatprep.subr.bf16.mxu0 0
    %2043 = vmatpush1.bf16.msra.mxu0 0
    %2044 = vmatprep.mubr.bf16.mxu0 0
    %2045 = vmatmul.mubr.bf16.gmra.mrb[0].mxu0 %v1887
    %v2046 = vpop.f32.mrb[0].mxu0
    %v2047 = vadd.f32 %v1965, %v2046
    %v2048 = vpop.f32.mrb[0].mxu0
    %v2049 = vadd.f32 %v1967, %v2048
    %v2050 = vpop.f32.mrb[0].mxu0
    %v2051 = vpop.f32.mrb[0].mxu0
    %2052 = vdwg.mxu0
    %v2053 = vadd.f32 %v2006, %v566
    %v2054 = vadd.f32 %v2008, %v570
    %v2055 = vadd.f32 %v2047, %v574
    %v2056 = vadd.f32 %v2049, %v578
    %v2057 = vxor.u32 %v2053, 2147483648
    %v2058 = vmul.f32 %v2057, 1.442695
    %v2059 = vpow.pop %v2058
    %v2060 = vadd.f32 %v2059, 1.0
    %v2061 = vrcp.pop %v2060
    %v2062 = vmul.f32 1.0, %v2061
    %v2063 = vxor.u32 %v2054, 2147483648
    %v2064 = vmul.f32 %v2063, 1.442695
    %v2065 = vpow.pop %v2064
    %v2066 = vadd.f32 %v2065, 1.0
    %v2067 = vrcp.pop %v2066
    %v2068 = vmul.f32 1.0, %v2067
    %v2069 = vtanh.pop %v2055
    %v2070 = vxor.u32 %v2056, 2147483648
    %v2071 = vmul.f32 %v2070, 1.442695
    %v2072 = vpow.pop %v2071
    %v2073 = vadd.f32 %v2072, 1.0
    %v2074 = vrcp.pop %v2073
    %v2075 = vmul.f32 1.0, %v2074
    %v2076 = vmul.f32 %v2068, %v1774
    %v2077 = vmul.f32 %v2062, %v2069
    %v2078 = vadd.f32 %v2076, %v2077
    %v2079 = vtanh.pop %v2078
    %v2080 = vmul.f32 %v2075, %v2079
    %2081 = vmatprep.subr.bf16.mxu0 %v946
    %2082 = vmatpush1.bf16.msra.mxu0 %v945
    %2083 = vmatprep.subr.bf16.mxu0 %v950
    %2084 = vmatpush1.bf16.msra.mxu0 %v949
    %2085 = vmatprep.subr.bf16.mxu0 %v954
    %2086 = vmatpush1.bf16.msra.mxu0 %v953
    %2087 = vmatprep.subr.bf16.mxu0 %v958
    %2088 = vmatpush1.bf16.msra.mxu0 %v957
    %2089 = vmatprep.subr.bf16.mxu0 %v962
    %2090 = vmatpush1.bf16.msra.mxu0 %v961
    %2091 = vmatprep.subr.bf16.mxu0 %v966
    %2092 = vmatpush1.bf16.msra.mxu0 %v965
    %2093 = vmatprep.subr.bf16.mxu0 %v970
    %2094 = vmatpush1.bf16.msra.mxu0 %v969
    %2095 = vmatprep.subr.bf16.mxu0 %v974
    %2096 = vmatpush1.bf16.msra.mxu0 %v973
    %2097 = vmatprep.subr.bf16.mxu0 0
    %2098 = vmatpush1.bf16.msra.mxu0 0
    %2099 = vmatprep.subr.bf16.mxu0 0
    %2100 = vmatpush1.bf16.msra.mxu0 0
    %2101 = vmatprep.subr.bf16.mxu0 0
    %2102 = vmatpush1.bf16.msra.mxu0 0
    %2103 = vmatprep.subr.bf16.mxu0 0
    %2104 = vmatpush1.bf16.msra.mxu0 0
    %2105 = vmatprep.subr.bf16.mxu0 0
    %2106 = vmatpush1.bf16.msra.mxu0 0
    %2107 = vmatprep.subr.bf16.mxu0 0
    %2108 = vmatpush1.bf16.msra.mxu0 0
    %2109 = vmatprep.subr.bf16.mxu0 0
    %2110 = vmatpush1.bf16.msra.mxu0 0
    %2111 = vmatprep.subr.bf16.mxu0 0
    %2112 = vmatpush1.bf16.msra.mxu0 0
    %2113 = vmatprep.mubr.bf16.mxu0 0
    %2114 = vmatmul.mubr.bf16.gmra.mrb[0].mxu0 %v1887
    %v2115 = vpop.f32.mrb[0].mxu0
    %v2116 = vadd.f32 0.0, %v2115
    %v2117 = vpop.f32.mrb[0].mxu0
    %v2118 = vadd.f32 0.0, %v2117
    %v2119 = vpop.f32.mrb[0].mxu0
    %v2120 = vpop.f32.mrb[0].mxu0
    %2121 = vdwg.mxu0
    %2122 = vmatprep.subr.bf16.mxu0 %v948
    %2123 = vmatpush1.bf16.msra.mxu0 %v947
    %2124 = vmatprep.subr.bf16.mxu0 %v952
    %2125 = vmatpush1.bf16.msra.mxu0 %v951
    %2126 = vmatprep.subr.bf16.mxu0 %v956
    %2127 = vmatpush1.bf16.msra.mxu0 %v955
    %2128 = vmatprep.subr.bf16.mxu0 %v960
    %2129 = vmatpush1.bf16.msra.mxu0 %v959
    %2130 = vmatprep.subr.bf16.mxu0 %v964
    %2131 = vmatpush1.bf16.msra.mxu0 %v963
    %2132 = vmatprep.subr.bf16.mxu0 %v968
    %2133 = vmatpush1.bf16.msra.mxu0 %v967
    %2134 = vmatprep.subr.bf16.mxu0 %v972
    %2135 = vmatpush1.bf16.msra.mxu0 %v971
    %2136 = vmatprep.subr.bf16.mxu0 %v976
    %2137 = vmatpush1.bf16.msra.mxu0 %v975
    %2138 = vmatprep.subr.bf16.mxu0 0
    %2139 = vmatpush1.bf16.msra.mxu0 0
    %2140 = vmatprep.subr.bf16.mxu0 0
    %2141 = vmatpush1.bf16.msra.mxu0 0
    %2142 = vmatprep.subr.bf16.mxu0 0
    %2143 = vmatpush1.bf16.msra.mxu0 0
    %2144 = vmatprep.subr.bf16.mxu0 0
    %2145 = vmatpush1.bf16.msra.mxu0 0
    %2146 = vmatprep.subr.bf16.mxu0 0
    %2147 = vmatpush1.bf16.msra.mxu0 0
    %2148 = vmatprep.subr.bf16.mxu0 0
    %2149 = vmatpush1.bf16.msra.mxu0 0
    %2150 = vmatprep.subr.bf16.mxu0 0
    %2151 = vmatpush1.bf16.msra.mxu0 0
    %2152 = vmatprep.subr.bf16.mxu0 0
    %2153 = vmatpush1.bf16.msra.mxu0 0
    %2154 = vmatprep.mubr.bf16.mxu0 0
    %2155 = vmatmul.mubr.bf16.gmra.mrb[0].mxu0 %v1887
    %v2156 = vpop.f32.mrb[0].mxu0
    %v2157 = vadd.f32 0.0, %v2156
    %v2158 = vpop.f32.mrb[0].mxu0
    %v2159 = vadd.f32 0.0, %v2158
    %v2160 = vpop.f32.mrb[0].mxu0
    %v2161 = vpop.f32.mrb[0].mxu0
    %2162 = vdwg.mxu0
    %v2163 = vadd.f32 %v402, %v2116
    %v2164 = vadd.f32 %v404, %v2118
    %v2165 = vadd.f32 %v515, %v2157
    %v2166 = vadd.f32 %v517, %v2159
    %v2167 = vxor.u32 %v2163, 2147483648
    %v2168 = vmul.f32 %v2167, 1.442695
    %v2169 = vpow.pop %v2168
    %v2170 = vadd.f32 %v2169, 1.0
    %v2171 = vrcp.pop %v2170
    %v2172 = vmul.f32 1.0, %v2171
    %v2173 = vxor.u32 %v2164, 2147483648
    %v2174 = vmul.f32 %v2173, 1.442695
    %v2175 = vpow.pop %v2174
    %v2176 = vadd.f32 %v2175, 1.0
    %v2177 = vrcp.pop %v2176
    %v2178 = vmul.f32 1.0, %v2177
    %v2179 = vtanh.pop %v2165
    %v2180 = vxor.u32 %v2166, 2147483648
    %v2181 = vmul.f32 %v2180, 1.442695
    %v2182 = vpow.pop %v2181
    %v2183 = vadd.f32 %v2182, 1.0
    %v2184 = vrcp.pop %v2183
    %v2185 = vmul.f32 1.0, %v2184
    %v2186 = vmul.f32 %v2178, %v1884
    %v2187 = vmul.f32 %v2172, %v2179
    %v2188 = vadd.f32 %v2186, %v2187
    %v2189 = vtanh.pop %v2188
    %v2190 = vmul.f32 %v2185, %v2189
    %v2191 = vpack.c.bf16 %v2190, %v2190
    %v2192 = vpack.c.bf16 %v2080, %v2080
    %2193 = vmatprep.subr.bf16.mxu0 %v1218
    %2194 = vmatpush1.bf16.msra.mxu0 %v1217
    %2195 = vmatprep.subr.bf16.mxu0 %v1222
    %2196 = vmatpush1.bf16.msra.mxu0 %v1221
    %2197 = vmatprep.subr.bf16.mxu0 %v1226
    %2198 = vmatpush1.bf16.msra.mxu0 %v1225
    %2199 = vmatprep.subr.bf16.mxu0 %v1230
    %2200 = vmatpush1.bf16.msra.mxu0 %v1229
    %2201 = vmatprep.subr.bf16.mxu0 %v1234
    %2202 = vmatpush1.bf16.msra.mxu0 %v1233
    %2203 = vmatprep.subr.bf16.mxu0 %v1238
    %2204 = vmatpush1.bf16.msra.mxu0 %v1237
    %2205 = vmatprep.subr.bf16.mxu0 %v1242
    %2206 = vmatpush1.bf16.msra.mxu0 %v1241
    %2207 = vmatprep.subr.bf16.mxu0 %v1246
    %2208 = vmatpush1.bf16.msra.mxu0 %v1245
    %2209 = vmatprep.subr.bf16.mxu0 0
    %2210 = vmatpush1.bf16.msra.mxu0 0
    %2211 = vmatprep.subr.bf16.mxu0 0
    %2212 = vmatpush1.bf16.msra.mxu0 0
    %2213 = vmatprep.subr.bf16.mxu0 0
    %2214 = vmatpush1.bf16.msra.mxu0 0
    %2215 = vmatprep.subr.bf16.mxu0 0
    %2216 = vmatpush1.bf16.msra.mxu0 0
    %2217 = vmatprep.subr.bf16.mxu0 0
    %2218 = vmatpush1.bf16.msra.mxu0 0
    %2219 = vmatprep.subr.bf16.mxu0 0
    %2220 = vmatpush1.bf16.msra.mxu0 0
    %2221 = vmatprep.subr.bf16.mxu0 0
    %2222 = vmatpush1.bf16.msra.mxu0 0
    %2223 = vmatprep.subr.bf16.mxu0 0
    %2224 = vmatpush1.bf16.msra.mxu0 0
    %2225 = vmatprep.mubr.bf16.mxu0 0
    %2226 = vmatmul.mubr.bf16.gmra.mrb[0].mxu0 %v2192
    %v2227 = vpop.f32.mrb[0].mxu0
    %v2228 = vadd.f32 0.0, %v2227
    %v2229 = vpop.f32.mrb[0].mxu0
    %v2230 = vadd.f32 0.0, %v2229
    %v2231 = vpop.f32.mrb[0].mxu0
    %v2232 = vpop.f32.mrb[0].mxu0
    %2233 = vdwg.mxu0
    %2234 = vmatprep.subr.bf16.mxu0 %v1220
    %2235 = vmatpush1.bf16.msra.mxu0 %v1219
    %2236 = vmatprep.subr.bf16.mxu0 %v1224
    %2237 = vmatpush1.bf16.msra.mxu0 %v1223
    %2238 = vmatprep.subr.bf16.mxu0 %v1228
    %2239 = vmatpush1.bf16.msra.mxu0 %v1227
    %2240 = vmatprep.subr.bf16.mxu0 %v1232
    %2241 = vmatpush1.bf16.msra.mxu0 %v1231
    %2242 = vmatprep.subr.bf16.mxu0 %v1236
    %2243 = vmatpush1.bf16.msra.mxu0 %v1235
    %2244 = vmatprep.subr.bf16.mxu0 %v1240
    %2245 = vmatpush1.bf16.msra.mxu0 %v1239
    %2246 = vmatprep.subr.bf16.mxu0 %v1244
    %2247 = vmatpush1.bf16.msra.mxu0 %v1243
    %2248 = vmatprep.subr.bf16.mxu0 %v1248
    %2249 = vmatpush1.bf16.msra.mxu0 %v1247
    %2250 = vmatprep.subr.bf16.mxu0 0
    %2251 = vmatpush1.bf16.msra.mxu0 0
    %2252 = vmatprep.subr.bf16.mxu0 0
    %2253 = vmatpush1.bf16.msra.mxu0 0
    %2254 = vmatprep.subr.bf16.mxu0 0
    %2255 = vmatpush1.bf16.msra.mxu0 0
    %2256 = vmatprep.subr.bf16.mxu0 0
    %2257 = vmatpush1.bf16.msra.mxu0 0
    %2258 = vmatprep.subr.bf16.mxu0 0
    %2259 = vmatpush1.bf16.msra.mxu0 0
    %2260 = vmatprep.subr.bf16.mxu0 0
    %2261 = vmatpush1.bf16.msra.mxu0 0
    %2262 = vmatprep.subr.bf16.mxu0 0
    %2263 = vmatpush1.bf16.msra.mxu0 0
    %2264 = vmatprep.subr.bf16.mxu0 0
    %2265 = vmatpush1.bf16.msra.mxu0 0
    %2266 = vmatprep.mubr.bf16.mxu0 0
    %2267 = vmatmul.mubr.bf16.gmra.mrb[0].mxu0 %v2192
    %v2268 = vpop.f32.mrb[0].mxu0
    %v2269 = vadd.f32 0.0, %v2268
    %v2270 = vpop.f32.mrb[0].mxu0
    %v2271 = vadd.f32 0.0, %v2270
    %v2272 = vpop.f32.mrb[0].mxu0
    %v2273 = vpop.f32.mrb[0].mxu0
    %2274 = vdwg.mxu0
    %2275 = vmatprep.subr.bf16.mxu0 %v680
    %2276 = vmatpush1.bf16.msra.mxu0 %v679
    %2277 = vmatprep.subr.bf16.mxu0 %v684
    %2278 = vmatpush1.bf16.msra.mxu0 %v683
    %2279 = vmatprep.subr.bf16.mxu0 %v688
    %2280 = vmatpush1.bf16.msra.mxu0 %v687
    %2281 = vmatprep.subr.bf16.mxu0 %v692
    %2282 = vmatpush1.bf16.msra.mxu0 %v691
    %2283 = vmatprep.subr.bf16.mxu0 %v696
    %2284 = vmatpush1.bf16.msra.mxu0 %v695
    %2285 = vmatprep.subr.bf16.mxu0 %v700
    %2286 = vmatpush1.bf16.msra.mxu0 %v699
    %2287 = vmatprep.subr.bf16.mxu0 %v704
    %2288 = vmatpush1.bf16.msra.mxu0 %v703
    %2289 = vmatprep.subr.bf16.mxu0 %v708
    %2290 = vmatpush1.bf16.msra.mxu0 %v707
    %2291 = vmatprep.subr.bf16.mxu0 0
    %2292 = vmatpush1.bf16.msra.mxu0 0
    %2293 = vmatprep.subr.bf16.mxu0 0
    %2294 = vmatpush1.bf16.msra.mxu0 0
    %2295 = vmatprep.subr.bf16.mxu0 0
    %2296 = vmatpush1.bf16.msra.mxu0 0
    %2297 = vmatprep.subr.bf16.mxu0 0
    %2298 = vmatpush1.bf16.msra.mxu0 0
    %2299 = vmatprep.subr.bf16.mxu0 0
    %2300 = vmatpush1.bf16.msra.mxu0 0
    %2301 = vmatprep.subr.bf16.mxu0 0
    %2302 = vmatpush1.bf16.msra.mxu0 0
    %2303 = vmatprep.subr.bf16.mxu0 0
    %2304 = vmatpush1.bf16.msra.mxu0 0
    %2305 = vmatprep.subr.bf16.mxu0 0
    %2306 = vmatpush1.bf16.msra.mxu0 0
    %2307 = vmatprep.mubr.bf16.mxu0 0
    %2308 = vmatmul.mubr.bf16.gmra.mrb[0].mxu0 %v2191
    %v2309 = vpop.f32.mrb[0].mxu0
    %v2310 = vadd.f32 %v2228, %v2309
    %v2311 = vpop.f32.mrb[0].mxu0
    %v2312 = vadd.f32 %v2230, %v2311
    %v2313 = vpop.f32.mrb[0].mxu0
    %v2314 = vpop.f32.mrb[0].mxu0
    %2315 = vdwg.mxu0
    %2316 = vmatprep.subr.bf16.mxu0 %v682
    %2317 = vmatpush1.bf16.msra.mxu0 %v681
    %2318 = vmatprep.subr.bf16.mxu0 %v686
    %2319 = vmatpush1.bf16.msra.mxu0 %v685
    %2320 = vmatprep.subr.bf16.mxu0 %v690
    %2321 = vmatpush1.bf16.msra.mxu0 %v689
    %2322 = vmatprep.subr.bf16.mxu0 %v694
    %2323 = vmatpush1.bf16.msra.mxu0 %v693
    %2324 = vmatprep.subr.bf16.mxu0 %v698
    %2325 = vmatpush1.bf16.msra.mxu0 %v697
    %2326 = vmatprep.subr.bf16.mxu0 %v702
    %2327 = vmatpush1.bf16.msra.mxu0 %v701
    %2328 = vmatprep.subr.bf16.mxu0 %v706
    %2329 = vmatpush1.bf16.msra.mxu0 %v705
    %2330 = vmatprep.subr.bf16.mxu0 %v710
    %2331 = vmatpush1.bf16.msra.mxu0 %v709
    %2332 = vmatprep.subr.bf16.mxu0 0
    %2333 = vmatpush1.bf16.msra.mxu0 0
    %2334 = vmatprep.subr.bf16.mxu0 0
    %2335 = vmatpush1.bf16.msra.mxu0 0
    %2336 = vmatprep.subr.bf16.mxu0 0
    %2337 = vmatpush1.bf16.msra.mxu0 0
    %2338 = vmatprep.subr.bf16.mxu0 0
    %2339 = vmatpush1.bf16.msra.mxu0 0
    %2340 = vmatprep.subr.bf16.mxu0 0
    %2341 = vmatpush1.bf16.msra.mxu0 0
    %2342 = vmatprep.subr.bf16.mxu0 0
    %2343 = vmatpush1.bf16.msra.mxu0 0
    %2344 = vmatprep.subr.bf16.mxu0 0
    %2345 = vmatpush1.bf16.msra.mxu0 0
    %2346 = vmatprep.subr.bf16.mxu0 0
    %2347 = vmatpush1.bf16.msra.mxu0 0
    %2348 = vmatprep.mubr.bf16.mxu0 0
    %2349 = vmatmul.mubr.bf16.gmra.mrb[0].mxu0 %v2191
    %v2350 = vpop.f32.mrb[0].mxu0
    %v2351 = vadd.f32 %v2269, %v2350
    %v2352 = vpop.f32.mrb[0].mxu0
    %v2353 = vadd.f32 %v2271, %v2352
    %v2354 = vpop.f32.mrb[0].mxu0
    %v2355 = vpop.f32.mrb[0].mxu0
    %2356 = vdwg.mxu0
    %v2357 = vadd.f32 %v2310, %v566
    %v2358 = vadd.f32 %v2312, %v570
    %v2359 = vadd.f32 %v2351, %v574
    %v2360 = vadd.f32 %v2353, %v578
    %v2361 = vxor.u32 %v2357, 2147483648
    %v2362 = vmul.f32 %v2361, 1.442695
    %v2363 = vpow.pop %v2362
    %v2364 = vadd.f32 %v2363, 1.0
    %v2365 = vrcp.pop %v2364
    %v2366 = vmul.f32 1.0, %v2365
    %v2367 = vxor.u32 %v2358, 2147483648
    %v2368 = vmul.f32 %v2367, 1.442695
    %v2369 = vpow.pop %v2368
    %v2370 = vadd.f32 %v2369, 1.0
    %v2371 = vrcp.pop %v2370
    %v2372 = vmul.f32 1.0, %v2371
    %v2373 = vtanh.pop %v2359
    %v2374 = vxor.u32 %v2360, 2147483648
    %v2375 = vmul.f32 %v2374, 1.442695
    %v2376 = vpow.pop %v2375
    %v2377 = vadd.f32 %v2376, 1.0
    %v2378 = vrcp.pop %v2377
    %v2379 = vmul.f32 1.0, %v2378
    %v2380 = vmul.f32 %v2372, %v2078
    %v2381 = vmul.f32 %v2366, %v2373
    %v2382 = vadd.f32 %v2380, %v2381
    %v2383 = vtanh.pop %v2382
    %v2384 = vmul.f32 %v2379, %v2383
    %2385 = vmatprep.subr.bf16.mxu0 %v946
    %2386 = vmatpush1.bf16.msra.mxu0 %v945
    %2387 = vmatprep.subr.bf16.mxu0 %v950
    %2388 = vmatpush1.bf16.msra.mxu0 %v949
    %2389 = vmatprep.subr.bf16.mxu0 %v954
    %2390 = vmatpush1.bf16.msra.mxu0 %v953
    %2391 = vmatprep.subr.bf16.mxu0 %v958
    %2392 = vmatpush1.bf16.msra.mxu0 %v957
    %2393 = vmatprep.subr.bf16.mxu0 %v962
    %2394 = vmatpush1.bf16.msra.mxu0 %v961
    %2395 = vmatprep.subr.bf16.mxu0 %v966
    %2396 = vmatpush1.bf16.msra.mxu0 %v965
    %2397 = vmatprep.subr.bf16.mxu0 %v970
    %2398 = vmatpush1.bf16.msra.mxu0 %v969
    %2399 = vmatprep.subr.bf16.mxu0 %v974
    %2400 = vmatpush1.bf16.msra.mxu0 %v973
    %2401 = vmatprep.subr.bf16.mxu0 0
    %2402 = vmatpush1.bf16.msra.mxu0 0
    %2403 = vmatprep.subr.bf16.mxu0 0
    %2404 = vmatpush1.bf16.msra.mxu0 0
    %2405 = vmatprep.subr.bf16.mxu0 0
    %2406 = vmatpush1.bf16.msra.mxu0 0
    %2407 = vmatprep.subr.bf16.mxu0 0
    %2408 = vmatpush1.bf16.msra.mxu0 0
    %2409 = vmatprep.subr.bf16.mxu0 0
    %2410 = vmatpush1.bf16.msra.mxu0 0
    %2411 = vmatprep.subr.bf16.mxu0 0
    %2412 = vmatpush1.bf16.msra.mxu0 0
    %2413 = vmatprep.subr.bf16.mxu0 0
    %2414 = vmatpush1.bf16.msra.mxu0 0
    %2415 = vmatprep.subr.bf16.mxu0 0
    %2416 = vmatpush1.bf16.msra.mxu0 0
    %2417 = vmatprep.mubr.bf16.mxu0 0
    %2418 = vmatmul.mubr.bf16.gmra.mrb[0].mxu0 %v2191
    %v2419 = vpop.f32.mrb[0].mxu0
    %v2420 = vadd.f32 0.0, %v2419
    %v2421 = vpop.f32.mrb[0].mxu0
    %v2422 = vadd.f32 0.0, %v2421
    %v2423 = vpop.f32.mrb[0].mxu0
    %v2424 = vpop.f32.mrb[0].mxu0
    %2425 = vdwg.mxu0
    %2426 = vmatprep.subr.bf16.mxu0 %v948
    %2427 = vmatpush1.bf16.msra.mxu0 %v947
    %2428 = vmatprep.subr.bf16.mxu0 %v952
    %2429 = vmatpush1.bf16.msra.mxu0 %v951
    %2430 = vmatprep.subr.bf16.mxu0 %v956
    %2431 = vmatpush1.bf16.msra.mxu0 %v955
    %2432 = vmatprep.subr.bf16.mxu0 %v960
    %2433 = vmatpush1.bf16.msra.mxu0 %v959
    %2434 = vmatprep.subr.bf16.mxu0 %v964
    %2435 = vmatpush1.bf16.msra.mxu0 %v963
    %2436 = vmatprep.subr.bf16.mxu0 %v968
    %2437 = vmatpush1.bf16.msra.mxu0 %v967
    %2438 = vmatprep.subr.bf16.mxu0 %v972
    %2439 = vmatpush1.bf16.msra.mxu0 %v971
    %2440 = vmatprep.subr.bf16.mxu0 %v976
    %2441 = vmatpush1.bf16.msra.mxu0 %v975
    %2442 = vmatprep.subr.bf16.mxu0 0
    %2443 = vmatpush1.bf16.msra.mxu0 0
    %2444 = vmatprep.subr.bf16.mxu0 0
    %2445 = vmatpush1.bf16.msra.mxu0 0
    %2446 = vmatprep.subr.bf16.mxu0 0
    %2447 = vmatpush1.bf16.msra.mxu0 0
    %2448 = vmatprep.subr.bf16.mxu0 0
    %2449 = vmatpush1.bf16.msra.mxu0 0
    %2450 = vmatprep.subr.bf16.mxu0 0
    %2451 = vmatpush1.bf16.msra.mxu0 0
    %2452 = vmatprep.subr.bf16.mxu0 0
    %2453 = vmatpush1.bf16.msra.mxu0 0
    %2454 = vmatprep.subr.bf16.mxu0 0
    %2455 = vmatpush1.bf16.msra.mxu0 0
    %2456 = vmatprep.subr.bf16.mxu0 0
    %2457 = vmatpush1.bf16.msra.mxu0 0
    %2458 = vmatprep.mubr.bf16.mxu0 0
    %2459 = vmatmul.mubr.bf16.gmra.mrb[0].mxu0 %v2191
    %v2460 = vpop.f32.mrb[0].mxu0
    %v2461 = vadd.f32 0.0, %v2460
    %v2462 = vpop.f32.mrb[0].mxu0
    %v2463 = vadd.f32 0.0, %v2462
    %v2464 = vpop.f32.mrb[0].mxu0
    %v2465 = vpop.f32.mrb[0].mxu0
    %2466 = vdwg.mxu0
    %v2467 = vadd.f32 %v408, %v2420
    %v2468 = vadd.f32 %v410, %v2422
    %v2469 = vadd.f32 %v521, %v2461
    %v2470 = vadd.f32 %v523, %v2463
    %v2471 = vxor.u32 %v2467, 2147483648
    %v2472 = vmul.f32 %v2471, 1.442695
    %v2473 = vpow.pop %v2472
    %v2474 = vadd.f32 %v2473, 1.0
    %v2475 = vrcp.pop %v2474
    %v2476 = vmul.f32 1.0, %v2475
    %v2477 = vxor.u32 %v2468, 2147483648
    %v2478 = vmul.f32 %v2477, 1.442695
    %v2479 = vpow.pop %v2478
    %v2480 = vadd.f32 %v2479, 1.0
    %v2481 = vrcp.pop %v2480
    %v2482 = vmul.f32 1.0, %v2481
    %v2483 = vtanh.pop %v2469
    %v2484 = vxor.u32 %v2470, 2147483648
    %v2485 = vmul.f32 %v2484, 1.442695
    %v2486 = vpow.pop %v2485
    %v2487 = vadd.f32 %v2486, 1.0
    %v2488 = vrcp.pop %v2487
    %v2489 = vmul.f32 1.0, %v2488
    %v2490 = vmul.f32 %v2482, %v2188
    %v2491 = vmul.f32 %v2476, %v2483
    %v2492 = vadd.f32 %v2490, %v2491
    %v2493 = vtanh.pop %v2492
    %v2494 = vmul.f32 %v2489, %v2493
    %v2495 = vpack.c.bf16 %v2494, %v2494
    %v2496 = vpack.c.bf16 %v2384, %v2384
    %2497 = vmatprep.subr.bf16.mxu0 %v1218
    %2498 = vmatpush1.bf16.msra.mxu0 %v1217
    %2499 = vmatprep.subr.bf16.mxu0 %v1222
    %2500 = vmatpush1.bf16.msra.mxu0 %v1221
    %2501 = vmatprep.subr.bf16.mxu0 %v1226
    %2502 = vmatpush1.bf16.msra.mxu0 %v1225
    %2503 = vmatprep.subr.bf16.mxu0 %v1230
    %2504 = vmatpush1.bf16.msra.mxu0 %v1229
    %2505 = vmatprep.subr.bf16.mxu0 %v1234
    %2506 = vmatpush1.bf16.msra.mxu0 %v1233
    %2507 = vmatprep.subr.bf16.mxu0 %v1238
    %2508 = vmatpush1.bf16.msra.mxu0 %v1237
    %2509 = vmatprep.subr.bf16.mxu0 %v1242
    %2510 = vmatpush1.bf16.msra.mxu0 %v1241
    %2511 = vmatprep.subr.bf16.mxu0 %v1246
    %2512 = vmatpush1.bf16.msra.mxu0 %v1245
    %2513 = vmatprep.subr.bf16.mxu0 0
    %2514 = vmatpush1.bf16.msra.mxu0 0
    %2515 = vmatprep.subr.bf16.mxu0 0
    %2516 = vmatpush1.bf16.msra.mxu0 0
    %2517 = vmatprep.subr.bf16.mxu0 0
    %2518 = vmatpush1.bf16.msra.mxu0 0
    %2519 = vmatprep.subr.bf16.mxu0 0
    %2520 = vmatpush1.bf16.msra.mxu0 0
    %2521 = vmatprep.subr.bf16.mxu0 0
    %2522 = vmatpush1.bf16.msra.mxu0 0
    %2523 = vmatprep.subr.bf16.mxu0 0
    %2524 = vmatpush1.bf16.msra.mxu0 0
    %2525 = vmatprep.subr.bf16.mxu0 0
    %2526 = vmatpush1.bf16.msra.mxu0 0
    %2527 = vmatprep.subr.bf16.mxu0 0
    %2528 = vmatpush1.bf16.msra.mxu0 0
    %2529 = vmatprep.mubr.bf16.mxu0 0
    %2530 = vmatmul.mubr.bf16.gmra.mrb[0].mxu0 %v2496
    %v2531 = vpop.f32.mrb[0].mxu0
    %v2532 = vadd.f32 0.0, %v2531
    %v2533 = vpop.f32.mrb[0].mxu0
    %v2534 = vadd.f32 0.0, %v2533
    %v2535 = vpop.f32.mrb[0].mxu0
    %v2536 = vpop.f32.mrb[0].mxu0
    %2537 = vdwg.mxu0
    %2538 = vmatprep.subr.bf16.mxu0 %v1220
    %2539 = vmatpush1.bf16.msra.mxu0 %v1219
    %2540 = vmatprep.subr.bf16.mxu0 %v1224
    %2541 = vmatpush1.bf16.msra.mxu0 %v1223
    %2542 = vmatprep.subr.bf16.mxu0 %v1228
    %2543 = vmatpush1.bf16.msra.mxu0 %v1227
    %2544 = vmatprep.subr.bf16.mxu0 %v1232
    %2545 = vmatpush1.bf16.msra.mxu0 %v1231
    %2546 = vmatprep.subr.bf16.mxu0 %v1236
    %2547 = vmatpush1.bf16.msra.mxu0 %v1235
    %2548 = vmatprep.subr.bf16.mxu0 %v1240
    %2549 = vmatpush1.bf16.msra.mxu0 %v1239
    %2550 = vmatprep.subr.bf16.mxu0 %v1244
    %2551 = vmatpush1.bf16.msra.mxu0 %v1243
    %2552 = vmatprep.subr.bf16.mxu0 %v1248
    %2553 = vmatpush1.bf16.msra.mxu0 %v1247
    %2554 = vmatprep.subr.bf16.mxu0 0
    %2555 = vmatpush1.bf16.msra.mxu0 0
    %2556 = vmatprep.subr.bf16.mxu0 0
    %2557 = vmatpush1.bf16.msra.mxu0 0
    %2558 = vmatprep.subr.bf16.mxu0 0
    %2559 = vmatpush1.bf16.msra.mxu0 0
    %2560 = vmatprep.subr.bf16.mxu0 0
    %2561 = vmatpush1.bf16.msra.mxu0 0
    %2562 = vmatprep.subr.bf16.mxu0 0
    %2563 = vmatpush1.bf16.msra.mxu0 0
    %2564 = vmatprep.subr.bf16.mxu0 0
    %2565 = vmatpush1.bf16.msra.mxu0 0
    %2566 = vmatprep.subr.bf16.mxu0 0
    %2567 = vmatpush1.bf16.msra.mxu0 0
    %2568 = vmatprep.subr.bf16.mxu0 0
    %2569 = vmatpush1.bf16.msra.mxu0 0
    %2570 = vmatprep.mubr.bf16.mxu0 0
    %2571 = vmatmul.mubr.bf16.gmra.mrb[0].mxu0 %v2496
    %v2572 = vpop.f32.mrb[0].mxu0
    %v2573 = vadd.f32 0.0, %v2572
    %v2574 = vpop.f32.mrb[0].mxu0
    %v2575 = vadd.f32 0.0, %v2574
    %v2576 = vpop.f32.mrb[0].mxu0
    %v2577 = vpop.f32.mrb[0].mxu0
    %2578 = vdwg.mxu0
    %2579 = vmatprep.subr.bf16.mxu0 %v680
    %2580 = vmatpush1.bf16.msra.mxu0 %v679
    %2581 = vmatprep.subr.bf16.mxu0 %v684
    %2582 = vmatpush1.bf16.msra.mxu0 %v683
    %2583 = vmatprep.subr.bf16.mxu0 %v688
    %2584 = vmatpush1.bf16.msra.mxu0 %v687
    %2585 = vmatprep.subr.bf16.mxu0 %v692
    %2586 = vmatpush1.bf16.msra.mxu0 %v691
    %2587 = vmatprep.subr.bf16.mxu0 %v696
    %2588 = vmatpush1.bf16.msra.mxu0 %v695
    %2589 = vmatprep.subr.bf16.mxu0 %v700
    %2590 = vmatpush1.bf16.msra.mxu0 %v699
    %2591 = vmatprep.subr.bf16.mxu0 %v704
    %2592 = vmatpush1.bf16.msra.mxu0 %v703
    %2593 = vmatprep.subr.bf16.mxu0 %v708
    %2594 = vmatpush1.bf16.msra.mxu0 %v707
    %2595 = vmatprep.subr.bf16.mxu0 0
    %2596 = vmatpush1.bf16.msra.mxu0 0
    %2597 = vmatprep.subr.bf16.mxu0 0
    %2598 = vmatpush1.bf16.msra.mxu0 0
    %2599 = vmatprep.subr.bf16.mxu0 0
    %2600 = vmatpush1.bf16.msra.mxu0 0
    %2601 = vmatprep.subr.bf16.mxu0 0
    %2602 = vmatpush1.bf16.msra.mxu0 0
    %2603 = vmatprep.subr.bf16.mxu0 0
    %2604 = vmatpush1.bf16.msra.mxu0 0
    %2605 = vmatprep.subr.bf16.mxu0 0
    %2606 = vmatpush1.bf16.msra.mxu0 0
    %2607 = vmatprep.subr.bf16.mxu0 0
    %2608 = vmatpush1.bf16.msra.mxu0 0
    %2609 = vmatprep.subr.bf16.mxu0 0
    %2610 = vmatpush1.bf16.msra.mxu0 0
    %2611 = vmatprep.mubr.bf16.mxu0 0
    %2612 = vmatmul.mubr.bf16.gmra.mrb[0].mxu0 %v2495
    %v2613 = vpop.f32.mrb[0].mxu0
    %v2614 = vadd.f32 %v2532, %v2613
    %v2615 = vpop.f32.mrb[0].mxu0
    %v2616 = vadd.f32 %v2534, %v2615
    %v2617 = vpop.f32.mrb[0].mxu0
    %v2618 = vpop.f32.mrb[0].mxu0
    %2619 = vdwg.mxu0
    %2620 = vmatprep.subr.bf16.mxu0 %v682
    %2621 = vmatpush1.bf16.msra.mxu0 %v681
    %2622 = vmatprep.subr.bf16.mxu0 %v686
    %2623 = vmatpush1.bf16.msra.mxu0 %v685
    %2624 = vmatprep.subr.bf16.mxu0 %v690
    %2625 = vmatpush1.bf16.msra.mxu0 %v689
    %2626 = vmatprep.subr.bf16.mxu0 %v694
    %2627 = vmatpush1.bf16.msra.mxu0 %v693
    %2628 = vmatprep.subr.bf16.mxu0 %v698
    %2629 = vmatpush1.bf16.msra.mxu0 %v697
    %2630 = vmatprep.subr.bf16.mxu0 %v702
    %2631 = vmatpush1.bf16.msra.mxu0 %v701
    %2632 = vmatprep.subr.bf16.mxu0 %v706
    %2633 = vmatpush1.bf16.msra.mxu0 %v705
    %2634 = vmatprep.subr.bf16.mxu0 %v710
    %2635 = vmatpush1.bf16.msra.mxu0 %v709
    %2636 = vmatprep.subr.bf16.mxu0 0
    %2637 = vmatpush1.bf16.msra.mxu0 0
    %2638 = vmatprep.subr.bf16.mxu0 0
    %2639 = vmatpush1.bf16.msra.mxu0 0
    %2640 = vmatprep.subr.bf16.mxu0 0
    %2641 = vmatpush1.bf16.msra.mxu0 0
    %2642 = vmatprep.subr.bf16.mxu0 0
    %2643 = vmatpush1.bf16.msra.mxu0 0
    %2644 = vmatprep.subr.bf16.mxu0 0
    %2645 = vmatpush1.bf16.msra.mxu0 0
    %2646 = vmatprep.subr.bf16.mxu0 0
    %2647 = vmatpush1.bf16.msra.mxu0 0
    %2648 = vmatprep.subr.bf16.mxu0 0
    %2649 = vmatpush1.bf16.msra.mxu0 0
    %2650 = vmatprep.subr.bf16.mxu0 0
    %2651 = vmatpush1.bf16.msra.mxu0 0
    %2652 = vmatprep.mubr.bf16.mxu0 0
    %2653 = vmatmul.mubr.bf16.gmra.mrb[0].mxu0 %v2495
    %v2654 = vpop.f32.mrb[0].mxu0
    %v2655 = vadd.f32 %v2573, %v2654
    %v2656 = vpop.f32.mrb[0].mxu0
    %v2657 = vadd.f32 %v2575, %v2656
    %v2658 = vpop.f32.mrb[0].mxu0
    %v2659 = vpop.f32.mrb[0].mxu0
    %2660 = vdwg.mxu0
    %v2661 = vadd.f32 %v2614, %v566
    %v2662 = vadd.f32 %v2616, %v570
    %v2663 = vadd.f32 %v2655, %v574
    %v2664 = vadd.f32 %v2657, %v578
    %v2665 = vxor.u32 %v2661, 2147483648
    %v2666 = vmul.f32 %v2665, 1.442695
    %v2667 = vpow.pop %v2666
    %v2668 = vadd.f32 %v2667, 1.0
    %v2669 = vrcp.pop %v2668
    %v2670 = vmul.f32 1.0, %v2669
    %v2671 = vxor.u32 %v2662, 2147483648
    %v2672 = vmul.f32 %v2671, 1.442695
    %v2673 = vpow.pop %v2672
    %v2674 = vadd.f32 %v2673, 1.0
    %v2675 = vrcp.pop %v2674
    %v2676 = vmul.f32 1.0, %v2675
    %v2677 = vtanh.pop %v2663
    %v2678 = vxor.u32 %v2664, 2147483648
    %v2679 = vmul.f32 %v2678, 1.442695
    %v2680 = vpow.pop %v2679
    %v2681 = vadd.f32 %v2680, 1.0
    %v2682 = vrcp.pop %v2681
    %v2683 = vmul.f32 1.0, %v2682
    %v2684 = vmul.f32 %v2676, %v2382
    %v2685 = vmul.f32 %v2670, %v2677
    %v2686 = vadd.f32 %v2684, %v2685
    %v2687 = vtanh.pop %v2686
    %v2688 = vmul.f32 %v2683, %v2687
    %2689 = vmatprep.subr.bf16.mxu0 %v946
    %2690 = vmatpush1.bf16.msra.mxu0 %v945
    %2691 = vmatprep.subr.bf16.mxu0 %v950
    %2692 = vmatpush1.bf16.msra.mxu0 %v949
    %2693 = vmatprep.subr.bf16.mxu0 %v954
    %2694 = vmatpush1.bf16.msra.mxu0 %v953
    %2695 = vmatprep.subr.bf16.mxu0 %v958
    %2696 = vmatpush1.bf16.msra.mxu0 %v957
    %2697 = vmatprep.subr.bf16.mxu0 %v962
    %2698 = vmatpush1.bf16.msra.mxu0 %v961
    %2699 = vmatprep.subr.bf16.mxu0 %v966
    %2700 = vmatpush1.bf16.msra.mxu0 %v965
    %2701 = vmatprep.subr.bf16.mxu0 %v970
    %2702 = vmatpush1.bf16.msra.mxu0 %v969
    %2703 = vmatprep.subr.bf16.mxu0 %v974
    %2704 = vmatpush1.bf16.msra.mxu0 %v973
    %2705 = vmatprep.subr.bf16.mxu0 0
    %2706 = vmatpush1.bf16.msra.mxu0 0
    %2707 = vmatprep.subr.bf16.mxu0 0
    %2708 = vmatpush1.bf16.msra.mxu0 0
    %2709 = vmatprep.subr.bf16.mxu0 0
    %2710 = vmatpush1.bf16.msra.mxu0 0
    %2711 = vmatprep.subr.bf16.mxu0 0
    %2712 = vmatpush1.bf16.msra.mxu0 0
    %2713 = vmatprep.subr.bf16.mxu0 0
    %2714 = vmatpush1.bf16.msra.mxu0 0
    %2715 = vmatprep.subr.bf16.mxu0 0
    %2716 = vmatpush1.bf16.msra.mxu0 0
    %2717 = vmatprep.subr.bf16.mxu0 0
    %2718 = vmatpush1.bf16.msra.mxu0 0
    %2719 = vmatprep.subr.bf16.mxu0 0
    %2720 = vmatpush1.bf16.msra.mxu0 0
    %2721 = vmatprep.mubr.bf16.mxu0 0
    %2722 = vmatmul.mubr.bf16.gmra.mrb[0].mxu0 %v2495
    %v2723 = vpop.f32.mrb[0].mxu0
    %v2724 = vadd.f32 0.0, %v2723
    %v2725 = vpop.f32.mrb[0].mxu0
    %v2726 = vadd.f32 0.0, %v2725
    %v2727 = vpop.f32.mrb[0].mxu0
    %v2728 = vpop.f32.mrb[0].mxu0
    %2729 = vdwg.mxu0
    %2730 = vmatprep.subr.bf16.mxu0 %v948
    %2731 = vmatpush1.bf16.msra.mxu0 %v947
    %2732 = vmatprep.subr.bf16.mxu0 %v952
    %2733 = vmatpush1.bf16.msra.mxu0 %v951
    %2734 = vmatprep.subr.bf16.mxu0 %v956
    %2735 = vmatpush1.bf16.msra.mxu0 %v955
    %2736 = vmatprep.subr.bf16.mxu0 %v960
    %2737 = vmatpush1.bf16.msra.mxu0 %v959
    %2738 = vmatprep.subr.bf16.mxu0 %v964
    %2739 = vmatpush1.bf16.msra.mxu0 %v963
    %2740 = vmatprep.subr.bf16.mxu0 %v968
    %2741 = vmatpush1.bf16.msra.mxu0 %v967
    %2742 = vmatprep.subr.bf16.mxu0 %v972
    %2743 = vmatpush1.bf16.msra.mxu0 %v971
    %2744 = vmatprep.subr.bf16.mxu0 %v976
    %2745 = vmatpush1.bf16.msra.mxu0 %v975
    %2746 = vmatprep.subr.bf16.mxu0 0
    %2747 = vmatpush1.bf16.msra.mxu0 0
    %2748 = vmatprep.subr.bf16.mxu0 0
    %2749 = vmatpush1.bf16.msra.mxu0 0
    %2750 = vmatprep.subr.bf16.mxu0 0
    %2751 = vmatpush1.bf16.msra.mxu0 0
    %2752 = vmatprep.subr.bf16.mxu0 0
    %2753 = vmatpush1.bf16.msra.mxu0 0
    %2754 = vmatprep.subr.bf16.mxu0 0
    %2755 = vmatpush1.bf16.msra.mxu0 0
    %2756 = vmatprep.subr.bf16.mxu0 0
    %2757 = vmatpush1.bf16.msra.mxu0 0
    %2758 = vmatprep.subr.bf16.mxu0 0
    %2759 = vmatpush1.bf16.msra.mxu0 0
    %2760 = vmatprep.subr.bf16.mxu0 0
    %2761 = vmatpush1.bf16.msra.mxu0 0
    %2762 = vmatprep.mubr.bf16.mxu0 0
    %2763 = vmatmul.mubr.bf16.gmra.mrb[0].mxu0 %v2495
    %v2764 = vpop.f32.mrb[0].mxu0
    %v2765 = vadd.f32 0.0, %v2764
    %v2766 = vpop.f32.mrb[0].mxu0
    %v2767 = vadd.f32 0.0, %v2766
    %v2768 = vpop.f32.mrb[0].mxu0
    %v2769 = vpop.f32.mrb[0].mxu0
    %2770 = vdwg.mxu0
    %v2771 = vadd.f32 %v414, %v2724
    %v2772 = vadd.f32 %v416, %v2726
    %v2773 = vadd.f32 %v527, %v2765
    %v2774 = vadd.f32 %v529, %v2767
    %v2775 = vxor.u32 %v2771, 2147483648
    %v2776 = vmul.f32 %v2775, 1.442695
    %v2777 = vpow.pop %v2776
    %v2778 = vadd.f32 %v2777, 1.0
    %v2779 = vrcp.pop %v2778
    %v2780 = vmul.f32 1.0, %v2779
    %v2781 = vxor.u32 %v2772, 2147483648
    %v2782 = vmul.f32 %v2781, 1.442695
    %v2783 = vpow.pop %v2782
    %v2784 = vadd.f32 %v2783, 1.0
    %v2785 = vrcp.pop %v2784
    %v2786 = vmul.f32 1.0, %v2785
    %v2787 = vtanh.pop %v2773
    %v2788 = vxor.u32 %v2774, 2147483648
    %v2789 = vmul.f32 %v2788, 1.442695
    %v2790 = vpow.pop %v2789
    %v2791 = vadd.f32 %v2790, 1.0
    %v2792 = vrcp.pop %v2791
    %v2793 = vmul.f32 1.0, %v2792
    %v2794 = vmul.f32 %v2786, %v2492
    %v2795 = vmul.f32 %v2780, %v2787
    %v2796 = vadd.f32 %v2794, %v2795
    %v2797 = vtanh.pop %v2796
    %v2798 = vmul.f32 %v2793, %v2797
    %v2799 = vpack.c.bf16 %v2798, %v2798
    %v2800 = vpack.c.bf16 %v2688, %v2688
    %2801 = vmatprep.subr.bf16.mxu0 %v1218
    %2802 = vmatpush1.bf16.msra.mxu0 %v1217
    %2803 = vmatprep.subr.bf16.mxu0 %v1222
    %2804 = vmatpush1.bf16.msra.mxu0 %v1221
    %2805 = vmatprep.subr.bf16.mxu0 %v1226
    %2806 = vmatpush1.bf16.msra.mxu0 %v1225
    %2807 = vmatprep.subr.bf16.mxu0 %v1230
    %2808 = vmatpush1.bf16.msra.mxu0 %v1229
    %2809 = vmatprep.subr.bf16.mxu0 %v1234
    %2810 = vmatpush1.bf16.msra.mxu0 %v1233
    %2811 = vmatprep.subr.bf16.mxu0 %v1238
    %2812 = vmatpush1.bf16.msra.mxu0 %v1237
    %2813 = vmatprep.subr.bf16.mxu0 %v1242
    %2814 = vmatpush1.bf16.msra.mxu0 %v1241
    %2815 = vmatprep.subr.bf16.mxu0 %v1246
    %2816 = vmatpush1.bf16.msra.mxu0 %v1245
    %2817 = vmatprep.subr.bf16.mxu0 0
    %2818 = vmatpush1.bf16.msra.mxu0 0
    %2819 = vmatprep.subr.bf16.mxu0 0
    %2820 = vmatpush1.bf16.msra.mxu0 0
    %2821 = vmatprep.subr.bf16.mxu0 0
    %2822 = vmatpush1.bf16.msra.mxu0 0
    %2823 = vmatprep.subr.bf16.mxu0 0
    %2824 = vmatpush1.bf16.msra.mxu0 0
    %2825 = vmatprep.subr.bf16.mxu0 0
    %2826 = vmatpush1.bf16.msra.mxu0 0
    %2827 = vmatprep.subr.bf16.mxu0 0
    %2828 = vmatpush1.bf16.msra.mxu0 0
    %2829 = vmatprep.subr.bf16.mxu0 0
    %2830 = vmatpush1.bf16.msra.mxu0 0
    %2831 = vmatprep.subr.bf16.mxu0 0
    %2832 = vmatpush1.bf16.msra.mxu0 0
    %2833 = vmatprep.mubr.bf16.mxu0 0
    %2834 = vmatmul.mubr.bf16.gmra.mrb[0].mxu0 %v2800
    %v2835 = vpop.f32.mrb[0].mxu0
    %v2836 = vadd.f32 0.0, %v2835
    %v2837 = vpop.f32.mrb[0].mxu0
    %v2838 = vadd.f32 0.0, %v2837
    %v2839 = vpop.f32.mrb[0].mxu0
    %v2840 = vpop.f32.mrb[0].mxu0
    %2841 = vdwg.mxu0
    %2842 = vmatprep.subr.bf16.mxu0 %v1220
    %2843 = vmatpush1.bf16.msra.mxu0 %v1219
    %2844 = vmatprep.subr.bf16.mxu0 %v1224
    %2845 = vmatpush1.bf16.msra.mxu0 %v1223
    %2846 = vmatprep.subr.bf16.mxu0 %v1228
    %2847 = vmatpush1.bf16.msra.mxu0 %v1227
    %2848 = vmatprep.subr.bf16.mxu0 %v1232
    %2849 = vmatpush1.bf16.msra.mxu0 %v1231
    %2850 = vmatprep.subr.bf16.mxu0 %v1236
    %2851 = vmatpush1.bf16.msra.mxu0 %v1235
    %2852 = vmatprep.subr.bf16.mxu0 %v1240
    %2853 = vmatpush1.bf16.msra.mxu0 %v1239
    %2854 = vmatprep.subr.bf16.mxu0 %v1244
    %2855 = vmatpush1.bf16.msra.mxu0 %v1243
    %2856 = vmatprep.subr.bf16.mxu0 %v1248
    %2857 = vmatpush1.bf16.msra.mxu0 %v1247
    %2858 = vmatprep.subr.bf16.mxu0 0
    %2859 = vmatpush1.bf16.msra.mxu0 0
    %2860 = vmatprep.subr.bf16.mxu0 0
    %2861 = vmatpush1.bf16.msra.mxu0 0
    %2862 = vmatprep.subr.bf16.mxu0 0
    %2863 = vmatpush1.bf16.msra.mxu0 0
    %2864 = vmatprep.subr.bf16.mxu0 0
    %2865 = vmatpush1.bf16.msra.mxu0 0
    %2866 = vmatprep.subr.bf16.mxu0 0
    %2867 = vmatpush1.bf16.msra.mxu0 0
    %2868 = vmatprep.subr.bf16.mxu0 0
    %2869 = vmatpush1.bf16.msra.mxu0 0
    %2870 = vmatprep.subr.bf16.mxu0 0
    %2871 = vmatpush1.bf16.msra.mxu0 0
    %2872 = vmatprep.subr.bf16.mxu0 0
    %2873 = vmatpush1.bf16.msra.mxu0 0
    %2874 = vmatprep.mubr.bf16.mxu0 0
    %2875 = vmatmul.mubr.bf16.gmra.mrb[0].mxu0 %v2800
    %v2876 = vpop.f32.mrb[0].mxu0
    %v2877 = vadd.f32 0.0, %v2876
    %v2878 = vpop.f32.mrb[0].mxu0
    %v2879 = vadd.f32 0.0, %v2878
    %v2880 = vpop.f32.mrb[0].mxu0
    %v2881 = vpop.f32.mrb[0].mxu0
    %2882 = vdwg.mxu0
    %2883 = vmatprep.subr.bf16.mxu0 %v680
    %2884 = vmatpush1.bf16.msra.mxu0 %v679
    %2885 = vmatprep.subr.bf16.mxu0 %v684
    %2886 = vmatpush1.bf16.msra.mxu0 %v683
    %2887 = vmatprep.subr.bf16.mxu0 %v688
    %2888 = vmatpush1.bf16.msra.mxu0 %v687
    %2889 = vmatprep.subr.bf16.mxu0 %v692
    %2890 = vmatpush1.bf16.msra.mxu0 %v691
    %2891 = vmatprep.subr.bf16.mxu0 %v696
    %2892 = vmatpush1.bf16.msra.mxu0 %v695
    %2893 = vmatprep.subr.bf16.mxu0 %v700
    %2894 = vmatpush1.bf16.msra.mxu0 %v699
    %2895 = vmatprep.subr.bf16.mxu0 %v704
    %2896 = vmatpush1.bf16.msra.mxu0 %v703
    %2897 = vmatprep.subr.bf16.mxu0 %v708
    %2898 = vmatpush1.bf16.msra.mxu0 %v707
    %2899 = vmatprep.subr.bf16.mxu0 0
    %2900 = vmatpush1.bf16.msra.mxu0 0
    %2901 = vmatprep.subr.bf16.mxu0 0
    %2902 = vmatpush1.bf16.msra.mxu0 0
    %2903 = vmatprep.subr.bf16.mxu0 0
    %2904 = vmatpush1.bf16.msra.mxu0 0
    %2905 = vmatprep.subr.bf16.mxu0 0
    %2906 = vmatpush1.bf16.msra.mxu0 0
    %2907 = vmatprep.subr.bf16.mxu0 0
    %2908 = vmatpush1.bf16.msra.mxu0 0
    %2909 = vmatprep.subr.bf16.mxu0 0
    %2910 = vmatpush1.bf16.msra.mxu0 0
    %2911 = vmatprep.subr.bf16.mxu0 0
    %2912 = vmatpush1.bf16.msra.mxu0 0
    %2913 = vmatprep.subr.bf16.mxu0 0
    %2914 = vmatpush1.bf16.msra.mxu0 0
    %2915 = vmatprep.mubr.bf16.mxu0 0
    %2916 = vmatmul.mubr.bf16.gmra.mrb[0].mxu0 %v2799
    %v2917 = vpop.f32.mrb[0].mxu0
    %v2918 = vadd.f32 %v2836, %v2917
    %v2919 = vpop.f32.mrb[0].mxu0
    %v2920 = vadd.f32 %v2838, %v2919
    %v2921 = vpop.f32.mrb[0].mxu0
    %v2922 = vpop.f32.mrb[0].mxu0
    %2923 = vdwg.mxu0
    %2924 = vmatprep.subr.bf16.mxu0 %v682
    %2925 = vmatpush1.bf16.msra.mxu0 %v681
    %2926 = vmatprep.subr.bf16.mxu0 %v686
    %2927 = vmatpush1.bf16.msra.mxu0 %v685
    %2928 = vmatprep.subr.bf16.mxu0 %v690
    %2929 = vmatpush1.bf16.msra.mxu0 %v689
    %2930 = vmatprep.subr.bf16.mxu0 %v694
    %2931 = vmatpush1.bf16.msra.mxu0 %v693
    %2932 = vmatprep.subr.bf16.mxu0 %v698
    %2933 = vmatpush1.bf16.msra.mxu0 %v697
    %2934 = vmatprep.subr.bf16.mxu0 %v702
    %2935 = vmatpush1.bf16.msra.mxu0 %v701
    %2936 = vmatprep.subr.bf16.mxu0 %v706
    %2937 = vmatpush1.bf16.msra.mxu0 %v705
    %2938 = vmatprep.subr.bf16.mxu0 %v710
    %2939 = vmatpush1.bf16.msra.mxu0 %v709
    %2940 = vmatprep.subr.bf16.mxu0 0
    %2941 = vmatpush1.bf16.msra.mxu0 0
    %2942 = vmatprep.subr.bf16.mxu0 0
    %2943 = vmatpush1.bf16.msra.mxu0 0
    %2944 = vmatprep.subr.bf16.mxu0 0
    %2945 = vmatpush1.bf16.msra.mxu0 0
    %2946 = vmatprep.subr.bf16.mxu0 0
    %2947 = vmatpush1.bf16.msra.mxu0 0
    %2948 = vmatprep.subr.bf16.mxu0 0
    %2949 = vmatpush1.bf16.msra.mxu0 0
    %2950 = vmatprep.subr.bf16.mxu0 0
    %2951 = vmatpush1.bf16.msra.mxu0 0
    %2952 = vmatprep.subr.bf16.mxu0 0
    %2953 = vmatpush1.bf16.msra.mxu0 0
    %2954 = vmatprep.subr.bf16.mxu0 0
    %2955 = vmatpush1.bf16.msra.mxu0 0
    %2956 = vmatprep.mubr.bf16.mxu0 0
    %2957 = vmatmul.mubr.bf16.gmra.mrb[0].mxu0 %v2799
    %v2958 = vpop.f32.mrb[0].mxu0
    %v2959 = vadd.f32 %v2877, %v2958
    %v2960 = vpop.f32.mrb[0].mxu0
    %v2961 = vadd.f32 %v2879, %v2960
    %v2962 = vpop.f32.mrb[0].mxu0
    %v2963 = vpop.f32.mrb[0].mxu0
    %2964 = vdwg.mxu0
    %v2965 = vadd.f32 %v2918, %v566
    %v2966 = vadd.f32 %v2920, %v570
    %v2967 = vadd.f32 %v2959, %v574
    %v2968 = vadd.f32 %v2961, %v578
    %v2969 = vxor.u32 %v2965, 2147483648
    %v2970 = vmul.f32 %v2969, 1.442695
    %v2971 = vpow.pop %v2970
    %v2972 = vadd.f32 %v2971, 1.0
    %v2973 = vrcp.pop %v2972
    %v2974 = vmul.f32 1.0, %v2973
    %v2975 = vxor.u32 %v2966, 2147483648
    %v2976 = vmul.f32 %v2975, 1.442695
    %v2977 = vpow.pop %v2976
    %v2978 = vadd.f32 %v2977, 1.0
    %v2979 = vrcp.pop %v2978
    %v2980 = vmul.f32 1.0, %v2979
    %v2981 = vtanh.pop %v2967
    %v2982 = vxor.u32 %v2968, 2147483648
    %v2983 = vmul.f32 %v2982, 1.442695
    %v2984 = vpow.pop %v2983
    %v2985 = vadd.f32 %v2984, 1.0
    %v2986 = vrcp.pop %v2985
    %v2987 = vmul.f32 1.0, %v2986
    %v2988 = vmul.f32 %v2980, %v2686
    %v2989 = vmul.f32 %v2974, %v2981
    %v2990 = vadd.f32 %v2988, %v2989
    %v2991 = vtanh.pop %v2990
    %v2992 = vmul.f32 %v2987, %v2991
    %2993 = vmatprep.subr.bf16.mxu0 %v946
    %2994 = vmatpush1.bf16.msra.mxu0 %v945
    %2995 = vmatprep.subr.bf16.mxu0 %v950
    %2996 = vmatpush1.bf16.msra.mxu0 %v949
    %2997 = vmatprep.subr.bf16.mxu0 %v954
    %2998 = vmatpush1.bf16.msra.mxu0 %v953
    %2999 = vmatprep.subr.bf16.mxu0 %v958
    %3000 = vmatpush1.bf16.msra.mxu0 %v957
    %3001 = vmatprep.subr.bf16.mxu0 %v962
    %3002 = vmatpush1.bf16.msra.mxu0 %v961
    %3003 = vmatprep.subr.bf16.mxu0 %v966
    %3004 = vmatpush1.bf16.msra.mxu0 %v965
    %3005 = vmatprep.subr.bf16.mxu0 %v970
    %3006 = vmatpush1.bf16.msra.mxu0 %v969
    %3007 = vmatprep.subr.bf16.mxu0 %v974
    %3008 = vmatpush1.bf16.msra.mxu0 %v973
    %3009 = vmatprep.subr.bf16.mxu0 0
    %3010 = vmatpush1.bf16.msra.mxu0 0
    %3011 = vmatprep.subr.bf16.mxu0 0
    %3012 = vmatpush1.bf16.msra.mxu0 0
    %3013 = vmatprep.subr.bf16.mxu0 0
    %3014 = vmatpush1.bf16.msra.mxu0 0
    %3015 = vmatprep.subr.bf16.mxu0 0
    %3016 = vmatpush1.bf16.msra.mxu0 0
    %3017 = vmatprep.subr.bf16.mxu0 0
    %3018 = vmatpush1.bf16.msra.mxu0 0
    %3019 = vmatprep.subr.bf16.mxu0 0
    %3020 = vmatpush1.bf16.msra.mxu0 0
    %3021 = vmatprep.subr.bf16.mxu0 0
    %3022 = vmatpush1.bf16.msra.mxu0 0
    %3023 = vmatprep.subr.bf16.mxu0 0
    %3024 = vmatpush1.bf16.msra.mxu0 0
    %3025 = vmatprep.mubr.bf16.mxu0 0
    %3026 = vmatmul.mubr.bf16.gmra.mrb[0].mxu0 %v2799
    %v3027 = vpop.f32.mrb[0].mxu0
    %v3028 = vadd.f32 0.0, %v3027
    %v3029 = vpop.f32.mrb[0].mxu0
    %v3030 = vadd.f32 0.0, %v3029
    %v3031 = vpop.f32.mrb[0].mxu0
    %v3032 = vpop.f32.mrb[0].mxu0
    %3033 = vdwg.mxu0
    %3034 = vmatprep.subr.bf16.mxu0 %v948
    %3035 = vmatpush1.bf16.msra.mxu0 %v947
    %3036 = vmatprep.subr.bf16.mxu0 %v952
    %3037 = vmatpush1.bf16.msra.mxu0 %v951
    %3038 = vmatprep.subr.bf16.mxu0 %v956
    %3039 = vmatpush1.bf16.msra.mxu0 %v955
    %3040 = vmatprep.subr.bf16.mxu0 %v960
    %3041 = vmatpush1.bf16.msra.mxu0 %v959
    %3042 = vmatprep.subr.bf16.mxu0 %v964
    %3043 = vmatpush1.bf16.msra.mxu0 %v963
    %3044 = vmatprep.subr.bf16.mxu0 %v968
    %3045 = vmatpush1.bf16.msra.mxu0 %v967
    %3046 = vmatprep.subr.bf16.mxu0 %v972
    %3047 = vmatpush1.bf16.msra.mxu0 %v971
    %3048 = vmatprep.subr.bf16.mxu0 %v976
    %3049 = vmatpush1.bf16.msra.mxu0 %v975
    %3050 = vmatprep.subr.bf16.mxu0 0
    %3051 = vmatpush1.bf16.msra.mxu0 0
    %3052 = vmatprep.subr.bf16.mxu0 0
    %3053 = vmatpush1.bf16.msra.mxu0 0
    %3054 = vmatprep.subr.bf16.mxu0 0
    %3055 = vmatpush1.bf16.msra.mxu0 0
    %3056 = vmatprep.subr.bf16.mxu0 0
    %3057 = vmatpush1.bf16.msra.mxu0 0
    %3058 = vmatprep.subr.bf16.mxu0 0
    %3059 = vmatpush1.bf16.msra.mxu0 0
    %3060 = vmatprep.subr.bf16.mxu0 0
    %3061 = vmatpush1.bf16.msra.mxu0 0
    %3062 = vmatprep.subr.bf16.mxu0 0
    %3063 = vmatpush1.bf16.msra.mxu0 0
    %3064 = vmatprep.subr.bf16.mxu0 0
    %3065 = vmatpush1.bf16.msra.mxu0 0
    %3066 = vmatprep.mubr.bf16.mxu0 0
    %3067 = vmatmul.mubr.bf16.gmra.mrb[0].mxu0 %v2799
    %v3068 = vpop.f32.mrb[0].mxu0
    %v3069 = vadd.f32 0.0, %v3068
    %v3070 = vpop.f32.mrb[0].mxu0
    %v3071 = vadd.f32 0.0, %v3070
    %v3072 = vpop.f32.mrb[0].mxu0
    %v3073 = vpop.f32.mrb[0].mxu0
    %3074 = vdwg.mxu0
    %v3075 = vadd.f32 %v420, %v3028
    %v3076 = vadd.f32 %v422, %v3030
    %v3077 = vadd.f32 %v533, %v3069
    %v3078 = vadd.f32 %v535, %v3071
    %v3079 = vxor.u32 %v3075, 2147483648
    %v3080 = vmul.f32 %v3079, 1.442695
    %v3081 = vpow.pop %v3080
    %v3082 = vadd.f32 %v3081, 1.0
    %v3083 = vrcp.pop %v3082
    %v3084 = vmul.f32 1.0, %v3083
    %v3085 = vxor.u32 %v3076, 2147483648
    %v3086 = vmul.f32 %v3085, 1.442695
    %v3087 = vpow.pop %v3086
    %v3088 = vadd.f32 %v3087, 1.0
    %v3089 = vrcp.pop %v3088
    %v3090 = vmul.f32 1.0, %v3089
    %v3091 = vtanh.pop %v3077
    %v3092 = vxor.u32 %v3078, 2147483648
    %v3093 = vmul.f32 %v3092, 1.442695
    %v3094 = vpow.pop %v3093
    %v3095 = vadd.f32 %v3094, 1.0
    %v3096 = vrcp.pop %v3095
    %v3097 = vmul.f32 1.0, %v3096
    %v3098 = vmul.f32 %v3090, %v2796
    %v3099 = vmul.f32 %v3084, %v3091
    %v3100 = vadd.f32 %v3098, %v3099
    %v3101 = vtanh.pop %v3100
    %v3102 = vmul.f32 %v3097, %v3101
    %v3103 = vpack.c.bf16 %v3102, %v3102
    %v3104 = vpack.c.bf16 %v2992, %v2992
    %3105 = vmatprep.subr.bf16.mxu0 %v1218
    %3106 = vmatpush1.bf16.msra.mxu0 %v1217
    %3107 = vmatprep.subr.bf16.mxu0 %v1222
    %3108 = vmatpush1.bf16.msra.mxu0 %v1221
    %3109 = vmatprep.subr.bf16.mxu0 %v1226
    %3110 = vmatpush1.bf16.msra.mxu0 %v1225
    %3111 = vmatprep.subr.bf16.mxu0 %v1230
    %3112 = vmatpush1.bf16.msra.mxu0 %v1229
    %3113 = vmatprep.subr.bf16.mxu0 %v1234
    %3114 = vmatpush1.bf16.msra.mxu0 %v1233
    %3115 = vmatprep.subr.bf16.mxu0 %v1238
    %3116 = vmatpush1.bf16.msra.mxu0 %v1237
    %3117 = vmatprep.subr.bf16.mxu0 %v1242
    %3118 = vmatpush1.bf16.msra.mxu0 %v1241
    %3119 = vmatprep.subr.bf16.mxu0 %v1246
    %3120 = vmatpush1.bf16.msra.mxu0 %v1245
    %3121 = vmatprep.subr.bf16.mxu0 0
    %3122 = vmatpush1.bf16.msra.mxu0 0
    %3123 = vmatprep.subr.bf16.mxu0 0
    %3124 = vmatpush1.bf16.msra.mxu0 0
    %3125 = vmatprep.subr.bf16.mxu0 0
    %3126 = vmatpush1.bf16.msra.mxu0 0
    %3127 = vmatprep.subr.bf16.mxu0 0
    %3128 = vmatpush1.bf16.msra.mxu0 0
    %3129 = vmatprep.subr.bf16.mxu0 0
    %3130 = vmatpush1.bf16.msra.mxu0 0
    %3131 = vmatprep.subr.bf16.mxu0 0
    %3132 = vmatpush1.bf16.msra.mxu0 0
    %3133 = vmatprep.subr.bf16.mxu0 0
    %3134 = vmatpush1.bf16.msra.mxu0 0
    %3135 = vmatprep.subr.bf16.mxu0 0
    %3136 = vmatpush1.bf16.msra.mxu0 0
    %3137 = vmatprep.mubr.bf16.mxu0 0
    %3138 = vmatmul.mubr.bf16.gmra.mrb[0].mxu0 %v3104
    %v3139 = vpop.f32.mrb[0].mxu0
    %v3140 = vadd.f32 0.0, %v3139
    %v3141 = vpop.f32.mrb[0].mxu0
    %v3142 = vadd.f32 0.0, %v3141
    %v3143 = vpop.f32.mrb[0].mxu0
    %v3144 = vpop.f32.mrb[0].mxu0
    %3145 = vdwg.mxu0
    %3146 = vmatprep.subr.bf16.mxu0 %v1220
    %3147 = vmatpush1.bf16.msra.mxu0 %v1219
    %3148 = vmatprep.subr.bf16.mxu0 %v1224
    %3149 = vmatpush1.bf16.msra.mxu0 %v1223
    %3150 = vmatprep.subr.bf16.mxu0 %v1228
    %3151 = vmatpush1.bf16.msra.mxu0 %v1227
    %3152 = vmatprep.subr.bf16.mxu0 %v1232
    %3153 = vmatpush1.bf16.msra.mxu0 %v1231
    %3154 = vmatprep.subr.bf16.mxu0 %v1236
    %3155 = vmatpush1.bf16.msra.mxu0 %v1235
    %3156 = vmatprep.subr.bf16.mxu0 %v1240
    %3157 = vmatpush1.bf16.msra.mxu0 %v1239
    %3158 = vmatprep.subr.bf16.mxu0 %v1244
    %3159 = vmatpush1.bf16.msra.mxu0 %v1243
    %3160 = vmatprep.subr.bf16.mxu0 %v1248
    %3161 = vmatpush1.bf16.msra.mxu0 %v1247
    %3162 = vmatprep.subr.bf16.mxu0 0
    %3163 = vmatpush1.bf16.msra.mxu0 0
    %3164 = vmatprep.subr.bf16.mxu0 0
    %3165 = vmatpush1.bf16.msra.mxu0 0
    %3166 = vmatprep.subr.bf16.mxu0 0
    %3167 = vmatpush1.bf16.msra.mxu0 0
    %3168 = vmatprep.subr.bf16.mxu0 0
    %3169 = vmatpush1.bf16.msra.mxu0 0
    %3170 = vmatprep.subr.bf16.mxu0 0
    %3171 = vmatpush1.bf16.msra.mxu0 0
    %3172 = vmatprep.subr.bf16.mxu0 0
    %3173 = vmatpush1.bf16.msra.mxu0 0
    %3174 = vmatprep.subr.bf16.mxu0 0
    %3175 = vmatpush1.bf16.msra.mxu0 0
    %3176 = vmatprep.subr.bf16.mxu0 0
    %3177 = vmatpush1.bf16.msra.mxu0 0
    %3178 = vmatprep.mubr.bf16.mxu0 0
    %3179 = vmatmul.mubr.bf16.gmra.mrb[0].mxu0 %v3104
    %v3180 = vpop.f32.mrb[0].mxu0
    %v3181 = vadd.f32 0.0, %v3180
    %v3182 = vpop.f32.mrb[0].mxu0
    %v3183 = vadd.f32 0.0, %v3182
    %v3184 = vpop.f32.mrb[0].mxu0
    %v3185 = vpop.f32.mrb[0].mxu0
    %3186 = vdwg.mxu0
    %3187 = vmatprep.subr.bf16.mxu0 %v680
    %3188 = vmatpush1.bf16.msra.mxu0 %v679
    %3189 = vmatprep.subr.bf16.mxu0 %v684
    %3190 = vmatpush1.bf16.msra.mxu0 %v683
    %3191 = vmatprep.subr.bf16.mxu0 %v688
    %3192 = vmatpush1.bf16.msra.mxu0 %v687
    %3193 = vmatprep.subr.bf16.mxu0 %v692
    %3194 = vmatpush1.bf16.msra.mxu0 %v691
    %3195 = vmatprep.subr.bf16.mxu0 %v696
    %3196 = vmatpush1.bf16.msra.mxu0 %v695
    %3197 = vmatprep.subr.bf16.mxu0 %v700
    %3198 = vmatpush1.bf16.msra.mxu0 %v699
    %3199 = vmatprep.subr.bf16.mxu0 %v704
    %3200 = vmatpush1.bf16.msra.mxu0 %v703
    %3201 = vmatprep.subr.bf16.mxu0 %v708
    %3202 = vmatpush1.bf16.msra.mxu0 %v707
    %3203 = vmatprep.subr.bf16.mxu0 0
    %3204 = vmatpush1.bf16.msra.mxu0 0
    %3205 = vmatprep.subr.bf16.mxu0 0
    %3206 = vmatpush1.bf16.msra.mxu0 0
    %3207 = vmatprep.subr.bf16.mxu0 0
    %3208 = vmatpush1.bf16.msra.mxu0 0
    %3209 = vmatprep.subr.bf16.mxu0 0
    %3210 = vmatpush1.bf16.msra.mxu0 0
    %3211 = vmatprep.subr.bf16.mxu0 0
    %3212 = vmatpush1.bf16.msra.mxu0 0
    %3213 = vmatprep.subr.bf16.mxu0 0
    %3214 = vmatpush1.bf16.msra.mxu0 0
    %3215 = vmatprep.subr.bf16.mxu0 0
    %3216 = vmatpush1.bf16.msra.mxu0 0
    %3217 = vmatprep.subr.bf16.mxu0 0
    %3218 = vmatpush1.bf16.msra.mxu0 0
    %3219 = vmatprep.mubr.bf16.mxu0 0
    %3220 = vmatmul.mubr.bf16.gmra.mrb[0].mxu0 %v3103
    %v3221 = vpop.f32.mrb[0].mxu0
    %v3222 = vadd.f32 %v3140, %v3221
    %v3223 = vpop.f32.mrb[0].mxu0
    %v3224 = vadd.f32 %v3142, %v3223
    %v3225 = vpop.f32.mrb[0].mxu0
    %v3226 = vpop.f32.mrb[0].mxu0
    %3227 = vdwg.mxu0
    %3228 = vmatprep.subr.bf16.mxu0 %v682
    %3229 = vmatpush1.bf16.msra.mxu0 %v681
    %3230 = vmatprep.subr.bf16.mxu0 %v686
    %3231 = vmatpush1.bf16.msra.mxu0 %v685
    %3232 = vmatprep.subr.bf16.mxu0 %v690
    %3233 = vmatpush1.bf16.msra.mxu0 %v689
    %3234 = vmatprep.subr.bf16.mxu0 %v694
    %3235 = vmatpush1.bf16.msra.mxu0 %v693
    %3236 = vmatprep.subr.bf16.mxu0 %v698
    %3237 = vmatpush1.bf16.msra.mxu0 %v697
    %3238 = vmatprep.subr.bf16.mxu0 %v702
    %3239 = vmatpush1.bf16.msra.mxu0 %v701
    %3240 = vmatprep.subr.bf16.mxu0 %v706
    %3241 = vmatpush1.bf16.msra.mxu0 %v705
    %3242 = vmatprep.subr.bf16.mxu0 %v710
    %3243 = vmatpush1.bf16.msra.mxu0 %v709
    %3244 = vmatprep.subr.bf16.mxu0 0
    %3245 = vmatpush1.bf16.msra.mxu0 0
    %3246 = vmatprep.subr.bf16.mxu0 0
    %3247 = vmatpush1.bf16.msra.mxu0 0
    %3248 = vmatprep.subr.bf16.mxu0 0
    %3249 = vmatpush1.bf16.msra.mxu0 0
    %3250 = vmatprep.subr.bf16.mxu0 0
    %3251 = vmatpush1.bf16.msra.mxu0 0
    %3252 = vmatprep.subr.bf16.mxu0 0
    %3253 = vmatpush1.bf16.msra.mxu0 0
    %3254 = vmatprep.subr.bf16.mxu0 0
    %3255 = vmatpush1.bf16.msra.mxu0 0
    %3256 = vmatprep.subr.bf16.mxu0 0
    %3257 = vmatpush1.bf16.msra.mxu0 0
    %3258 = vmatprep.subr.bf16.mxu0 0
    %3259 = vmatpush1.bf16.msra.mxu0 0
    %3260 = vmatprep.mubr.bf16.mxu0 0
    %3261 = vmatmul.mubr.bf16.gmra.mrb[0].mxu0 %v3103
    %v3262 = vpop.f32.mrb[0].mxu0
    %v3263 = vadd.f32 %v3181, %v3262
    %v3264 = vpop.f32.mrb[0].mxu0
    %v3265 = vadd.f32 %v3183, %v3264
    %v3266 = vpop.f32.mrb[0].mxu0
    %v3267 = vpop.f32.mrb[0].mxu0
    %3268 = vdwg.mxu0
    %v3269 = vadd.f32 %v3222, %v566
    %v3270 = vadd.f32 %v3224, %v570
    %v3271 = vadd.f32 %v3263, %v574
    %v3272 = vadd.f32 %v3265, %v578
    %v3273 = vxor.u32 %v3269, 2147483648
    %v3274 = vmul.f32 %v3273, 1.442695
    %v3275 = vpow.pop %v3274
    %v3276 = vadd.f32 %v3275, 1.0
    %v3277 = vrcp.pop %v3276
    %v3278 = vmul.f32 1.0, %v3277
    %v3279 = vxor.u32 %v3270, 2147483648
    %v3280 = vmul.f32 %v3279, 1.442695
    %v3281 = vpow.pop %v3280
    %v3282 = vadd.f32 %v3281, 1.0
    %v3283 = vrcp.pop %v3282
    %v3284 = vmul.f32 1.0, %v3283
    %v3285 = vtanh.pop %v3271
    %v3286 = vxor.u32 %v3272, 2147483648
    %v3287 = vmul.f32 %v3286, 1.442695
    %v3288 = vpow.pop %v3287
    %v3289 = vadd.f32 %v3288, 1.0
    %v3290 = vrcp.pop %v3289
    %v3291 = vmul.f32 1.0, %v3290
    %v3292 = vmul.f32 %v3284, %v2990
    %v3293 = vmul.f32 %v3278, %v3285
    %v3294 = vadd.f32 %v3292, %v3293
    %v3295 = vtanh.pop %v3294
    %v3296 = vmul.f32 %v3291, %v3295
    %v3297 = vld [vmem:[#allocation12] sm:$0xff]
    %v3298 = vld [vmem:[#allocation12 + $0x8] sm:$0xff]
    %v3299 = vld [vmem:[#allocation12 + $0x10] sm:$0xff]
    %v3300 = vld [vmem:[#allocation12 + $0x18] sm:$0xff]
    %v3301 = vld [vmem:[#allocation12 + $0x20] sm:$0xff]
    %v3302 = vld [vmem:[#allocation12 + $0x28] sm:$0xff]
    %v3303 = vld [vmem:[#allocation12 + $0x30] sm:$0xff]
    %v3304 = vld [vmem:[#allocation12 + $0x38] sm:$0xff]
    %v3305 = vld [vmem:[#allocation12 + $0x40] sm:$0xff]
    %v3306 = vld [vmem:[#allocation12 + $0x48] sm:$0xff]
    %v3307 = vld [vmem:[#allocation12 + $0x50] sm:$0xff]
    %v3308 = vld [vmem:[#allocation12 + $0x58] sm:$0xff]
    %v3309 = vld [vmem:[#allocation12 + $0x60] sm:$0xff]
    %v3310 = vld [vmem:[#allocation12 + $0x68] sm:$0xff]
    %v3311 = vld [vmem:[#allocation12 + $0x70] sm:$0xff]
    %v3312 = vld [vmem:[#allocation12 + $0x78] sm:$0xff]
    %v3313 = vld [vmem:[%s8] sm:$0x1]
    %v3315 = vlaneseq
    %v3316 = vshrl.u32 %v3315, 7
    %v3317 = vsub.s32 0, %v3316
    %v3318 = vrot.slane %v3313, %v3317
    %3320 = vmatprep.subr.mxu0 0.0
    %3321 = vmatpush1.msra.mxu0 %v3297
    %3322 = vmatprep.subr.mxu0 0.0
    %3323 = vmatpush1.msra.mxu0 %v3298
    %3324 = vmatprep.subr.mxu0 0.0
    %3325 = vmatpush1.msra.mxu0 %v3299
    %3326 = vmatprep.subr.mxu0 0.0
    %3327 = vmatpush1.msra.mxu0 %v3300
    %3328 = vmatprep.subr.mxu0 0.0
    %3329 = vmatpush1.msra.mxu0 %v3301
    %3330 = vmatprep.subr.mxu0 0.0
    %3331 = vmatpush1.msra.mxu0 %v3302
    %3332 = vmatprep.subr.mxu0 0.0
    %3333 = vmatpush1.msra.mxu0 %v3303
    %3334 = vmatprep.subr.mxu0 0.0
    %3335 = vmatpush1.msra.mxu0 %v3304
    %3336 = vmatprep.subr.mxu0 0.0
    %3337 = vmatpush1.msra.mxu0 %v3305
    %3338 = vmatprep.subr.mxu0 0.0
    %3339 = vmatpush1.msra.mxu0 %v3306
    %3340 = vmatprep.subr.mxu0 0.0
    %3341 = vmatpush1.msra.mxu0 %v3307
    %3342 = vmatprep.subr.mxu0 0.0
    %3343 = vmatpush1.msra.mxu0 %v3308
    %3344 = vmatprep.subr.mxu0 0.0
    %3345 = vmatpush1.msra.mxu0 %v3309
    %3346 = vmatprep.subr.mxu0 0.0
    %3347 = vmatpush1.msra.mxu0 %v3310
    %3348 = vmatprep.subr.mxu0 0.0
    %3349 = vmatpush1.msra.mxu0 %v3311
    %3350 = vmatprep.subr.mxu0 0.0
    %3351 = vmatpush1.msra.mxu0 %v3312
    %3352 = vmatprep.subr.mxu0 0.0
    %3353 = vmatpush1.msra.mxu0 0.0
    %3354 = vmatprep.subr.mxu0 0.0
    %3355 = vmatpush1.msra.mxu0 0.0
    %3356 = vmatprep.subr.mxu0 0.0
    %3357 = vmatpush1.msra.mxu0 0.0
    %3358 = vmatprep.subr.mxu0 0.0
    %3359 = vmatpush1.msra.mxu0 0.0
    %3360 = vmatprep.subr.mxu0 0.0
    %3361 = vmatpush1.msra.mxu0 0.0
    %3362 = vmatprep.subr.mxu0 0.0
    %3363 = vmatpush1.msra.mxu0 0.0
    %3364 = vmatprep.subr.mxu0 0.0
    %3365 = vmatpush1.msra.mxu0 0.0
    %3366 = vmatprep.subr.mxu0 0.0
    %3367 = vmatpush1.msra.mxu0 0.0
    %3368 = vmatprep.subr.mxu0 0.0
    %3369 = vmatpush1.msra.mxu0 0.0
    %3370 = vmatprep.subr.mxu0 0.0
    %3371 = vmatpush1.msra.mxu0 0.0
    %3372 = vmatprep.subr.mxu0 0.0
    %3373 = vmatpush1.msra.mxu0 0.0
    %3374 = vmatprep.subr.mxu0 0.0
    %3375 = vmatpush1.msra.mxu0 0.0
    %3376 = vmatprep.subr.mxu0 0.0
    %3377 = vmatpush1.msra.mxu0 0.0
    %3378 = vmatprep.subr.mxu0 0.0
    %3379 = vmatpush1.msra.mxu0 0.0
    %3380 = vmatprep.subr.mxu0 0.0
    %3381 = vmatpush1.msra.mxu0 0.0
    %3382 = vmatprep.subr.mxu0 0.0
    %3383 = vmatpush1.msra.mxu0 0.0
    %3384 = vmatprep.mubr.f32.mxu0 0.0
    %3385 = vmatmul.mubr.f32.gmra.mrb[0].mxu0 %v848
    %v3386 = vpop.f32.mrb[0].mxu0
    %v3387 = vadd.f32 %v3318, %v3386
    %v3388 = vpop.f32.mrb[0].mxu0
    %3389 = vmatprep.mubr.f32.mxu0 0.0
    %3390 = vmatmul.mubr.f32.gmra.mrb[0].mxu0 %v1472
    %v3391 = vpop.f32.mrb[0].mxu0
    %v3392 = vadd.f32 %v3318, %v3391
    %v3393 = vpop.f32.mrb[0].mxu0
    %3394 = vmatprep.mubr.f32.mxu0 0.0
    %3395 = vmatmul.mubr.f32.gmra.mrb[0].mxu0 %v1776
    %v3396 = vpop.f32.mrb[0].mxu0
    %v3397 = vadd.f32 %v3318, %v3396
    %v3398 = vpop.f32.mrb[0].mxu0
    %3399 = vmatprep.mubr.f32.mxu0 0.0
    %3400 = vmatmul.mubr.f32.gmra.mrb[0].mxu0 %v2080
    %v3401 = vpop.f32.mrb[0].mxu0
    %v3402 = vadd.f32 %v3318, %v3401
    %v3403 = vpop.f32.mrb[0].mxu0
    %3404 = vmatprep.mubr.f32.mxu0 0.0
    %3405 = vmatmul.mubr.f32.gmra.mrb[0].mxu0 %v2384
    %v3406 = vpop.f32.mrb[0].mxu0
    %v3407 = vadd.f32 %v3318, %v3406
    %v3408 = vpop.f32.mrb[0].mxu0
    %3409 = vmatprep.mubr.f32.mxu0 0.0
    %3410 = vmatmul.mubr.f32.gmra.mrb[0].mxu0 %v2688
    %v3411 = vpop.f32.mrb[0].mxu0
    %v3412 = vadd.f32 %v3318, %v3411
    %v3413 = vpop.f32.mrb[0].mxu0
    %3414 = vmatprep.mubr.f32.mxu0 0.0
    %3415 = vmatmul.mubr.f32.gmra.mrb[0].mxu0 %v2992
    %v3416 = vpop.f32.mrb[0].mxu0
    %v3417 = vadd.f32 %v3318, %v3416
    %v3418 = vpop.f32.mrb[0].mxu0
    %3419 = vmatprep.mubr.f32.mxu0 0.0
    %3420 = vmatmul.mubr.f32.gmra.mrb[0].mxu0 %v3296
    %v3421 = vpop.f32.mrb[0].mxu0
    %v3422 = vadd.f32 %v3318, %v3421
    %v3423 = vpop.f32.mrb[0].mxu0
    %3424 = vdwg.mxu0
    %s3425 = sld [smem:[#allocation2]]
    %vm3426 = vcmp.ge.f32.partialorder %v3387, 0.0
    %vm3427 = vcmp.ge.f32.partialorder %v3392, 0.0
    %vm3428 = vcmp.ge.f32.partialorder %v3397, 0.0
    %vm3429 = vcmp.ge.f32.partialorder %v3402, 0.0
    %vm3430 = vcmp.ge.f32.partialorder %v3407, 0.0
    %vm3431 = vcmp.ge.f32.partialorder %v3412, 0.0
    %vm3432 = vcmp.ge.f32.partialorder %v3417, 0.0
    %vm3433 = vcmp.ge.f32.partialorder %v3422, 0.0
    %v3434 = vstv %s3425
    %v3435 = vmul.f32 %v3434, %v3387
    %v3436 = vmul.f32 %v3434, %v3392
    %v3437 = vmul.f32 %v3434, %v3397
    %v3438 = vmul.f32 %v3434, %v3402
    %v3439 = vmul.f32 %v3434, %v3407
    %v3440 = vmul.f32 %v3434, %v3412
    %v3441 = vmul.f32 %v3434, %v3417
    %v3442 = vmul.f32 %v3434, %v3422
    %v3443 = vsel %vm3426, %v3387, %v3435
    %v3444 = vsel %vm3427, %v3392, %v3436
    %v3445 = vsel %vm3428, %v3397, %v3437
    %v3446 = vsel %vm3429, %v3402, %v3438
    %v3447 = vsel %vm3430, %v3407, %v3439
    %v3448 = vsel %vm3431, %v3412, %v3440
    %v3449 = vsel %vm3432, %v3417, %v3441
    %v3450 = vsel %vm3433, %v3422, %v3442
    %3451 = vst [vmem:[#allocation14] sm:$0xff] %v3443
    %3452 = vst [vmem:[#allocation14 + $0x8] sm:$0xff] %v3444
    %3453 = vst [vmem:[#allocation14 + $0x10] sm:$0xff] %v3445
    %3454 = vst [vmem:[#allocation14 + $0x18] sm:$0xff] %v3446
    %3455 = vst [vmem:[#allocation14 + $0x20] sm:$0xff] %v3447
    %3456 = vst [vmem:[#allocation14 + $0x28] sm:$0xff] %v3448
    %3457 = vst [vmem:[#allocation14 + $0x30] sm:$0xff] %v3449
    %3458 = vst [vmem:[#allocation14 + $0x38] sm:$0xff] %v3450
    // Predicated region
    $region66: #{tpu_custom_call.1} parent=1 // pred_check
      _
    $region67: #{tpu_custom_call.1} parent=1 // pred_check_branch
      %3460 = sbr.rel (0) target = $region69
    $region68: #{tpu_custom_call.1} parent=1 // pred_region
      %s3462 = ssub.s32 1024, 1024
      %3463 = vsyncadd [#allocation5], %s3462
      %s3464 = sshll.u32 [#allocation14], 4
      %s3465 = int_to_ptr.vmem [resolvable:$true] %s3464
      %3470 = dma.vmem_to_hbm [thread:$0]  %s3465, 1024, %s10, [#allocation5], 128, 128, 8
    $region69: #{tpu_custom_call.1} parent=1 // pred_fallthru
      _
    // Predicated region
    $region70: #{tpu_custom_call.1} parent=1 // pred_check
      _
    $region71: #{tpu_custom_call.1} parent=1 // pred_check_branch
      %3472 = sbr.rel (0) target = $region73
    $region72: #{tpu_custom_call.1} parent=1 // pred_region
      %3473 = dma.done [#allocation5], 1024
    $region73: #{tpu_custom_call.1} parent=1 // pred_fallthru
      _
    %3474 = vsyncpa [#allocation4], 1
    %3475 = vsyncpa [#allocation7], 1
    %3476 = vsyncpa [#allocation10], 1
    %3477 = vsyncpa [#allocation13], 1
    %3478 = vsyncpa [#allocation5], 1

</llo_original>
